<compile_context>
chip_gen: v7x
topology: tpu7x:2x2x1
jax: 0.10.0
libtpu: 0.0.40
codegen_flags: <defaults>
</compile_context>

<pallas_src>
import jax
import jax.numpy as jnp
from jax import lax
from jax.experimental import pallas as pl
from jax.experimental.pallas import tpu as pltpu

EPS = 1e-5


# ---------------------------------------------------------------------------
# Kernels
# ---------------------------------------------------------------------------
def _conv3x3_relu_stats_kernel(x_ref, scale_ref, shift_ref, w_ref, b_ref,
                               y_ref, stats_ref, pad_ref, patch_ref):
    # x_ref     : (1, H, W, Cin)      one image (NHWC tile)
    # scale_ref : (1, Cin)            folded BN affine of the previous stage
    # shift_ref : (1, Cin)            (identity for the first conv)
    # w_ref     : (9*Cin, Cout)       im2col conv weight, rows = (kh, kw, cin)
    # b_ref     : (1, Cout)           conv bias
    # y_ref     : (1, H, W, Cout)     relu(conv(x*scale+shift) + b)
    # stats_ref : (1, 2, Cout)        per-image [sum, sum-of-squares] over H*W
    # pad_ref   : (1, H+2, W+2, Cin)  persistent VMEM zero-padded staging
    # patch_ref : (H*W, 9*Cin)        persistent VMEM im2col patch matrix
    _, H, W, Cin = x_ref.shape
    Cout = y_ref.shape[-1]

    # Folded BatchNorm affine of the previous stage (per-channel scale/shift).
    x = (x_ref[...] * scale_ref[...].reshape(1, 1, 1, Cin)
         + shift_ref[...].reshape(1, 1, 1, Cin))

    # Stage into the persistent zero-padded scratch. Only the 1-pixel border
    # ring is zeroed (per step, so it stays correct under megacore sharding
    # where program_id()==0 may never run on a core); the interior is fully
    # overwritten every step.
    pad_ref[:, 0:1, :, :] = jnp.zeros((1, 1, W + 2, Cin), jnp.float32)
    pad_ref[:, H + 1:H + 2, :, :] = jnp.zeros((1, 1, W + 2, Cin), jnp.float32)
    pad_ref[:, :, 0:1, :] = jnp.zeros((1, H + 2, 1, Cin), jnp.float32)
    pad_ref[:, :, W + 1:W + 2, :] = jnp.zeros((1, H + 2, 1, Cin), jnp.float32)
    pad_ref[:, 1:H + 1, 1:W + 1, :] = x

    # im2col: build one (H*W, 9*Cin) patch matrix -> a single long-K MXU matmul
    # (instead of 9 separate K=Cin matmuls).
    xp = pad_ref[...]
    for kh in range(3):
        for kw in range(3):
            j = kh * 3 + kw
            col = xp[:, kh:kh + H, kw:kw + W, :].reshape(H * W, Cin)
            patch_ref[:, j * Cin:(j + 1) * Cin] = col

    acc = jnp.dot(patch_ref[...], w_ref[...],
                  preferred_element_type=jnp.float32)        # (H*W, Cout)
    y = jnp.maximum(acc + b_ref[...], 0.0)

    # Per-image BatchNorm partial statistics; finalized (mean/var) outside.
    stats_ref[:, 0:1, :] = jnp.sum(y, axis=0, keepdims=True).reshape(1, 1, Cout)
    stats_ref[:, 1:2, :] = jnp.sum(y * y, axis=0,
                                   keepdims=True).reshape(1, 1, Cout)

    y_ref[...] = y.reshape(1, H, W, Cout)


def _affine_kernel(x_ref, scale_ref, shift_ref, o_ref):
    # Final BatchNorm as a folded per-channel affine: o = x*scale + shift.
    C = x_ref.shape[-1]
    o_ref[...] = (x_ref[...] * scale_ref[...].reshape(1, 1, 1, C)
                  + shift_ref[...].reshape(1, 1, 1, C))


# ---------------------------------------------------------------------------
# Stage wrappers (one pallas_call each, gridded over the batch)
# ---------------------------------------------------------------------------
_COMPILER_PARAMS = pltpu.CompilerParams(
    dimension_semantics=("parallel",),          # use both v7x TensorCores
    vmem_limit_bytes=48 * 1024 * 1024,
)


def _conv_stage(x_nhwc, scale_in, shift_in, w_mat, bias):
    """relu(conv3x3(x*scale_in + shift_in) + bias), plus per-image BN sums."""
    N, H, W, Cin = x_nhwc.shape
    Cout = w_mat.shape[-1]

    grid_spec = pltpu.PrefetchScalarGridSpec(
        num_scalar_prefetch=0,
        grid=(N,),
        in_specs=[
            pl.BlockSpec((1, H, W, Cin), lambda n: (n, 0, 0, 0)),
            pl.BlockSpec((1, Cin), lambda n: (0, 0)),
            pl.BlockSpec((1, Cin), lambda n: (0, 0)),
            pl.BlockSpec((9 * Cin, Cout), lambda n: (0, 0)),
            pl.BlockSpec((1, Cout), lambda n: (0, 0)),
        ],
        out_specs=[
            pl.BlockSpec((1, H, W, Cout), lambda n: (n, 0, 0, 0)),
            pl.BlockSpec((1, 2, Cout), lambda n: (n, 0, 0)),
        ],
        scratch_shapes=[
            pltpu.VMEM((1, H + 2, W + 2, Cin), jnp.float32),   # padded staging
            pltpu.VMEM((H * W, 9 * Cin), jnp.float32),         # im2col patch
        ],
    )
    y, stats = pl.pallas_call(
        _conv3x3_relu_stats_kernel,
        out_shape=(jax.ShapeDtypeStruct((N, H, W, Cout), jnp.float32),
                   jax.ShapeDtypeStruct((N, 2, Cout), jnp.float32)),
        grid_spec=grid_spec,
        compiler_params=_COMPILER_PARAMS,
    )(x_nhwc, scale_in, shift_in, w_mat, bias)
    return y, stats


def _affine_stage(x_nhwc, scale, shift):
    N, H, W, C = x_nhwc.shape
    grid_spec = pltpu.PrefetchScalarGridSpec(
        num_scalar_prefetch=0,
        grid=(N,),
        in_specs=[
            pl.BlockSpec((1, H, W, C), lambda n: (n, 0, 0, 0)),
            pl.BlockSpec((1, C), lambda n: (0, 0)),
            pl.BlockSpec((1, C), lambda n: (0, 0)),
        ],
        out_specs=pl.BlockSpec((1, H, W, C), lambda n: (n, 0, 0, 0)),
    )
    return pl.pallas_call(
        _affine_kernel,
        out_shape=jax.ShapeDtypeStruct((N, H, W, C), jnp.float32),
        grid_spec=grid_spec,
        compiler_params=_COMPILER_PARAMS,
    )(x_nhwc, scale, shift)


def _bn_fold(stats, gamma, beta, count):
    """Finalize BN from per-image [sum, sumsq] -> folded (scale, shift)."""
    s = jnp.sum(stats[:, 0, :], axis=0)
    ss = jnp.sum(stats[:, 1, :], axis=0)
    mean = s / count
    # Biased (training-mode) variance; clamp guards tiny negative from
    # E[x^2]-E[x]^2 cancellation (f32 accumulation, ReLU-bounded activations).
    var = jnp.maximum(ss / count - mean * mean, 0.0)
    scale = gamma * lax.rsqrt(var + EPS)
    shift = beta - mean * scale
    return (scale.reshape(1, -1).astype(jnp.float32),
            shift.reshape(1, -1).astype(jnp.float32))


# ---------------------------------------------------------------------------
# Full forward pass (PyTorch NCHW interface)
# ---------------------------------------------------------------------------
@jax.jit
def unet_conv_block(x_nchw, params):
    """PyTorch-semantics UnetConvBlock forward. x_nchw: (N, Cin, H, W) f32."""
    N, Cin, H, W = x_nchw.shape
    Cout = params["w1"].shape[0]

    # NCHW -> NHWC only at the interface boundary; kernels work NHWC.
    x = jnp.transpose(x_nchw, (0, 2, 3, 1)).astype(jnp.float32)

    # (Cout, Cin, 3, 3) -> (9*Cin, Cout) im2col weights, rows = (kh, kw, cin)
    w1 = jnp.transpose(params["w1"], (2, 3, 1, 0)).reshape(9 * Cin, Cout)
    w1 = w1.astype(jnp.float32)
    w2 = jnp.transpose(params["w2"], (2, 3, 1, 0)).reshape(9 * Cout, Cout)
    w2 = w2.astype(jnp.float32)
    b1 = params["b1"].reshape(1, Cout).astype(jnp.float32)
    b2 = params["b2"].reshape(1, Cout).astype(jnp.float32)

    ident_scale = jnp.ones((1, Cin), jnp.float32)
    ident_shift = jnp.zeros((1, Cin), jnp.float32)
    count = float(N * H * W)

    # Stage 1: conv1 + bias + ReLU, with per-image BN1 partial stats.
    y1, st1 = _conv_stage(x, ident_scale, ident_shift, w1, b1)
    s1, h1 = _bn_fold(st1, params["g1"], params["be1"], count)
    # Dropout(0.2): identity (eval semantics) -- see TODO at top.

    # Stage 2: BN1 affine folded into the conv input + conv2 + bias + ReLU,
    # with per-image BN2 partial stats.
    y2, st2 = _conv_stage(y1, s1, h1, w2, b2)
    s2, h2 = _bn_fold(st2, params["g2"], params["be2"], count)

    # Stage 3: BN2 affine.
    out = _affine_stage(y2, s2, h2)

    # back to PyTorch NCHW
    return jnp.transpose(out, (0, 3, 1, 2))


# ---------------------------------------------------------------------------
# Plain-JAX reference (same forward semantics, NCHW throughout)
# ---------------------------------------------------------------------------
def reference(x_nchw, p):
    dn = ("NCHW", "OIHW", "NCHW")

    def bn_relu(y, g, be):
        y = jnp.maximum(y, 0.0)
        mean = jnp.mean(y, axis=(0, 2, 3), keepdims=True)
        var = jnp.mean((y - mean) ** 2, axis=(0, 2, 3), keepdims=True)
        return ((y - mean) / jnp.sqrt(var + EPS)) * g[None, :, None, None] \
            + be[None, :, None, None]

    y = lax.conv_general_dilated(x_nchw, p["w1"], (1, 1), ((1, 1), (1, 1)),
                                 dimension_numbers=dn)
    y = y + p["b1"][None, :, None, None]
    y = bn_relu(y, p["g1"], p["be1"])
    y = lax.conv_general_dilated(y, p["w2"], (1, 1), ((1, 1), (1, 1)),
                                 dimension_numbers=dn)
    y = y + p["b2"][None, :, None, None]
    y = bn_relu(y, p["g2"], p["be2"])
    return y


if __name__ == "__main__":
    N, Cin, Cout, H, W = 2, 4, 8, 16, 16
    key = jax.random.PRNGKey(0)
    kx, kw1, kb1, kw2, kb2, kg1, kbe1, kg2, kbe2 = jax.random.split(key, 9)

    x = jax.random.normal(kx, (N, Cin, H, W), jnp.float32)
    params = {
        "w1": 0.2 * jax.random.normal(kw1, (Cout, Cin, 3, 3), jnp.float32),
        "b1": 0.1 * jax.random.normal(kb1, (Cout,), jnp.float32),
        "w2": 0.2 * jax.random.normal(kw2, (Cout, Cout, 3, 3), jnp.float32),
        "b2": 0.1 * jax.random.normal(kb2, (Cout,), jnp.float32),
        "g1": 1.0 + 0.1 * jax.random.normal(kg1, (Cout,), jnp.float32),
        "be1": 0.1 * jax.random.normal(kbe1, (Cout,), jnp.float32),
        "g2": 1.0 + 0.1 * jax.random.normal(kg2, (Cout,), jnp.float32),
        "be2": 0.1 * jax.random.normal(kbe2, (Cout,), jnp.float32),
    }

    out = jax.block_until_ready(unet_conv_block(x, params))
    ref = jax.block_until_ready(reference(x, params))

    assert out.shape == (N, Cout, H, W), out.shape
    assert jnp.allclose(out, ref, rtol=1e-4, atol=5e-4), \
        float(jnp.max(jnp.abs(out - ref)))
    print("KERNEL_OK")
</pallas_src>

<mosaic_0001>
module attributes {stable_mosaic.version = 11 : i64} {
  func.func @_conv3x3_relu_stats_kernel(%arg0: i32, %arg1: memref<1x16x16x4xf32, #tpu.memory_space<vmem>>, %arg2: memref<1x4xf32, #tpu.memory_space<vmem>>, %arg3: memref<1x4xf32, #tpu.memory_space<vmem>>, %arg4: memref<36x8xf32, #tpu.memory_space<vmem>>, %arg5: memref<1x8xf32, #tpu.memory_space<vmem>>, %arg6: memref<1x16x16x8xf32, #tpu.memory_space<vmem>>, %arg7: memref<1x2x8xf32, #tpu.memory_space<vmem>>, %arg8: memref<1x18x18x4xf32, #tpu.memory_space<vmem>>, %arg9: memref<256x36xf32, #tpu.memory_space<vmem>>) attributes {dimension_semantics = [#tpu.dimension_semantics<parallel>], iteration_bounds = array<i64: 2>, scalar_prefetch = 0 : i64, scratch_operands = 2 : i64, tpu.core_type = #tpu.core_type<tc>, window_params = [{transform_indices = @transform_0, window_bounds = array<i64: 1, 16, 16, 4>}, {pipeline_mode = #tpu.pipeline_mode<synchronous>, transform_indices = @transform_1, window_bounds = array<i64: 1, 4>}, {pipeline_mode = #tpu.pipeline_mode<synchronous>, transform_indices = @transform_2, window_bounds = array<i64: 1, 4>}, {pipeline_mode = #tpu.pipeline_mode<synchronous>, transform_indices = @transform_3, window_bounds = array<i64: 36, 8>}, {pipeline_mode = #tpu.pipeline_mode<synchronous>, transform_indices = @transform_4, window_bounds = array<i64: 1, 8>}, {transform_indices = @transform_5, window_bounds = array<i64: 1, 16, 16, 8>}, {transform_indices = @transform_6, window_bounds = array<i64: 1, 2, 8>}]} {
    %c0 = arith.constant 0 : index
    %c0_0 = arith.constant 0 : index
    %c0_1 = arith.constant 0 : index
    %c0_2 = arith.constant 0 : index
    %0 = vector.load %arg1[%c0, %c0_0, %c0_1, %c0_2] : memref<1x16x16x4xf32, #tpu.memory_space<vmem>>, vector<1x16x16x4xf32>
    %c0_3 = arith.constant 0 : index
    %c0_4 = arith.constant 0 : index
    %1 = vector.load %arg2[%c0_3, %c0_4] : memref<1x4xf32, #tpu.memory_space<vmem>>, vector<1x4xf32>
    %2 = vector.shape_cast %1 : vector<1x4xf32> to vector<1x1x1x4xf32>
    %3 = vector.broadcast %2 : vector<1x1x1x4xf32> to vector<1x16x16x4xf32>
    %4 = arith.mulf %0, %3 : vector<1x16x16x4xf32>
    %c0_5 = arith.constant 0 : index
    %c0_6 = arith.constant 0 : index
    %5 = vector.load %arg3[%c0_5, %c0_6] : memref<1x4xf32, #tpu.memory_space<vmem>>, vector<1x4xf32>
    %6 = vector.shape_cast %5 : vector<1x4xf32> to vector<1x1x1x4xf32>
    %7 = vector.broadcast %6 : vector<1x1x1x4xf32> to vector<1x16x16x4xf32>
    %8 = arith.addf %4, %7 : vector<1x16x16x4xf32>
    %cst = arith.constant 0.000000e+00 : f32
    %9 = vector.broadcast %cst : f32 to vector<1x1x18x4xf32>
    %c0_7 = arith.constant 0 : index
    %c0_8 = arith.constant 0 : index
    %c0_9 = arith.constant 0 : index
    %c0_10 = arith.constant 0 : index
    %10 = vector.load %arg8[%c0_7, %c0_8, %c0_9, %c0_10] : memref<1x18x18x4xf32, #tpu.memory_space<vmem>>, vector<1x1x18x4xf32>
    tpu.vector_store %arg8[%c0_7, %c0_8, %c0_9, %c0_10], %9 {strides = array<i32>} : memref<1x18x18x4xf32, #tpu.memory_space<vmem>>, vector<1x1x18x4xf32>,
    %cst_11 = arith.constant 0.000000e+00 : f32
    %11 = vector.broadcast %cst_11 : f32 to vector<1x1x18x4xf32>
    %c0_12 = arith.constant 0 : index
    %c17 = arith.constant 17 : index
    %c0_13 = arith.constant 0 : index
    %c0_14 = arith.constant 0 : index
    %12 = vector.load %arg8[%c0_12, %c17, %c0_13, %c0_14] : memref<1x18x18x4xf32, #tpu.memory_space<vmem>>, vector<1x1x18x4xf32>
    tpu.vector_store %arg8[%c0_12, %c17, %c0_13, %c0_14], %11 {strides = array<i32>} : memref<1x18x18x4xf32, #tpu.memory_space<vmem>>, vector<1x1x18x4xf32>,
    %cst_15 = arith.constant 0.000000e+00 : f32
    %13 = vector.broadcast %cst_15 : f32 to vector<1x18x1x4xf32>
    %c0_16 = arith.constant 0 : index
    %c0_17 = arith.constant 0 : index
    %c0_18 = arith.constant 0 : index
    %c0_19 = arith.constant 0 : index
    %14 = vector.load %arg8[%c0_16, %c0_17, %c0_18, %c0_19] : memref<1x18x18x4xf32, #tpu.memory_space<vmem>>, vector<1x18x1x4xf32>
    tpu.vector_store %arg8[%c0_16, %c0_17, %c0_18, %c0_19], %13 {strides = array<i32>} : memref<1x18x18x4xf32, #tpu.memory_space<vmem>>, vector<1x18x1x4xf32>,
    %cst_20 = arith.constant 0.000000e+00 : f32
    %15 = vector.broadcast %cst_20 : f32 to vector<1x18x1x4xf32>
    %c0_21 = arith.constant 0 : index
    %c0_22 = arith.constant 0 : index
    %c17_23 = arith.constant 17 : index
    %c0_24 = arith.constant 0 : index
    %16 = vector.load %arg8[%c0_21, %c0_22, %c17_23, %c0_24] : memref<1x18x18x4xf32, #tpu.memory_space<vmem>>, vector<1x18x1x4xf32>
    tpu.vector_store %arg8[%c0_21, %c0_22, %c17_23, %c0_24], %15 {strides = array<i32>} : memref<1x18x18x4xf32, #tpu.memory_space<vmem>>, vector<1x18x1x4xf32>,
    %c0_25 = arith.constant 0 : index
    %c1 = arith.constant 1 : index
    %c1_26 = arith.constant 1 : index
    %c0_27 = arith.constant 0 : index
    %17 = vector.load %arg8[%c0_25, %c1, %c1_26, %c0_27] : memref<1x18x18x4xf32, #tpu.memory_space<vmem>>, vector<1x16x16x4xf32>
    tpu.vector_store %arg8[%c0_25, %c1, %c1_26, %c0_27], %8 {strides = array<i32>} : memref<1x18x18x4xf32, #tpu.memory_space<vmem>>, vector<1x16x16x4xf32>,
    %c0_28 = arith.constant 0 : index
    %c0_29 = arith.constant 0 : index
    %c0_30 = arith.constant 0 : index
    %c0_31 = arith.constant 0 : index
    %18 = vector.load %arg8[%c0_28, %c0_29, %c0_30, %c0_31] : memref<1x18x18x4xf32, #tpu.memory_space<vmem>>, vector<1x18x18x4xf32>
    %19 = vector.extract_strided_slice %18 {offsets = [0, 0, 0, 0], sizes = [1, 16, 16, 4], strides = [1, 1, 1, 1]} : vector<1x18x18x4xf32> to vector<1x16x16x4xf32>
    %20 = vector.shape_cast %19 : vector<1x16x16x4xf32> to vector<256x4xf32>
    %c0_32 = arith.constant 0 : index
    %c0_33 = arith.constant 0 : index
    %21 = vector.load %arg9[%c0_32, %c0_33] : memref<256x36xf32, #tpu.memory_space<vmem>>, vector<256x4xf32>
    tpu.vector_store %arg9[%c0_32, %c0_33], %20 {strides = array<i32>} : memref<256x36xf32, #tpu.memory_space<vmem>>, vector<256x4xf32>,
    %22 = vector.extract_strided_slice %18 {offsets = [0, 0, 1, 0], sizes = [1, 16, 16, 4], strides = [1, 1, 1, 1]} : vector<1x18x18x4xf32> to vector<1x16x16x4xf32>
    %23 = vector.shape_cast %22 : vector<1x16x16x4xf32> to vector<256x4xf32>
    %c0_34 = arith.constant 0 : index
    %c4 = arith.constant 4 : index
    %24 = vector.load %arg9[%c0_34, %c4] : memref<256x36xf32, #tpu.memory_space<vmem>>, vector<256x4xf32>
    tpu.vector_store %arg9[%c0_34, %c4], %23 {strides = array<i32>} : memref<256x36xf32, #tpu.memory_space<vmem>>, vector<256x4xf32>,
    %25 = vector.extract_strided_slice %18 {offsets = [0, 0, 2, 0], sizes = [1, 16, 16, 4], strides = [1, 1, 1, 1]} : vector<1x18x18x4xf32> to vector<1x16x16x4xf32>
    %26 = vector.shape_cast %25 : vector<1x16x16x4xf32> to vector<256x4xf32>
    %c0_35 = arith.constant 0 : index
    %c8 = arith.constant 8 : index
    %27 = vector.load %arg9[%c0_35, %c8] : memref<256x36xf32, #tpu.memory_space<vmem>>, vector<256x4xf32>
    tpu.vector_store %arg9[%c0_35, %c8], %26 {strides = array<i32>} : memref<256x36xf32, #tpu.memory_space<vmem>>, vector<256x4xf32>,
    %28 = vector.extract_strided_slice %18 {offsets = [0, 1, 0, 0], sizes = [1, 16, 16, 4], strides = [1, 1, 1, 1]} : vector<1x18x18x4xf32> to vector<1x16x16x4xf32>
    %29 = vector.shape_cast %28 : vector<1x16x16x4xf32> to vector<256x4xf32>
    %c0_36 = arith.constant 0 : index
    %c12 = arith.constant 12 : index
    %30 = vector.load %arg9[%c0_36, %c12] : memref<256x36xf32, #tpu.memory_space<vmem>>, vector<256x4xf32>
    tpu.vector_store %arg9[%c0_36, %c12], %29 {strides = array<i32>} : memref<256x36xf32, #tpu.memory_space<vmem>>, vector<256x4xf32>,
    %31 = vector.extract_strided_slice %18 {offsets = [0, 1, 1, 0], sizes = [1, 16, 16, 4], strides = [1, 1, 1, 1]} : vector<1x18x18x4xf32> to vector<1x16x16x4xf32>
    %32 = vector.shape_cast %31 : vector<1x16x16x4xf32> to vector<256x4xf32>
    %c0_37 = arith.constant 0 : index
    %c16 = arith.constant 16 : index
    %33 = vector.load %arg9[%c0_37, %c16] : memref<256x36xf32, #tpu.memory_space<vmem>>, vector<256x4xf32>
    tpu.vector_store %arg9[%c0_37, %c16], %32 {strides = array<i32>} : memref<256x36xf32, #tpu.memory_space<vmem>>, vector<256x4xf32>,
    %34 = vector.extract_strided_slice %18 {offsets = [0, 1, 2, 0], sizes = [1, 16, 16, 4], strides = [1, 1, 1, 1]} : vector<1x18x18x4xf32> to vector<1x16x16x4xf32>
    %35 = vector.shape_cast %34 : vector<1x16x16x4xf32> to vector<256x4xf32>
    %c0_38 = arith.constant 0 : index
    %c20 = arith.constant 20 : index
    %36 = vector.load %arg9[%c0_38, %c20] : memref<256x36xf32, #tpu.memory_space<vmem>>, vector<256x4xf32>
    tpu.vector_store %arg9[%c0_38, %c20], %35 {strides = array<i32>} : memref<256x36xf32, #tpu.memory_space<vmem>>, vector<256x4xf32>,
    %37 = vector.extract_strided_slice %18 {offsets = [0, 2, 0, 0], sizes = [1, 16, 16, 4], strides = [1, 1, 1, 1]} : vector<1x18x18x4xf32> to vector<1x16x16x4xf32>
    %38 = vector.shape_cast %37 : vector<1x16x16x4xf32> to vector<256x4xf32>
    %c0_39 = arith.constant 0 : index
    %c24 = arith.constant 24 : index
    %39 = vector.load %arg9[%c0_39, %c24] : memref<256x36xf32, #tpu.memory_space<vmem>>, vector<256x4xf32>
    tpu.vector_store %arg9[%c0_39, %c24], %38 {strides = array<i32>} : memref<256x36xf32, #tpu.memory_space<vmem>>, vector<256x4xf32>,
    %40 = vector.extract_strided_slice %18 {offsets = [0, 2, 1, 0], sizes = [1, 16, 16, 4], strides = [1, 1, 1, 1]} : vector<1x18x18x4xf32> to vector<1x16x16x4xf32>
    %41 = vector.shape_cast %40 : vector<1x16x16x4xf32> to vector<256x4xf32>
    %c0_40 = arith.constant 0 : index
    %c28 = arith.constant 28 : index
    %42 = vector.load %arg9[%c0_40, %c28] : memref<256x36xf32, #tpu.memory_space<vmem>>, vector<256x4xf32>
    tpu.vector_store %arg9[%c0_40, %c28], %41 {strides = array<i32>} : memref<256x36xf32, #tpu.memory_space<vmem>>, vector<256x4xf32>,
    %43 = vector.extract_strided_slice %18 {offsets = [0, 2, 2, 0], sizes = [1, 16, 16, 4], strides = [1, 1, 1, 1]} : vector<1x18x18x4xf32> to vector<1x16x16x4xf32>
    %44 = vector.shape_cast %43 : vector<1x16x16x4xf32> to vector<256x4xf32>
    %c0_41 = arith.constant 0 : index
    %c32 = arith.constant 32 : index
    %45 = vector.load %arg9[%c0_41, %c32] : memref<256x36xf32, #tpu.memory_space<vmem>>, vector<256x4xf32>
    tpu.vector_store %arg9[%c0_41, %c32], %44 {strides = array<i32>} : memref<256x36xf32, #tpu.memory_space<vmem>>, vector<256x4xf32>,
    %c0_42 = arith.constant 0 : index
    %c0_43 = arith.constant 0 : index
    %46 = vector.load %arg9[%c0_42, %c0_43] : memref<256x36xf32, #tpu.memory_space<vmem>>, vector<256x36xf32>
    %c0_44 = arith.constant 0 : index
    %c0_45 = arith.constant 0 : index
    %47 = vector.load %arg4[%c0_44, %c0_45] : memref<36x8xf32, #tpu.memory_space<vmem>>, vector<36x8xf32>
    %cst_46 = arith.constant dense<0.000000e+00> : vector<256x8xf32>
    %48 = tpu.matmul %46, %47, %cst_46 {dimension_numbers = #tpu.dot_dimension_numbers<[1], [0], [0], [1], [0, 0, 1, 1], [], []>} : vector<256x36xf32>, vector<36x8xf32>, vector<256x8xf32> -> vector<256x8xf32>
    %c0_47 = arith.constant 0 : index
    %c0_48 = arith.constant 0 : index
    %49 = vector.load %arg5[%c0_47, %c0_48] : memref<1x8xf32, #tpu.memory_space<vmem>>, vector<1x8xf32>
    %50 = vector.broadcast %49 : vector<1x8xf32> to vector<256x8xf32>
    %51 = arith.addf %48, %50 : vector<256x8xf32>
    %cst_49 = arith.constant 0.000000e+00 : f32
    %52 = vector.broadcast %cst_49 : f32 to vector<256x8xf32>
    %53 = arith.maximumf %51, %52 : vector<256x8xf32>
    %cst_50 = arith.constant dense<0.000000e+00> : vector<8xf32>
    %54 = vector.multi_reduction <add>, %53, %cst_50 [0] : vector<256x8xf32> to vector<8xf32>
    %55 = vector.shape_cast %54 : vector<8xf32> to vector<1x8xf32>
    %56 = vector.shape_cast %55 : vector<1x8xf32> to vector<1x1x8xf32>
    %c0_51 = arith.constant 0 : index
    %c0_52 = arith.constant 0 : index
    %c0_53 = arith.constant 0 : index
    %57 = vector.load %arg7[%c0_51, %c0_52, %c0_53] : memref<1x2x8xf32, #tpu.memory_space<vmem>>, vector<1x1x8xf32>
    tpu.vector_store %arg7[%c0_51, %c0_52, %c0_53], %56 {strides = array<i32>} : memref<1x2x8xf32, #tpu.memory_space<vmem>>, vector<1x1x8xf32>,
    %58 = arith.mulf %53, %53 : vector<256x8xf32>
    %cst_54 = arith.constant dense<0.000000e+00> : vector<8xf32>
    %59 = vector.multi_reduction <add>, %58, %cst_54 [0] : vector<256x8xf32> to vector<8xf32>
    %60 = vector.shape_cast %59 : vector<8xf32> to vector<1x8xf32>
    %61 = vector.shape_cast %60 : vector<1x8xf32> to vector<1x1x8xf32>
    %c0_55 = arith.constant 0 : index
    %c1_56 = arith.constant 1 : index
    %c0_57 = arith.constant 0 : index
    %62 = vector.load %arg7[%c0_55, %c1_56, %c0_57] : memref<1x2x8xf32, #tpu.memory_space<vmem>>, vector<1x1x8xf32>
    tpu.vector_store %arg7[%c0_55, %c1_56, %c0_57], %61 {strides = array<i32>} : memref<1x2x8xf32, #tpu.memory_space<vmem>>, vector<1x1x8xf32>,
    %63 = vector.shape_cast %53 : vector<256x8xf32> to vector<1x16x16x8xf32>
    %c0_58 = arith.constant 0 : index
    %c0_59 = arith.constant 0 : index
    %c0_60 = arith.constant 0 : index
    %c0_61 = arith.constant 0 : index
    %64 = vector.load %arg6[%c0_58, %c0_59, %c0_60, %c0_61] : memref<1x16x16x8xf32, #tpu.memory_space<vmem>>, vector<1x16x16x8xf32>
    tpu.vector_store %arg6[%c0_58, %c0_59, %c0_60, %c0_61], %63 {strides = array<i32>} : memref<1x16x16x8xf32, #tpu.memory_space<vmem>>, vector<1x16x16x8xf32>,
    return
  }
  func.func @transform_0(%arg0: i32) -> (i32, i32, i32, i32) {
    %c0_i32 = arith.constant 0 : i32
    %c0_i32_0 = arith.constant 0 : i32
    %c0_i32_1 = arith.constant 0 : i32
    %c0_i32_2 = arith.constant 0 : i32
    return %arg0, %c0_i32, %c0_i32_0, %c0_i32_1 : i32, i32, i32, i32
  }
  func.func @transform_1(%arg0: i32) -> (i32, i32) {
    %c0_i32 = arith.constant 0 : i32
    %c0_i32_0 = arith.constant 0 : i32
    %c0_i32_1 = arith.constant 0 : i32
    return %c0_i32, %c0_i32_0 : i32, i32
  }
  func.func @transform_2(%arg0: i32) -> (i32, i32) {
    %c0_i32 = arith.constant 0 : i32
    %c0_i32_0 = arith.constant 0 : i32
    %c0_i32_1 = arith.constant 0 : i32
    return %c0_i32, %c0_i32_0 : i32, i32
  }
  func.func @transform_3(%arg0: i32) -> (i32, i32) {
    %c0_i32 = arith.constant 0 : i32
    %c0_i32_0 = arith.constant 0 : i32
    %c0_i32_1 = arith.constant 0 : i32
    return %c0_i32, %c0_i32_0 : i32, i32
  }
  func.func @transform_4(%arg0: i32) -> (i32, i32) {
    %c0_i32 = arith.constant 0 : i32
    %c0_i32_0 = arith.constant 0 : i32
    %c0_i32_1 = arith.constant 0 : i32
    return %c0_i32, %c0_i32_0 : i32, i32
  }
  func.func @transform_5(%arg0: i32) -> (i32, i32, i32, i32) {
    %c0_i32 = arith.constant 0 : i32
    %c0_i32_0 = arith.constant 0 : i32
    %c0_i32_1 = arith.constant 0 : i32
    %c0_i32_2 = arith.constant 0 : i32
    return %arg0, %c0_i32, %c0_i32_0, %c0_i32_1 : i32, i32, i32, i32
  }
  func.func @transform_6(%arg0: i32) -> (i32, i32, i32) {
    %c0_i32 = arith.constant 0 : i32
    %c0_i32_0 = arith.constant 0 : i32
    %c0_i32_1 = arith.constant 0 : i32
    return %arg0, %c0_i32, %c0_i32_0 : i32, i32, i32
  }
}

module attributes {stable_mosaic.version = 11 : i64} {
  func.func @_conv3x3_relu_stats_kernel(%arg0: i32, %arg1: memref<1x16x16x8xf32, #tpu.memory_space<vmem>>, %arg2: memref<1x8xf32, #tpu.memory_space<vmem>>, %arg3: memref<1x8xf32, #tpu.memory_space<vmem>>, %arg4: memref<72x8xf32, #tpu.memory_space<vmem>>, %arg5: memref<1x8xf32, #tpu.memory_space<vmem>>, %arg6: memref<1x16x16x8xf32, #tpu.memory_space<vmem>>, %arg7: memref<1x2x8xf32, #tpu.memory_space<vmem>>, %arg8: memref<1x18x18x8xf32, #tpu.memory_space<vmem>>, %arg9: memref<256x72xf32, #tpu.memory_space<vmem>>) attributes {dimension_semantics = [#tpu.dimension_semantics<parallel>], iteration_bounds = array<i64: 2>, scalar_prefetch = 0 : i64, scratch_operands = 2 : i64, tpu.core_type = #tpu.core_type<tc>, window_params = [{transform_indices = @transform_0, window_bounds = array<i64: 1, 16, 16, 8>}, {pipeline_mode = #tpu.pipeline_mode<synchronous>, transform_indices = @transform_1, window_bounds = array<i64: 1, 8>}, {pipeline_mode = #tpu.pipeline_mode<synchronous>, transform_indices = @transform_2, window_bounds = array<i64: 1, 8>}, {pipeline_mode = #tpu.pipeline_mode<synchronous>, transform_indices = @transform_3, window_bounds = array<i64: 72, 8>}, {pipeline_mode = #tpu.pipeline_mode<synchronous>, transform_indices = @transform_4, window_bounds = array<i64: 1, 8>}, {transform_indices = @transform_5, window_bounds = array<i64: 1, 16, 16, 8>}, {transform_indices = @transform_6, window_bounds = array<i64: 1, 2, 8>}]} {
    %c0 = arith.constant 0 : index
    %c0_0 = arith.constant 0 : index
    %c0_1 = arith.constant 0 : index
    %c0_2 = arith.constant 0 : index
    %0 = vector.load %arg1[%c0, %c0_0, %c0_1, %c0_2] : memref<1x16x16x8xf32, #tpu.memory_space<vmem>>, vector<1x16x16x8xf32>
    %c0_3 = arith.constant 0 : index
    %c0_4 = arith.constant 0 : index
    %1 = vector.load %arg2[%c0_3, %c0_4] : memref<1x8xf32, #tpu.memory_space<vmem>>, vector<1x8xf32>
    %2 = vector.shape_cast %1 : vector<1x8xf32> to vector<1x1x1x8xf32>
    %3 = vector.broadcast %2 : vector<1x1x1x8xf32> to vector<1x16x16x8xf32>
    %4 = arith.mulf %0, %3 : vector<1x16x16x8xf32>
    %c0_5 = arith.constant 0 : index
    %c0_6 = arith.constant 0 : index
    %5 = vector.load %arg3[%c0_5, %c0_6] : memref<1x8xf32, #tpu.memory_space<vmem>>, vector<1x8xf32>
    %6 = vector.shape_cast %5 : vector<1x8xf32> to vector<1x1x1x8xf32>
    %7 = vector.broadcast %6 : vector<1x1x1x8xf32> to vector<1x16x16x8xf32>
    %8 = arith.addf %4, %7 : vector<1x16x16x8xf32>
    %cst = arith.constant 0.000000e+00 : f32
    %9 = vector.broadcast %cst : f32 to vector<1x1x18x8xf32>
    %c0_7 = arith.constant 0 : index
    %c0_8 = arith.constant 0 : index
    %c0_9 = arith.constant 0 : index
    %c0_10 = arith.constant 0 : index
    %10 = vector.load %arg8[%c0_7, %c0_8, %c0_9, %c0_10] : memref<1x18x18x8xf32, #tpu.memory_space<vmem>>, vector<1x1x18x8xf32>
    tpu.vector_store %arg8[%c0_7, %c0_8, %c0_9, %c0_10], %9 {strides = array<i32>} : memref<1x18x18x8xf32, #tpu.memory_space<vmem>>, vector<1x1x18x8xf32>,
    %cst_11 = arith.constant 0.000000e+00 : f32
    %11 = vector.broadcast %cst_11 : f32 to vector<1x1x18x8xf32>
    %c0_12 = arith.constant 0 : index
    %c17 = arith.constant 17 : index
    %c0_13 = arith.constant 0 : index
    %c0_14 = arith.constant 0 : index
    %12 = vector.load %arg8[%c0_12, %c17, %c0_13, %c0_14] : memref<1x18x18x8xf32, #tpu.memory_space<vmem>>, vector<1x1x18x8xf32>
    tpu.vector_store %arg8[%c0_12, %c17, %c0_13, %c0_14], %11 {strides = array<i32>} : memref<1x18x18x8xf32, #tpu.memory_space<vmem>>, vector<1x1x18x8xf32>,
    %cst_15 = arith.constant 0.000000e+00 : f32
    %13 = vector.broadcast %cst_15 : f32 to vector<1x18x1x8xf32>
    %c0_16 = arith.constant 0 : index
    %c0_17 = arith.constant 0 : index
    %c0_18 = arith.constant 0 : index
    %c0_19 = arith.constant 0 : index
    %14 = vector.load %arg8[%c0_16, %c0_17, %c0_18, %c0_19] : memref<1x18x18x8xf32, #tpu.memory_space<vmem>>, vector<1x18x1x8xf32>
    tpu.vector_store %arg8[%c0_16, %c0_17, %c0_18, %c0_19], %13 {strides = array<i32>} : memref<1x18x18x8xf32, #tpu.memory_space<vmem>>, vector<1x18x1x8xf32>,
    %cst_20 = arith.constant 0.000000e+00 : f32
    %15 = vector.broadcast %cst_20 : f32 to vector<1x18x1x8xf32>
    %c0_21 = arith.constant 0 : index
    %c0_22 = arith.constant 0 : index
    %c17_23 = arith.constant 17 : index
    %c0_24 = arith.constant 0 : index
    %16 = vector.load %arg8[%c0_21, %c0_22, %c17_23, %c0_24] : memref<1x18x18x8xf32, #tpu.memory_space<vmem>>, vector<1x18x1x8xf32>
    tpu.vector_store %arg8[%c0_21, %c0_22, %c17_23, %c0_24], %15 {strides = array<i32>} : memref<1x18x18x8xf32, #tpu.memory_space<vmem>>, vector<1x18x1x8xf32>,
    %c0_25 = arith.constant 0 : index
    %c1 = arith.constant 1 : index
    %c1_26 = arith.constant 1 : index
    %c0_27 = arith.constant 0 : index
    %17 = vector.load %arg8[%c0_25, %c1, %c1_26, %c0_27] : memref<1x18x18x8xf32, #tpu.memory_space<vmem>>, vector<1x16x16x8xf32>
    tpu.vector_store %arg8[%c0_25, %c1, %c1_26, %c0_27], %8 {strides = array<i32>} : memref<1x18x18x8xf32, #tpu.memory_space<vmem>>, vector<1x16x16x8xf32>,
    %c0_28 = arith.constant 0 : index
    %c0_29 = arith.constant 0 : index
    %c0_30 = arith.constant 0 : index
    %c0_31 = arith.constant 0 : index
    %18 = vector.load %arg8[%c0_28, %c0_29, %c0_30, %c0_31] : memref<1x18x18x8xf32, #tpu.memory_space<vmem>>, vector<1x18x18x8xf32>
    %19 = vector.extract_strided_slice %18 {offsets = [0, 0, 0, 0], sizes = [1, 16, 16, 8], strides = [1, 1, 1, 1]} : vector<1x18x18x8xf32> to vector<1x16x16x8xf32>
    %20 = vector.shape_cast %19 : vector<1x16x16x8xf32> to vector<256x8xf32>
    %c0_32 = arith.constant 0 : index
    %c0_33 = arith.constant 0 : index
    %21 = vector.load %arg9[%c0_32, %c0_33] : memref<256x72xf32, #tpu.memory_space<vmem>>, vector<256x8xf32>
    tpu.vector_store %arg9[%c0_32, %c0_33], %20 {strides = array<i32>} : memref<256x72xf32, #tpu.memory_space<vmem>>, vector<256x8xf32>,
    %22 = vector.extract_strided_slice %18 {offsets = [0, 0, 1, 0], sizes = [1, 16, 16, 8], strides = [1, 1, 1, 1]} : vector<1x18x18x8xf32> to vector<1x16x16x8xf32>
    %23 = vector.shape_cast %22 : vector<1x16x16x8xf32> to vector<256x8xf32>
    %c0_34 = arith.constant 0 : index
    %c8 = arith.constant 8 : index
    %24 = vector.load %arg9[%c0_34, %c8] : memref<256x72xf32, #tpu.memory_space<vmem>>, vector<256x8xf32>
    tpu.vector_store %arg9[%c0_34, %c8], %23 {strides = array<i32>} : memref<256x72xf32, #tpu.memory_space<vmem>>, vector<256x8xf32>,
    %25 = vector.extract_strided_slice %18 {offsets = [0, 0, 2, 0], sizes = [1, 16, 16, 8], strides = [1, 1, 1, 1]} : vector<1x18x18x8xf32> to vector<1x16x16x8xf32>
    %26 = vector.shape_cast %25 : vector<1x16x16x8xf32> to vector<256x8xf32>
    %c0_35 = arith.constant 0 : index
    %c16 = arith.constant 16 : index
    %27 = vector.load %arg9[%c0_35, %c16] : memref<256x72xf32, #tpu.memory_space<vmem>>, vector<256x8xf32>
    tpu.vector_store %arg9[%c0_35, %c16], %26 {strides = array<i32>} : memref<256x72xf32, #tpu.memory_space<vmem>>, vector<256x8xf32>,
    %28 = vector.extract_strided_slice %18 {offsets = [0, 1, 0, 0], sizes = [1, 16, 16, 8], strides = [1, 1, 1, 1]} : vector<1x18x18x8xf32> to vector<1x16x16x8xf32>
    %29 = vector.shape_cast %28 : vector<1x16x16x8xf32> to vector<256x8xf32>
    %c0_36 = arith.constant 0 : index
    %c24 = arith.constant 24 : index
    %30 = vector.load %arg9[%c0_36, %c24] : memref<256x72xf32, #tpu.memory_space<vmem>>, vector<256x8xf32>
    tpu.vector_store %arg9[%c0_36, %c24], %29 {strides = array<i32>} : memref<256x72xf32, #tpu.memory_space<vmem>>, vector<256x8xf32>,
    %31 = vector.extract_strided_slice %18 {offsets = [0, 1, 1, 0], sizes = [1, 16, 16, 8], strides = [1, 1, 1, 1]} : vector<1x18x18x8xf32> to vector<1x16x16x8xf32>
    %32 = vector.shape_cast %31 : vector<1x16x16x8xf32> to vector<256x8xf32>
    %c0_37 = arith.constant 0 : index
    %c32 = arith.constant 32 : index
    %33 = vector.load %arg9[%c0_37, %c32] : memref<256x72xf32, #tpu.memory_space<vmem>>, vector<256x8xf32>
    tpu.vector_store %arg9[%c0_37, %c32], %32 {strides = array<i32>} : memref<256x72xf32, #tpu.memory_space<vmem>>, vector<256x8xf32>,
    %34 = vector.extract_strided_slice %18 {offsets = [0, 1, 2, 0], sizes = [1, 16, 16, 8], strides = [1, 1, 1, 1]} : vector<1x18x18x8xf32> to vector<1x16x16x8xf32>
    %35 = vector.shape_cast %34 : vector<1x16x16x8xf32> to vector<256x8xf32>
    %c0_38 = arith.constant 0 : index
    %c40 = arith.constant 40 : index
    %36 = vector.load %arg9[%c0_38, %c40] : memref<256x72xf32, #tpu.memory_space<vmem>>, vector<256x8xf32>
    tpu.vector_store %arg9[%c0_38, %c40], %35 {strides = array<i32>} : memref<256x72xf32, #tpu.memory_space<vmem>>, vector<256x8xf32>,
    %37 = vector.extract_strided_slice %18 {offsets = [0, 2, 0, 0], sizes = [1, 16, 16, 8], strides = [1, 1, 1, 1]} : vector<1x18x18x8xf32> to vector<1x16x16x8xf32>
    %38 = vector.shape_cast %37 : vector<1x16x16x8xf32> to vector<256x8xf32>
    %c0_39 = arith.constant 0 : index
    %c48 = arith.constant 48 : index
    %39 = vector.load %arg9[%c0_39, %c48] : memref<256x72xf32, #tpu.memory_space<vmem>>, vector<256x8xf32>
    tpu.vector_store %arg9[%c0_39, %c48], %38 {strides = array<i32>} : memref<256x72xf32, #tpu.memory_space<vmem>>, vector<256x8xf32>,
    %40 = vector.extract_strided_slice %18 {offsets = [0, 2, 1, 0], sizes = [1, 16, 16, 8], strides = [1, 1, 1, 1]} : vector<1x18x18x8xf32> to vector<1x16x16x8xf32>
    %41 = vector.shape_cast %40 : vector<1x16x16x8xf32> to vector<256x8xf32>
    %c0_40 = arith.constant 0 : index
    %c56 = arith.constant 56 : index
    %42 = vector.load %arg9[%c0_40, %c56] : memref<256x72xf32, #tpu.memory_space<vmem>>, vector<256x8xf32>
    tpu.vector_store %arg9[%c0_40, %c56], %41 {strides = array<i32>} : memref<256x72xf32, #tpu.memory_space<vmem>>, vector<256x8xf32>,
    %43 = vector.extract_strided_slice %18 {offsets = [0, 2, 2, 0], sizes = [1, 16, 16, 8], strides = [1, 1, 1, 1]} : vector<1x18x18x8xf32> to vector<1x16x16x8xf32>
    %44 = vector.shape_cast %43 : vector<1x16x16x8xf32> to vector<256x8xf32>
    %c0_41 = arith.constant 0 : index
    %c64 = arith.constant 64 : index
    %45 = vector.load %arg9[%c0_41, %c64] : memref<256x72xf32, #tpu.memory_space<vmem>>, vector<256x8xf32>
    tpu.vector_store %arg9[%c0_41, %c64], %44 {strides = array<i32>} : memref<256x72xf32, #tpu.memory_space<vmem>>, vector<256x8xf32>,
    %c0_42 = arith.constant 0 : index
    %c0_43 = arith.constant 0 : index
    %46 = vector.load %arg9[%c0_42, %c0_43] : memref<256x72xf32, #tpu.memory_space<vmem>>, vector<256x72xf32>
    %c0_44 = arith.constant 0 : index
    %c0_45 = arith.constant 0 : index
    %47 = vector.load %arg4[%c0_44, %c0_45] : memref<72x8xf32, #tpu.memory_space<vmem>>, vector<72x8xf32>
    %cst_46 = arith.constant dense<0.000000e+00> : vector<256x8xf32>
    %48 = tpu.matmul %46, %47, %cst_46 {dimension_numbers = #tpu.dot_dimension_numbers<[1], [0], [0], [1], [0, 0, 1, 1], [], []>} : vector<256x72xf32>, vector<72x8xf32>, vector<256x8xf32> -> vector<256x8xf32>
    %c0_47 = arith.constant 0 : index
    %c0_48 = arith.constant 0 : index
    %49 = vector.load %arg5[%c0_47, %c0_48] : memref<1x8xf32, #tpu.memory_space<vmem>>, vector<1x8xf32>
    %50 = vector.broadcast %49 : vector<1x8xf32> to vector<256x8xf32>
    %51 = arith.addf %48, %50 : vector<256x8xf32>
    %cst_49 = arith.constant 0.000000e+00 : f32
    %52 = vector.broadcast %cst_49 : f32 to vector<256x8xf32>
    %53 = arith.maximumf %51, %52 : vector<256x8xf32>
    %cst_50 = arith.constant dense<0.000000e+00> : vector<8xf32>
    %54 = vector.multi_reduction <add>, %53, %cst_50 [0] : vector<256x8xf32> to vector<8xf32>
    %55 = vector.shape_cast %54 : vector<8xf32> to vector<1x8xf32>
    %56 = vector.shape_cast %55 : vector<1x8xf32> to vector<1x1x8xf32>
    %c0_51 = arith.constant 0 : index
    %c0_52 = arith.constant 0 : index
    %c0_53 = arith.constant 0 : index
    %57 = vector.load %arg7[%c0_51, %c0_52, %c0_53] : memref<1x2x8xf32, #tpu.memory_space<vmem>>, vector<1x1x8xf32>
    tpu.vector_store %arg7[%c0_51, %c0_52, %c0_53], %56 {strides = array<i32>} : memref<1x2x8xf32, #tpu.memory_space<vmem>>, vector<1x1x8xf32>,
    %58 = arith.mulf %53, %53 : vector<256x8xf32>
    %cst_54 = arith.constant dense<0.000000e+00> : vector<8xf32>
    %59 = vector.multi_reduction <add>, %58, %cst_54 [0] : vector<256x8xf32> to vector<8xf32>
    %60 = vector.shape_cast %59 : vector<8xf32> to vector<1x8xf32>
    %61 = vector.shape_cast %60 : vector<1x8xf32> to vector<1x1x8xf32>
    %c0_55 = arith.constant 0 : index
    %c1_56 = arith.constant 1 : index
    %c0_57 = arith.constant 0 : index
    %62 = vector.load %arg7[%c0_55, %c1_56, %c0_57] : memref<1x2x8xf32, #tpu.memory_space<vmem>>, vector<1x1x8xf32>
    tpu.vector_store %arg7[%c0_55, %c1_56, %c0_57], %61 {strides = array<i32>} : memref<1x2x8xf32, #tpu.memory_space<vmem>>, vector<1x1x8xf32>,
    %63 = vector.shape_cast %53 : vector<256x8xf32> to vector<1x16x16x8xf32>
    %c0_58 = arith.constant 0 : index
    %c0_59 = arith.constant 0 : index
    %c0_60 = arith.constant 0 : index
    %c0_61 = arith.constant 0 : index
    %64 = vector.load %arg6[%c0_58, %c0_59, %c0_60, %c0_61] : memref<1x16x16x8xf32, #tpu.memory_space<vmem>>, vector<1x16x16x8xf32>
    tpu.vector_store %arg6[%c0_58, %c0_59, %c0_60, %c0_61], %63 {strides = array<i32>} : memref<1x16x16x8xf32, #tpu.memory_space<vmem>>, vector<1x16x16x8xf32>,
    return
  }
  func.func @transform_0(%arg0: i32) -> (i32, i32, i32, i32) {
    %c0_i32 = arith.constant 0 : i32
    %c0_i32_0 = arith.constant 0 : i32
    %c0_i32_1 = arith.constant 0 : i32
    %c0_i32_2 = arith.constant 0 : i32
    return %arg0, %c0_i32, %c0_i32_0, %c0_i32_1 : i32, i32, i32, i32
  }
  func.func @transform_1(%arg0: i32) -> (i32, i32) {
    %c0_i32 = arith.constant 0 : i32
    %c0_i32_0 = arith.constant 0 : i32
    %c0_i32_1 = arith.constant 0 : i32
    return %c0_i32, %c0_i32_0 : i32, i32
  }
  func.func @transform_2(%arg0: i32) -> (i32, i32) {
    %c0_i32 = arith.constant 0 : i32
    %c0_i32_0 = arith.constant 0 : i32
    %c0_i32_1 = arith.constant 0 : i32
    return %c0_i32, %c0_i32_0 : i32, i32
  }
  func.func @transform_3(%arg0: i32) -> (i32, i32) {
    %c0_i32 = arith.constant 0 : i32
    %c0_i32_0 = arith.constant 0 : i32
    %c0_i32_1 = arith.constant 0 : i32
    return %c0_i32, %c0_i32_0 : i32, i32
  }
  func.func @transform_4(%arg0: i32) -> (i32, i32) {
    %c0_i32 = arith.constant 0 : i32
    %c0_i32_0 = arith.constant 0 : i32
    %c0_i32_1 = arith.constant 0 : i32
    return %c0_i32, %c0_i32_0 : i32, i32
  }
  func.func @transform_5(%arg0: i32) -> (i32, i32, i32, i32) {
    %c0_i32 = arith.constant 0 : i32
    %c0_i32_0 = arith.constant 0 : i32
    %c0_i32_1 = arith.constant 0 : i32
    %c0_i32_2 = arith.constant 0 : i32
    return %arg0, %c0_i32, %c0_i32_0, %c0_i32_1 : i32, i32, i32, i32
  }
  func.func @transform_6(%arg0: i32) -> (i32, i32, i32) {
    %c0_i32 = arith.constant 0 : i32
    %c0_i32_0 = arith.constant 0 : i32
    %c0_i32_1 = arith.constant 0 : i32
    return %arg0, %c0_i32, %c0_i32_0 : i32, i32, i32
  }
}

module attributes {stable_mosaic.version = 11 : i64} {
  func.func @_affine_kernel(%arg0: i32, %arg1: memref<1x16x16x8xf32, #tpu.memory_space<vmem>>, %arg2: memref<1x8xf32, #tpu.memory_space<vmem>>, %arg3: memref<1x8xf32, #tpu.memory_space<vmem>>, %arg4: memref<1x16x16x8xf32, #tpu.memory_space<vmem>>) attributes {dimension_semantics = [#tpu.dimension_semantics<parallel>], iteration_bounds = array<i64: 2>, scalar_prefetch = 0 : i64, scratch_operands = 0 : i64, tpu.core_type = #tpu.core_type<tc>, window_params = [{transform_indices = @transform_0, window_bounds = array<i64: 1, 16, 16, 8>}, {pipeline_mode = #tpu.pipeline_mode<synchronous>, transform_indices = @transform_1, window_bounds = array<i64: 1, 8>}, {pipeline_mode = #tpu.pipeline_mode<synchronous>, transform_indices = @transform_2, window_bounds = array<i64: 1, 8>}, {transform_indices = @transform_3, window_bounds = array<i64: 1, 16, 16, 8>}]} {
    %c0 = arith.constant 0 : index
    %c0_0 = arith.constant 0 : index
    %c0_1 = arith.constant 0 : index
    %c0_2 = arith.constant 0 : index
    %0 = vector.load %arg1[%c0, %c0_0, %c0_1, %c0_2] : memref<1x16x16x8xf32, #tpu.memory_space<vmem>>, vector<1x16x16x8xf32>
    %c0_3 = arith.constant 0 : index
    %c0_4 = arith.constant 0 : index
    %1 = vector.load %arg2[%c0_3, %c0_4] : memref<1x8xf32, #tpu.memory_space<vmem>>, vector<1x8xf32>
    %2 = vector.shape_cast %1 : vector<1x8xf32> to vector<1x1x1x8xf32>
    %3 = vector.broadcast %2 : vector<1x1x1x8xf32> to vector<1x16x16x8xf32>
    %4 = arith.mulf %0, %3 : vector<1x16x16x8xf32>
    %c0_5 = arith.constant 0 : index
    %c0_6 = arith.constant 0 : index
    %5 = vector.load %arg3[%c0_5, %c0_6] : memref<1x8xf32, #tpu.memory_space<vmem>>, vector<1x8xf32>
    %6 = vector.shape_cast %5 : vector<1x8xf32> to vector<1x1x1x8xf32>
    %7 = vector.broadcast %6 : vector<1x1x1x8xf32> to vector<1x16x16x8xf32>
    %8 = arith.addf %4, %7 : vector<1x16x16x8xf32>
    %c0_7 = arith.constant 0 : index
    %c0_8 = arith.constant 0 : index
    %c0_9 = arith.constant 0 : index
    %c0_10 = arith.constant 0 : index
    %9 = vector.load %arg4[%c0_7, %c0_8, %c0_9, %c0_10] : memref<1x16x16x8xf32, #tpu.memory_space<vmem>>, vector<1x16x16x8xf32>
    tpu.vector_store %arg4[%c0_7, %c0_8, %c0_9, %c0_10], %8 {strides = array<i32>} : memref<1x16x16x8xf32, #tpu.memory_space<vmem>>, vector<1x16x16x8xf32>,
    return
  }
  func.func @transform_0(%arg0: i32) -> (i32, i32, i32, i32) {
    %c0_i32 = arith.constant 0 : i32
    %c0_i32_0 = arith.constant 0 : i32
    %c0_i32_1 = arith.constant 0 : i32
    %c0_i32_2 = arith.constant 0 : i32
    return %arg0, %c0_i32, %c0_i32_0, %c0_i32_1 : i32, i32, i32, i32
  }
  func.func @transform_1(%arg0: i32) -> (i32, i32) {
    %c0_i32 = arith.constant 0 : i32
    %c0_i32_0 = arith.constant 0 : i32
    %c0_i32_1 = arith.constant 0 : i32
    return %c0_i32, %c0_i32_0 : i32, i32
  }
  func.func @transform_2(%arg0: i32) -> (i32, i32) {
    %c0_i32 = arith.constant 0 : i32
    %c0_i32_0 = arith.constant 0 : i32
    %c0_i32_1 = arith.constant 0 : i32
    return %c0_i32, %c0_i32_0 : i32, i32
  }
  func.func @transform_3(%arg0: i32) -> (i32, i32, i32, i32) {
    %c0_i32 = arith.constant 0 : i32
    %c0_i32_0 = arith.constant 0 : i32
    %c0_i32_1 = arith.constant 0 : i32
    %c0_i32_2 = arith.constant 0 : i32
    return %arg0, %c0_i32, %c0_i32_0, %c0_i32_1 : i32, i32, i32, i32
  }
}

</mosaic_0001>

<llo_original>
// kernel: unet_conv_block.5
$region0: #{unet_conv_block.5}
  #allocation0 [shape = 'u32[]', space=smem, size = 0x4, offset = 0x4, fixed_abs, tag = 'smem constant byte address 0x4 - core index']
  #allocation1 [shape = 'u32[144,128]{1,0:T(1,128)}', space=vmem, size = 0x12000, scoped, tag = 'internal scratch']
  %s0 = inlined_call_operand.vmem [shape: f32[2,16,16,8], index: 0, kind: input, shape index: {}]
  %s1 = inlined_call_operand.vmem [shape: f32[1,8], index: 1, kind: input, shape index: {}]
  %s2 = inlined_call_operand.vmem [shape: f32[1,8], index: 2, kind: input, shape index: {}]
  %s3 = inlined_call_operand.vmem [shape: f32[2,16,16,8], index: 3, kind: output, shape index: {}]
  %s4 = sld [smem:[#allocation0]]
  $region45: #{unet_conv_block.5} parent=0
    _
  %s6 = ssub.s32 1, %s4
  %s7 = scalar_select 0, %s6, %s4
  loop: start=0, step=1, limit=4
  $region2: #{unet_conv_block.5} parent=0 // loop_pre_header
    _
  $region3: #{unet_conv_block.5} parent=0 // loop_header
    %s9 = sphi 0, %s13
    %p10 = scmp.ge.s32.totalorder %s9, 4
    %s19 = sphi 0, %s21
    %s22 = sphi 0, %s19
    %s23 = sphi 0, %s22
    %s39 = sphi 0, %s23
    %s43 = sphi 0, %s43
    %s45 = sphi 0, %s43
    %s46 = sphi 0, %s45
    %s60 = sphi 0, %s46
    %s64 = sphi 0, %s64
    %s66 = sphi 0, %s64
    %s67 = sphi 0, %s66
    %s81 = sphi 0, %s67
    %s87 = sphi 0, %s89
    %s90 = sphi 0, %s87
    %s91 = sphi 0, %s90
    %s107 = sphi 0, %s91
  $region4: #{unet_conv_block.5} parent=0 // loop_header_branch
    %12 = sbr.rel (%p10) target = $region8
  $region5: #{unet_conv_block.5} parent=0 // loop_body
    %s14 = ssub.s32 %s9, 1
    %s15 = ssub.s32 %s9, 2
    %s16 = sadd.s32 %s9, 1
    %s17 = ssub.s32 %s9, %s16
    %p18 = scmp.eq.s32.totalorder %s17, 0
    %s20 = sadd.s32 %s19, 1
    %s21 = scalar_select %p18, %s19, %s20
    %p24 = pneg %p18
    %p25 = scmp.eq.s32.totalorder %s9, 1
    %p26 = por %p24, %p25
    %p27 = scmp.ne.s32.totalorder %s19, %s22
    %p28 = scmp.eq.s32.totalorder %s9, 0
    %p29 = por %p27, %p28
    %p30 = scmp.ne.s32.totalorder %s19, %s22
    %p31 = scmp.eq.s32.totalorder %s14, 1
    %p32 = por %p30, %p31
    %p33 = scmp.ne.s32.totalorder %s22, %s23
    %p34 = scmp.eq.s32.totalorder %s14, 0
    %p35 = por %p33, %p34
    %p36 = scmp.ne.s32.totalorder %s22, %s23
    %p37 = scmp.eq.s32.totalorder %s15, 1
    %p38 = por %p36, %p37
    %p40 = scmp.ne.s32.totalorder %s23, %s39
    %p41 = scmp.eq.s32.totalorder %s15, 0
    %p42 = por %p40, %p41
    %s44 = sadd.s32 %s43, 1
    %p47 = scmp.eq.s32.totalorder %s9, 1
    %p48 = scmp.ne.s32.totalorder %s43, %s45
    %p49 = scmp.eq.s32.totalorder %s9, 0
    %p50 = por %p48, %p49
    %p51 = scmp.ne.s32.totalorder %s43, %s45
    %p52 = scmp.eq.s32.totalorder %s14, 1
    %p53 = por %p51, %p52
    %p54 = scmp.ne.s32.totalorder %s45, %s46
    %p55 = scmp.eq.s32.totalorder %s14, 0
    %p56 = por %p54, %p55
    %p57 = scmp.ne.s32.totalorder %s45, %s46
    %p58 = scmp.eq.s32.totalorder %s15, 1
    %p59 = por %p57, %p58
    %p61 = scmp.ne.s32.totalorder %s46, %s60
    %p62 = scmp.eq.s32.totalorder %s15, 0
    %p63 = por %p61, %p62
    %s65 = sadd.s32 %s64, 1
    %p68 = scmp.eq.s32.totalorder %s9, 1
    %p69 = scmp.ne.s32.totalorder %s64, %s66
    %p70 = scmp.eq.s32.totalorder %s9, 0
    %p71 = por %p69, %p70
    %p72 = scmp.ne.s32.totalorder %s64, %s66
    %p73 = scmp.eq.s32.totalorder %s14, 1
    %p74 = por %p72, %p73
    %p75 = scmp.ne.s32.totalorder %s66, %s67
    %p76 = scmp.eq.s32.totalorder %s14, 0
    %p77 = por %p75, %p76
    %p78 = scmp.ne.s32.totalorder %s66, %s67
    %p79 = scmp.eq.s32.totalorder %s15, 1
    %p80 = por %p78, %p79
    %p82 = scmp.ne.s32.totalorder %s67, %s81
    %p83 = scmp.eq.s32.totalorder %s15, 0
    %p84 = por %p82, %p83
    %s85 = ssub.s32 %s9, %s16
    %p86 = scmp.eq.s32.totalorder %s85, 0
    %s88 = sadd.s32 %s87, 1
    %s89 = scalar_select %p86, %s87, %s88
    %p92 = pneg %p86
    %p93 = scmp.eq.s32.totalorder %s9, 1
    %p94 = por %p92, %p93
    %p95 = scmp.ne.s32.totalorder %s87, %s90
    %p96 = scmp.eq.s32.totalorder %s9, 0
    %p97 = por %p95, %p96
    %p98 = scmp.ne.s32.totalorder %s87, %s90
    %p99 = scmp.eq.s32.totalorder %s14, 1
    %p100 = por %p98, %p99
    %p101 = scmp.ne.s32.totalorder %s90, %s91
    %p102 = scmp.eq.s32.totalorder %s14, 0
    %p103 = por %p101, %p102
    %p104 = scmp.ne.s32.totalorder %s90, %s91
    %p105 = scmp.eq.s32.totalorder %s15, 1
    %p106 = por %p104, %p105
    %p108 = scmp.ne.s32.totalorder %s91, %s107
    %p109 = scmp.eq.s32.totalorder %s15, 0
    %p110 = por %p108, %p109
    %p111 = scmp.le.s32.totalorder 1, %s9
    %p112 = scmp.lt.s32.totalorder %s9, 3
    %p113 = pnand %p111, %p112
    %p114 = pneg %p113
    // Predicated region
    $region9: #{unet_conv_block.5} parent=5 // pred_check
      _
    $region10: #{unet_conv_block.5} parent=5 // pred_check_branch
      %116 = sbr.rel (%p113) target = $region12
    $region11: #{unet_conv_block.5} parent=5 // pred_region
      %s117 = ssub.s32 %s9, 1
      // Predicated region
      $region13: #{unet_conv_block.5} parent=11 // pred_check
        %p118 = pneg %p56
      $region14: #{unet_conv_block.5} parent=11 // pred_check_branch
        %120 = sbr.rel (%p118) target = $region16
      $region15: #{unet_conv_block.5} parent=11 // pred_region
        _
      $region16: #{unet_conv_block.5} parent=11 // pred_fallthru
        _
      // Predicated region
      $region17: #{unet_conv_block.5} parent=11 // pred_check
        %p121 = pneg %p77
      $region18: #{unet_conv_block.5} parent=11 // pred_check_branch
        %123 = sbr.rel (%p121) target = $region20
      $region19: #{unet_conv_block.5} parent=11 // pred_region
        _
      $region20: #{unet_conv_block.5} parent=11 // pred_fallthru
        _
    $region12: #{unet_conv_block.5} parent=5 // pred_fallthru
      _
    %p124 = scmp.lt.s32.totalorder %s9, 2
    // Predicated region
    $region21: #{unet_conv_block.5} parent=5 // pred_check
      %p125 = pneg %p124
    $region22: #{unet_conv_block.5} parent=5 // pred_check_branch
      %127 = sbr.rel (%p125) target = $region24
    $region23: #{unet_conv_block.5} parent=5 // pred_region
      // Predicated region
      $region25: #{unet_conv_block.5} parent=23 // pred_check
        %p128 = pneg %p29
      $region26: #{unet_conv_block.5} parent=23 // pred_check_branch
        %130 = sbr.rel (%p128) target = $region28
      $region27: #{unet_conv_block.5} parent=23 // pred_region
        %p131 = scmp.lt.s32.totalorder %s9, 1
        %s132 = scalar_select %p131, %s9, 1
        %s133 = smul.addr %s132, 32
        %s134 = smul.addr %s133, 8
        %s135 = scalar_lea.vmem %s0, %s134
      $region28: #{unet_conv_block.5} parent=23 // pred_fallthru
        _
    $region24: #{unet_conv_block.5} parent=5 // pred_fallthru
      _
    %p136 = scmp.le.s32.totalorder 1, %s9
    %p137 = scmp.lt.s32.totalorder %s9, 3
    %p138 = pnand %p136, %p137
    %p139 = pneg %p138
    // Predicated region
    $region29: #{unet_conv_block.5} parent=5 // pred_check
      _
    $region30: #{unet_conv_block.5} parent=5 // pred_check_branch
      %141 = sbr.rel (%p138) target = $region32
    $region31: #{unet_conv_block.5} parent=5 // pred_region
      %s142 = ssub.s32 %s9, 1
      %p143 = scmp.lt.s32.totalorder %s14, 1
      %s144 = scalar_select %p143, %s14, 1
      %s145 = smul.addr %s144, 32
      %s146 = smul.addr %s145, 8
      %s147 = scalar_lea.vmem %s0, %s146
      %p148 = pneg %p35
      %p149 = pneg %p32
      %p150 = pneg %p56
      %p151 = pneg %p53
      %p152 = pneg %p77
      %p153 = pneg %p74
      %p154 = pneg %p103
      %p155 = pneg %p100
      %p156 = scmp.lt.s32.totalorder %s14, 1
      %s157 = scalar_select %p156, %s14, 1
      %s158 = smul.addr %s157, 32
      %s159 = smul.addr %s158, 8
      %s160 = scalar_lea.vmem %s3, %s159
      %p161 = scmp.lt.s32.totalorder %s14, 1
      %s162 = scalar_select %p161, %s14, 1
      %s163 = smul.addr %s162, 32
      %s164 = smul.addr %s163, 8
      %s165 = scalar_lea.vmem %s0, %s164
      %p166 = scmp.lt.s32.totalorder %s14, 1
      %s167 = scalar_select %p166, %s14, 1
      %s168 = smul.addr %s167, 32
      %s169 = smul.addr %s168, 8
      %s170 = scalar_lea.vmem %s3, %s169
      %v171 = vld [vmem:[%s165] sm:$0xff]
      %v172 = vld [vmem:[%s165 + $0x8] sm:$0xff]
      %v173 = vld [vmem:[%s165 + $0x10] sm:$0xff]
      %v174 = vld [vmem:[%s165 + $0x18] sm:$0xff]
      %v175 = vld [vmem:[%s165 + $0x20] sm:$0xff]
      %v176 = vld [vmem:[%s165 + $0x28] sm:$0xff]
      %v177 = vld [vmem:[%s165 + $0x30] sm:$0xff]
      %v178 = vld [vmem:[%s165 + $0x38] sm:$0xff]
      %v179 = vld [vmem:[%s165 + $0x40] sm:$0xff]
      %v180 = vld [vmem:[%s165 + $0x48] sm:$0xff]
      %v181 = vld [vmem:[%s165 + $0x50] sm:$0xff]
      %v182 = vld [vmem:[%s165 + $0x58] sm:$0xff]
      %v183 = vld [vmem:[%s165 + $0x60] sm:$0xff]
      %v184 = vld [vmem:[%s165 + $0x68] sm:$0xff]
      %v185 = vld [vmem:[%s165 + $0x70] sm:$0xff]
      %v186 = vld [vmem:[%s165 + $0x78] sm:$0xff]
      %v187 = vld [vmem:[%s165 + $0x80] sm:$0xff]
      %v188 = vld [vmem:[%s165 + $0x88] sm:$0xff]
      %v189 = vld [vmem:[%s165 + $0x90] sm:$0xff]
      %v190 = vld [vmem:[%s165 + $0x98] sm:$0xff]
      %v191 = vld [vmem:[%s165 + $0xa0] sm:$0xff]
      %v192 = vld [vmem:[%s165 + $0xa8] sm:$0xff]
      %v193 = vld [vmem:[%s165 + $0xb0] sm:$0xff]
      %v194 = vld [vmem:[%s165 + $0xb8] sm:$0xff]
      %v195 = vld [vmem:[%s165 + $0xc0] sm:$0xff]
      %v196 = vld [vmem:[%s165 + $0xc8] sm:$0xff]
      %v197 = vld [vmem:[%s165 + $0xd0] sm:$0xff]
      %v198 = vld [vmem:[%s165 + $0xd8] sm:$0xff]
      %v199 = vld [vmem:[%s165 + $0xe0] sm:$0xff]
      %v200 = vld [vmem:[%s165 + $0xe8] sm:$0xff]
      %v201 = vld [vmem:[%s165 + $0xf0] sm:$0xff]
      %v202 = vld [vmem:[%s165 + $0xf8] sm:$0xff]
      %v203 = vld [vmem:[%s1] sm:$0x1]
      %v205 = vlaneseq
      %v206 = vshrl.u32 %v205, 7
      %v207 = vsub.s32 0, %v206
      %v208 = vrot.slane %v203, %v207
      %v210 = vmul.f32 %v171, %v208
      %v211 = vmul.f32 %v172, %v208
      %v212 = vmul.f32 %v173, %v208
      %v213 = vmul.f32 %v174, %v208
      %v214 = vmul.f32 %v175, %v208
      %v215 = vmul.f32 %v176, %v208
      %v216 = vmul.f32 %v177, %v208
      %v217 = vmul.f32 %v178, %v208
      %v218 = vmul.f32 %v179, %v208
      %v219 = vmul.f32 %v180, %v208
      %v220 = vmul.f32 %v181, %v208
      %v221 = vmul.f32 %v182, %v208
      %v222 = vmul.f32 %v183, %v208
      %v223 = vmul.f32 %v184, %v208
      %v224 = vmul.f32 %v185, %v208
      %v225 = vmul.f32 %v186, %v208
      %v226 = vmul.f32 %v187, %v208
      %v227 = vmul.f32 %v188, %v208
      %v228 = vmul.f32 %v189, %v208
      %v229 = vmul.f32 %v190, %v208
      %v230 = vmul.f32 %v191, %v208
      %v231 = vmul.f32 %v192, %v208
      %v232 = vmul.f32 %v193, %v208
      %v233 = vmul.f32 %v194, %v208
      %v234 = vmul.f32 %v195, %v208
      %v235 = vmul.f32 %v196, %v208
      %v236 = vmul.f32 %v197, %v208
      %v237 = vmul.f32 %v198, %v208
      %v238 = vmul.f32 %v199, %v208
      %v239 = vmul.f32 %v200, %v208
      %v240 = vmul.f32 %v201, %v208
      %v241 = vmul.f32 %v202, %v208
      %v242 = vld [vmem:[%s2] sm:$0x1]
      %v244 = vlaneseq
      %v245 = vshrl.u32 %v244, 7
      %v246 = vsub.s32 0, %v245
      %v247 = vrot.slane %v242, %v246
      %v249 = vadd.f32 %v210, %v247
      %v250 = vadd.f32 %v211, %v247
      %v251 = vadd.f32 %v212, %v247
      %v252 = vadd.f32 %v213, %v247
      %v253 = vadd.f32 %v214, %v247
      %v254 = vadd.f32 %v215, %v247
      %v255 = vadd.f32 %v216, %v247
      %v256 = vadd.f32 %v217, %v247
      %v257 = vadd.f32 %v218, %v247
      %v258 = vadd.f32 %v219, %v247
      %v259 = vadd.f32 %v220, %v247
      %v260 = vadd.f32 %v221, %v247
      %v261 = vadd.f32 %v222, %v247
      %v262 = vadd.f32 %v223, %v247
      %v263 = vadd.f32 %v224, %v247
      %v264 = vadd.f32 %v225, %v247
      %v265 = vadd.f32 %v226, %v247
      %v266 = vadd.f32 %v227, %v247
      %v267 = vadd.f32 %v228, %v247
      %v268 = vadd.f32 %v229, %v247
      %v269 = vadd.f32 %v230, %v247
      %v270 = vadd.f32 %v231, %v247
      %v271 = vadd.f32 %v232, %v247
      %v272 = vadd.f32 %v233, %v247
      %v273 = vadd.f32 %v234, %v247
      %v274 = vadd.f32 %v235, %v247
      %v275 = vadd.f32 %v236, %v247
      %v276 = vadd.f32 %v237, %v247
      %v277 = vadd.f32 %v238, %v247
      %v278 = vadd.f32 %v239, %v247
      %v279 = vadd.f32 %v240, %v247
      %v280 = vadd.f32 %v241, %v247
      %vm281 = vcmask 64512
      %282 = vst.msk [vmem:[%s170] sm:$0xff] %vm281, %v249
      %283 = vst.msk [vmem:[%s170 + $0x8] sm:$0xff] %vm281, %v250
      %284 = vst.msk [vmem:[%s170 + $0x10] sm:$0xff] %vm281, %v251
      %285 = vst.msk [vmem:[%s170 + $0x18] sm:$0xff] %vm281, %v252
      %286 = vst.msk [vmem:[%s170 + $0x20] sm:$0xff] %vm281, %v253
      %287 = vst.msk [vmem:[%s170 + $0x28] sm:$0xff] %vm281, %v254
      %288 = vst.msk [vmem:[%s170 + $0x30] sm:$0xff] %vm281, %v255
      %289 = vst.msk [vmem:[%s170 + $0x38] sm:$0xff] %vm281, %v256
      %290 = vst.msk [vmem:[%s170 + $0x40] sm:$0xff] %vm281, %v257
      %291 = vst.msk [vmem:[%s170 + $0x48] sm:$0xff] %vm281, %v258
      %292 = vst.msk [vmem:[%s170 + $0x50] sm:$0xff] %vm281, %v259
      %293 = vst.msk [vmem:[%s170 + $0x58] sm:$0xff] %vm281, %v260
      %294 = vst.msk [vmem:[%s170 + $0x60] sm:$0xff] %vm281, %v261
      %295 = vst.msk [vmem:[%s170 + $0x68] sm:$0xff] %vm281, %v262
      %296 = vst.msk [vmem:[%s170 + $0x70] sm:$0xff] %vm281, %v263
      %297 = vst.msk [vmem:[%s170 + $0x78] sm:$0xff] %vm281, %v264
      %298 = vst.msk [vmem:[%s170 + $0x80] sm:$0xff] %vm281, %v265
      %299 = vst.msk [vmem:[%s170 + $0x88] sm:$0xff] %vm281, %v266
      %300 = vst.msk [vmem:[%s170 + $0x90] sm:$0xff] %vm281, %v267
      %301 = vst.msk [vmem:[%s170 + $0x98] sm:$0xff] %vm281, %v268
      %302 = vst.msk [vmem:[%s170 + $0xa0] sm:$0xff] %vm281, %v269
      %303 = vst.msk [vmem:[%s170 + $0xa8] sm:$0xff] %vm281, %v270
      %304 = vst.msk [vmem:[%s170 + $0xb0] sm:$0xff] %vm281, %v271
      %305 = vst.msk [vmem:[%s170 + $0xb8] sm:$0xff] %vm281, %v272
      %306 = vst.msk [vmem:[%s170 + $0xc0] sm:$0xff] %vm281, %v273
      %307 = vst.msk [vmem:[%s170 + $0xc8] sm:$0xff] %vm281, %v274
      %308 = vst.msk [vmem:[%s170 + $0xd0] sm:$0xff] %vm281, %v275
      %309 = vst.msk [vmem:[%s170 + $0xd8] sm:$0xff] %vm281, %v276
      %310 = vst.msk [vmem:[%s170 + $0xe0] sm:$0xff] %vm281, %v277
      %311 = vst.msk [vmem:[%s170 + $0xe8] sm:$0xff] %vm281, %v278
      %312 = vst.msk [vmem:[%s170 + $0xf0] sm:$0xff] %vm281, %v279
      %313 = vst.msk [vmem:[%s170 + $0xf8] sm:$0xff] %vm281, %v280
      %p314 = scmp.lt.s32.totalorder %s14, 1
      %s315 = scalar_select %p314, %s14, 1
      %s316 = smul.addr %s315, 32
      %s317 = smul.addr %s316, 8
      %s318 = scalar_lea.vmem %s3, %s317
      // Predicated region
      $region33: #{unet_conv_block.5} parent=31 // pred_check
        %p319 = pneg %p100
      $region34: #{unet_conv_block.5} parent=31 // pred_check_branch
        %321 = sbr.rel (%p319) target = $region36
      $region35: #{unet_conv_block.5} parent=31 // pred_region
        _
      $region36: #{unet_conv_block.5} parent=31 // pred_fallthru
        _
    $region32: #{unet_conv_block.5} parent=5 // pred_fallthru
      _
    %p322 = scmp.le.s32.totalorder 2, %s9
    // Predicated region
    $region37: #{unet_conv_block.5} parent=5 // pred_check
      %p323 = pneg %p322
    $region38: #{unet_conv_block.5} parent=5 // pred_check_branch
      %325 = sbr.rel (%p323) target = $region40
    $region39: #{unet_conv_block.5} parent=5 // pred_region
      %s326 = ssub.s32 %s9, 2
      // Predicated region
      $region41: #{unet_conv_block.5} parent=39 // pred_check
        %p327 = pneg %p106
      $region42: #{unet_conv_block.5} parent=39 // pred_check_branch
        %329 = sbr.rel (%p327) target = $region44
      $region43: #{unet_conv_block.5} parent=39 // pred_region
        %p330 = scmp.lt.s32.totalorder %s15, 1
        %s331 = scalar_select %p330, %s15, 1
        %s332 = smul.addr %s331, 32
        %s333 = smul.addr %s332, 8
        %s334 = scalar_lea.vmem %s3, %s333
      $region44: #{unet_conv_block.5} parent=39 // pred_fallthru
        _
    $region40: #{unet_conv_block.5} parent=5 // pred_fallthru
      _
  $region6: #{unet_conv_block.5} parent=0 // loop_footer
    %s13 = sadd.s32 1, %s9
  $region7: #{unet_conv_block.5} parent=0 // loop_footer_branch
    %8 = sbr.rel target = $region3
  $region8: #{unet_conv_block.5} parent=0 // loop_exit
    _

// kernel: unet_conv_block.3
$region0: #{unet_conv_block.3}
  #allocation0 [shape = 'u32[]', space=smem, size = 0x4, offset = 0x4, fixed_abs, tag = 'smem constant byte address 0x4 - core index']
  #allocation1 [shape = 'u32[144,128]{1,0:T(1,128)}', space=vmem, size = 0x12000, scoped, tag = 'internal scratch']
  #allocation2 [shape = 'f32[1,18,18,4]{3,2,1,0:T(8,128)}', space=vmem, size = 0x36000, scoped, tag = 'scratch operand']
  #allocation3 [shape = 'f32[256,36]{1,0:T(8,128)}', space=vmem, size = 0x20000, scoped, tag = 'scratch operand']
  %s0 = inlined_call_operand.vmem [shape: f32[2,16,16,4], index: 0, kind: input, shape index: {}]
  %s1 = inlined_call_operand.vmem [shape: f32[1,4], index: 1, kind: input, shape index: {}]
  %s2 = inlined_call_operand.vmem [shape: f32[1,4], index: 2, kind: input, shape index: {}]
  %s3 = inlined_call_operand.vmem [shape: f32[36,8], index: 3, kind: input, shape index: {}]
  %s4 = inlined_call_operand.vmem [shape: f32[1,8], index: 4, kind: input, shape index: {}]
  %s5 = inlined_call_operand.vmem [shape: f32[2,16,16,8], index: 5, kind: output, shape index: {0}]
  %s6 = inlined_call_operand.vmem [shape: f32[2,2,8], index: 6, kind: output, shape index: {1}]
  %7 = xla_tuple %s5, %s6
  %s8 = sld [smem:[#allocation0]]
  $region61: #{unet_conv_block.3} parent=0
    _
  %s10 = ssub.s32 1, %s8
  %s11 = scalar_select 0, %s10, %s8
  loop: start=0, step=1, limit=4
  $region2: #{unet_conv_block.3} parent=0 // loop_pre_header
    _
  $region3: #{unet_conv_block.3} parent=0 // loop_header
    %s13 = sphi 0, %s17
    %p14 = scmp.ge.s32.totalorder %s13, 4
    %s23 = sphi 0, %s25
    %s26 = sphi 0, %s23
    %s27 = sphi 0, %s26
    %s43 = sphi 0, %s27
    %s47 = sphi 0, %s47
    %s49 = sphi 0, %s47
    %s50 = sphi 0, %s49
    %s64 = sphi 0, %s50
    %s68 = sphi 0, %s68
    %s70 = sphi 0, %s68
    %s71 = sphi 0, %s70
    %s85 = sphi 0, %s71
    %s89 = sphi 0, %s89
    %s91 = sphi 0, %s89
    %s92 = sphi 0, %s91
    %s106 = sphi 0, %s92
    %s110 = sphi 0, %s110
    %s112 = sphi 0, %s110
    %s113 = sphi 0, %s112
    %s127 = sphi 0, %s113
    %s133 = sphi 0, %s135
    %s136 = sphi 0, %s133
    %s137 = sphi 0, %s136
    %s153 = sphi 0, %s137
    %s159 = sphi 0, %s161
    %s162 = sphi 0, %s159
    %s163 = sphi 0, %s162
    %s179 = sphi 0, %s163
  $region4: #{unet_conv_block.3} parent=0 // loop_header_branch
    %16 = sbr.rel (%p14) target = $region8
  $region5: #{unet_conv_block.3} parent=0 // loop_body
    %s18 = ssub.s32 %s13, 1
    %s19 = ssub.s32 %s13, 2
    %s20 = sadd.s32 %s13, 1
    %s21 = ssub.s32 %s13, %s20
    %p22 = scmp.eq.s32.totalorder %s21, 0
    %s24 = sadd.s32 %s23, 1
    %s25 = scalar_select %p22, %s23, %s24
    %p28 = pneg %p22
    %p29 = scmp.eq.s32.totalorder %s13, 1
    %p30 = por %p28, %p29
    %p31 = scmp.ne.s32.totalorder %s23, %s26
    %p32 = scmp.eq.s32.totalorder %s13, 0
    %p33 = por %p31, %p32
    %p34 = scmp.ne.s32.totalorder %s23, %s26
    %p35 = scmp.eq.s32.totalorder %s18, 1
    %p36 = por %p34, %p35
    %p37 = scmp.ne.s32.totalorder %s26, %s27
    %p38 = scmp.eq.s32.totalorder %s18, 0
    %p39 = por %p37, %p38
    %p40 = scmp.ne.s32.totalorder %s26, %s27
    %p41 = scmp.eq.s32.totalorder %s19, 1
    %p42 = por %p40, %p41
    %p44 = scmp.ne.s32.totalorder %s27, %s43
    %p45 = scmp.eq.s32.totalorder %s19, 0
    %p46 = por %p44, %p45
    %s48 = sadd.s32 %s47, 1
    %p51 = scmp.eq.s32.totalorder %s13, 1
    %p52 = scmp.ne.s32.totalorder %s47, %s49
    %p53 = scmp.eq.s32.totalorder %s13, 0
    %p54 = por %p52, %p53
    %p55 = scmp.ne.s32.totalorder %s47, %s49
    %p56 = scmp.eq.s32.totalorder %s18, 1
    %p57 = por %p55, %p56
    %p58 = scmp.ne.s32.totalorder %s49, %s50
    %p59 = scmp.eq.s32.totalorder %s18, 0
    %p60 = por %p58, %p59
    %p61 = scmp.ne.s32.totalorder %s49, %s50
    %p62 = scmp.eq.s32.totalorder %s19, 1
    %p63 = por %p61, %p62
    %p65 = scmp.ne.s32.totalorder %s50, %s64
    %p66 = scmp.eq.s32.totalorder %s19, 0
    %p67 = por %p65, %p66
    %s69 = sadd.s32 %s68, 1
    %p72 = scmp.eq.s32.totalorder %s13, 1
    %p73 = scmp.ne.s32.totalorder %s68, %s70
    %p74 = scmp.eq.s32.totalorder %s13, 0
    %p75 = por %p73, %p74
    %p76 = scmp.ne.s32.totalorder %s68, %s70
    %p77 = scmp.eq.s32.totalorder %s18, 1
    %p78 = por %p76, %p77
    %p79 = scmp.ne.s32.totalorder %s70, %s71
    %p80 = scmp.eq.s32.totalorder %s18, 0
    %p81 = por %p79, %p80
    %p82 = scmp.ne.s32.totalorder %s70, %s71
    %p83 = scmp.eq.s32.totalorder %s19, 1
    %p84 = por %p82, %p83
    %p86 = scmp.ne.s32.totalorder %s71, %s85
    %p87 = scmp.eq.s32.totalorder %s19, 0
    %p88 = por %p86, %p87
    %s90 = sadd.s32 %s89, 1
    %p93 = scmp.eq.s32.totalorder %s13, 1
    %p94 = scmp.ne.s32.totalorder %s89, %s91
    %p95 = scmp.eq.s32.totalorder %s13, 0
    %p96 = por %p94, %p95
    %p97 = scmp.ne.s32.totalorder %s89, %s91
    %p98 = scmp.eq.s32.totalorder %s18, 1
    %p99 = por %p97, %p98
    %p100 = scmp.ne.s32.totalorder %s91, %s92
    %p101 = scmp.eq.s32.totalorder %s18, 0
    %p102 = por %p100, %p101
    %p103 = scmp.ne.s32.totalorder %s91, %s92
    %p104 = scmp.eq.s32.totalorder %s19, 1
    %p105 = por %p103, %p104
    %p107 = scmp.ne.s32.totalorder %s92, %s106
    %p108 = scmp.eq.s32.totalorder %s19, 0
    %p109 = por %p107, %p108
    %s111 = sadd.s32 %s110, 1
    %p114 = scmp.eq.s32.totalorder %s13, 1
    %p115 = scmp.ne.s32.totalorder %s110, %s112
    %p116 = scmp.eq.s32.totalorder %s13, 0
    %p117 = por %p115, %p116
    %p118 = scmp.ne.s32.totalorder %s110, %s112
    %p119 = scmp.eq.s32.totalorder %s18, 1
    %p120 = por %p118, %p119
    %p121 = scmp.ne.s32.totalorder %s112, %s113
    %p122 = scmp.eq.s32.totalorder %s18, 0
    %p123 = por %p121, %p122
    %p124 = scmp.ne.s32.totalorder %s112, %s113
    %p125 = scmp.eq.s32.totalorder %s19, 1
    %p126 = por %p124, %p125
    %p128 = scmp.ne.s32.totalorder %s113, %s127
    %p129 = scmp.eq.s32.totalorder %s19, 0
    %p130 = por %p128, %p129
    %s131 = ssub.s32 %s13, %s20
    %p132 = scmp.eq.s32.totalorder %s131, 0
    %s134 = sadd.s32 %s133, 1
    %s135 = scalar_select %p132, %s133, %s134
    %p138 = pneg %p132
    %p139 = scmp.eq.s32.totalorder %s13, 1
    %p140 = por %p138, %p139
    %p141 = scmp.ne.s32.totalorder %s133, %s136
    %p142 = scmp.eq.s32.totalorder %s13, 0
    %p143 = por %p141, %p142
    %p144 = scmp.ne.s32.totalorder %s133, %s136
    %p145 = scmp.eq.s32.totalorder %s18, 1
    %p146 = por %p144, %p145
    %p147 = scmp.ne.s32.totalorder %s136, %s137
    %p148 = scmp.eq.s32.totalorder %s18, 0
    %p149 = por %p147, %p148
    %p150 = scmp.ne.s32.totalorder %s136, %s137
    %p151 = scmp.eq.s32.totalorder %s19, 1
    %p152 = por %p150, %p151
    %p154 = scmp.ne.s32.totalorder %s137, %s153
    %p155 = scmp.eq.s32.totalorder %s19, 0
    %p156 = por %p154, %p155
    %s157 = ssub.s32 %s13, %s20
    %p158 = scmp.eq.s32.totalorder %s157, 0
    %s160 = sadd.s32 %s159, 1
    %s161 = scalar_select %p158, %s159, %s160
    %p164 = pneg %p158
    %p165 = scmp.eq.s32.totalorder %s13, 1
    %p166 = por %p164, %p165
    %p167 = scmp.ne.s32.totalorder %s159, %s162
    %p168 = scmp.eq.s32.totalorder %s13, 0
    %p169 = por %p167, %p168
    %p170 = scmp.ne.s32.totalorder %s159, %s162
    %p171 = scmp.eq.s32.totalorder %s18, 1
    %p172 = por %p170, %p171
    %p173 = scmp.ne.s32.totalorder %s162, %s163
    %p174 = scmp.eq.s32.totalorder %s18, 0
    %p175 = por %p173, %p174
    %p176 = scmp.ne.s32.totalorder %s162, %s163
    %p177 = scmp.eq.s32.totalorder %s19, 1
    %p178 = por %p176, %p177
    %p180 = scmp.ne.s32.totalorder %s163, %s179
    %p181 = scmp.eq.s32.totalorder %s19, 0
    %p182 = por %p180, %p181
    %p183 = scmp.le.s32.totalorder 1, %s13
    %p184 = scmp.lt.s32.totalorder %s13, 3
    %p185 = pnand %p183, %p184
    %p186 = pneg %p185
    // Predicated region
    $region9: #{unet_conv_block.3} parent=5 // pred_check
      _
    $region10: #{unet_conv_block.3} parent=5 // pred_check_branch
      %188 = sbr.rel (%p185) target = $region12
    $region11: #{unet_conv_block.3} parent=5 // pred_region
      %s189 = ssub.s32 %s13, 1
      // Predicated region
      $region13: #{unet_conv_block.3} parent=11 // pred_check
        %p190 = pneg %p60
      $region14: #{unet_conv_block.3} parent=11 // pred_check_branch
        %192 = sbr.rel (%p190) target = $region16
      $region15: #{unet_conv_block.3} parent=11 // pred_region
        _
      $region16: #{unet_conv_block.3} parent=11 // pred_fallthru
        _
      // Predicated region
      $region17: #{unet_conv_block.3} parent=11 // pred_check
        %p193 = pneg %p81
      $region18: #{unet_conv_block.3} parent=11 // pred_check_branch
        %195 = sbr.rel (%p193) target = $region20
      $region19: #{unet_conv_block.3} parent=11 // pred_region
        _
      $region20: #{unet_conv_block.3} parent=11 // pred_fallthru
        _
      // Predicated region
      $region21: #{unet_conv_block.3} parent=11 // pred_check
        %p196 = pneg %p102
      $region22: #{unet_conv_block.3} parent=11 // pred_check_branch
        %198 = sbr.rel (%p196) target = $region24
      $region23: #{unet_conv_block.3} parent=11 // pred_region
        _
      $region24: #{unet_conv_block.3} parent=11 // pred_fallthru
        _
      // Predicated region
      $region25: #{unet_conv_block.3} parent=11 // pred_check
        %p199 = pneg %p123
      $region26: #{unet_conv_block.3} parent=11 // pred_check_branch
        %201 = sbr.rel (%p199) target = $region28
      $region27: #{unet_conv_block.3} parent=11 // pred_region
        _
      $region28: #{unet_conv_block.3} parent=11 // pred_fallthru
        _
    $region12: #{unet_conv_block.3} parent=5 // pred_fallthru
      _
    %p202 = scmp.lt.s32.totalorder %s13, 2
    // Predicated region
    $region29: #{unet_conv_block.3} parent=5 // pred_check
      %p203 = pneg %p202
    $region30: #{unet_conv_block.3} parent=5 // pred_check_branch
      %205 = sbr.rel (%p203) target = $region32
    $region31: #{unet_conv_block.3} parent=5 // pred_region
      // Predicated region
      $region33: #{unet_conv_block.3} parent=31 // pred_check
        %p206 = pneg %p33
      $region34: #{unet_conv_block.3} parent=31 // pred_check_branch
        %208 = sbr.rel (%p206) target = $region36
      $region35: #{unet_conv_block.3} parent=31 // pred_region
        %p209 = scmp.lt.s32.totalorder %s13, 1
        %s210 = scalar_select %p209, %s13, 1
        %s211 = smul.addr %s210, 32
        %s212 = smul.addr %s211, 8
        %s213 = scalar_lea.vmem %s0, %s212
      $region36: #{unet_conv_block.3} parent=31 // pred_fallthru
        _
    $region32: #{unet_conv_block.3} parent=5 // pred_fallthru
      _
    %p214 = scmp.le.s32.totalorder 1, %s13
    %p215 = scmp.lt.s32.totalorder %s13, 3
    %p216 = pnand %p214, %p215
    %p217 = pneg %p216
    // Predicated region
    $region37: #{unet_conv_block.3} parent=5 // pred_check
      _
    $region38: #{unet_conv_block.3} parent=5 // pred_check_branch
      %219 = sbr.rel (%p216) target = $region40
    $region39: #{unet_conv_block.3} parent=5 // pred_region
      %s220 = ssub.s32 %s13, 1
      %p221 = scmp.lt.s32.totalorder %s18, 1
      %s222 = scalar_select %p221, %s18, 1
      %s223 = smul.addr %s222, 32
      %s224 = smul.addr %s223, 8
      %s225 = scalar_lea.vmem %s0, %s224
      %p226 = pneg %p39
      %p227 = pneg %p36
      %p228 = pneg %p60
      %p229 = pneg %p57
      %p230 = pneg %p81
      %p231 = pneg %p78
      %p232 = pneg %p102
      %p233 = pneg %p99
      %p234 = pneg %p123
      %p235 = pneg %p120
      %p236 = pneg %p149
      %p237 = pneg %p146
      %p238 = scmp.lt.s32.totalorder %s18, 1
      %s239 = scalar_select %p238, %s18, 1
      %s240 = smul.addr %s239, 32
      %s241 = smul.addr %s240, 8
      %s242 = scalar_lea.vmem %s5, %s241
      %p243 = pneg %p175
      %p244 = pneg %p172
      %p245 = scmp.lt.s32.totalorder %s18, 1
      %s246 = scalar_select %p245, %s18, 1
      %s247 = smul.addr %s246, 2
      %s248 = scalar_lea.vmem %s6, %s247
      %p249 = scmp.lt.s32.totalorder %s18, 1
      %s250 = scalar_select %p249, %s18, 1
      %s251 = smul.addr %s250, 32
      %s252 = smul.addr %s251, 8
      %s253 = scalar_lea.vmem %s0, %s252
      %p254 = scmp.lt.s32.totalorder %s18, 1
      %s255 = scalar_select %p254, %s18, 1
      %s256 = smul.addr %s255, 32
      %s257 = smul.addr %s256, 8
      %s258 = scalar_lea.vmem %s5, %s257
      %p259 = scmp.lt.s32.totalorder %s18, 1
      %s260 = scalar_select %p259, %s18, 1
      %s261 = smul.addr %s260, 2
      %s262 = scalar_lea.vmem %s6, %s261
      %v263 = vld [vmem:[%s253] sm:$0xff]
      %v264 = vld [vmem:[%s253 + $0x8] sm:$0xff]
      %v265 = vld [vmem:[%s253 + $0x10] sm:$0xff]
      %v266 = vld [vmem:[%s253 + $0x18] sm:$0xff]
      %v267 = vld [vmem:[%s253 + $0x20] sm:$0xff]
      %v268 = vld [vmem:[%s253 + $0x28] sm:$0xff]
      %v269 = vld [vmem:[%s253 + $0x30] sm:$0xff]
      %v270 = vld [vmem:[%s253 + $0x38] sm:$0xff]
      %v271 = vld [vmem:[%s253 + $0x40] sm:$0xff]
      %v272 = vld [vmem:[%s253 + $0x48] sm:$0xff]
      %v273 = vld [vmem:[%s253 + $0x50] sm:$0xff]
      %v274 = vld [vmem:[%s253 + $0x58] sm:$0xff]
      %v275 = vld [vmem:[%s253 + $0x60] sm:$0xff]
      %v276 = vld [vmem:[%s253 + $0x68] sm:$0xff]
      %v277 = vld [vmem:[%s253 + $0x70] sm:$0xff]
      %v278 = vld [vmem:[%s253 + $0x78] sm:$0xff]
      %v279 = vld [vmem:[%s253 + $0x80] sm:$0xff]
      %v280 = vld [vmem:[%s253 + $0x88] sm:$0xff]
      %v281 = vld [vmem:[%s253 + $0x90] sm:$0xff]
      %v282 = vld [vmem:[%s253 + $0x98] sm:$0xff]
      %v283 = vld [vmem:[%s253 + $0xa0] sm:$0xff]
      %v284 = vld [vmem:[%s253 + $0xa8] sm:$0xff]
      %v285 = vld [vmem:[%s253 + $0xb0] sm:$0xff]
      %v286 = vld [vmem:[%s253 + $0xb8] sm:$0xff]
      %v287 = vld [vmem:[%s253 + $0xc0] sm:$0xff]
      %v288 = vld [vmem:[%s253 + $0xc8] sm:$0xff]
      %v289 = vld [vmem:[%s253 + $0xd0] sm:$0xff]
      %v290 = vld [vmem:[%s253 + $0xd8] sm:$0xff]
      %v291 = vld [vmem:[%s253 + $0xe0] sm:$0xff]
      %v292 = vld [vmem:[%s253 + $0xe8] sm:$0xff]
      %v293 = vld [vmem:[%s253 + $0xf0] sm:$0xff]
      %v294 = vld [vmem:[%s253 + $0xf8] sm:$0xff]
      %v295 = vld [vmem:[%s1] sm:$0x1]
      %v297 = vlaneseq
      %v298 = vshrl.u32 %v297, 7
      %v299 = vsub.s32 0, %v298
      %v300 = vrot.slane %v295, %v299
      %v302 = vmul.f32 %v263, %v300
      %v303 = vmul.f32 %v264, %v300
      %v304 = vmul.f32 %v265, %v300
      %v305 = vmul.f32 %v266, %v300
      %v306 = vmul.f32 %v267, %v300
      %v307 = vmul.f32 %v268, %v300
      %v308 = vmul.f32 %v269, %v300
      %v309 = vmul.f32 %v270, %v300
      %v310 = vmul.f32 %v271, %v300
      %v311 = vmul.f32 %v272, %v300
      %v312 = vmul.f32 %v273, %v300
      %v313 = vmul.f32 %v274, %v300
      %v314 = vmul.f32 %v275, %v300
      %v315 = vmul.f32 %v276, %v300
      %v316 = vmul.f32 %v277, %v300
      %v317 = vmul.f32 %v278, %v300
      %v318 = vmul.f32 %v279, %v300
      %v319 = vmul.f32 %v280, %v300
      %v320 = vmul.f32 %v281, %v300
      %v321 = vmul.f32 %v282, %v300
      %v322 = vmul.f32 %v283, %v300
      %v323 = vmul.f32 %v284, %v300
      %v324 = vmul.f32 %v285, %v300
      %v325 = vmul.f32 %v286, %v300
      %v326 = vmul.f32 %v287, %v300
      %v327 = vmul.f32 %v288, %v300
      %v328 = vmul.f32 %v289, %v300
      %v329 = vmul.f32 %v290, %v300
      %v330 = vmul.f32 %v291, %v300
      %v331 = vmul.f32 %v292, %v300
      %v332 = vmul.f32 %v293, %v300
      %v333 = vmul.f32 %v294, %v300
      %v334 = vld [vmem:[%s2] sm:$0x1]
      %v336 = vlaneseq
      %v337 = vshrl.u32 %v336, 7
      %v338 = vsub.s32 0, %v337
      %v339 = vrot.slane %v334, %v338
      %v341 = vadd.f32 %v302, %v339
      %v342 = vadd.f32 %v303, %v339
      %v343 = vadd.f32 %v304, %v339
      %v344 = vadd.f32 %v305, %v339
      %v345 = vadd.f32 %v306, %v339
      %v346 = vadd.f32 %v307, %v339
      %v347 = vadd.f32 %v308, %v339
      %v348 = vadd.f32 %v309, %v339
      %v349 = vadd.f32 %v310, %v339
      %v350 = vadd.f32 %v311, %v339
      %v351 = vadd.f32 %v312, %v339
      %v352 = vadd.f32 %v313, %v339
      %v353 = vadd.f32 %v314, %v339
      %v354 = vadd.f32 %v315, %v339
      %v355 = vadd.f32 %v316, %v339
      %v356 = vadd.f32 %v317, %v339
      %v357 = vadd.f32 %v318, %v339
      %v358 = vadd.f32 %v319, %v339
      %v359 = vadd.f32 %v320, %v339
      %v360 = vadd.f32 %v321, %v339
      %v361 = vadd.f32 %v322, %v339
      %v362 = vadd.f32 %v323, %v339
      %v363 = vadd.f32 %v324, %v339
      %v364 = vadd.f32 %v325, %v339
      %v365 = vadd.f32 %v326, %v339
      %v366 = vadd.f32 %v327, %v339
      %v367 = vadd.f32 %v328, %v339
      %v368 = vadd.f32 %v329, %v339
      %v369 = vadd.f32 %v330, %v339
      %v370 = vadd.f32 %v331, %v339
      %v371 = vadd.f32 %v332, %v339
      %v372 = vadd.f32 %v333, %v339
      %vm373 = vcmask 31744
      %374 = vst.msk [vmem:[#allocation2] sm:$0xff] %vm373, 0.0
      %375 = vst.msk [vmem:[#allocation2 + $0x8] sm:$0xff] %vm373, 0.0
      %vm376 = vcmask 25600
      %377 = vst.msk [vmem:[#allocation2 + $0x10] sm:$0x3] %vm376, 0.0
      %s378 = scalar_lea.vmem [#allocation2], 408
      %379 = vst.msk [vmem:[%s378] sm:$0xff] %vm373, 0.0
      %380 = vst.msk [vmem:[%s378 + $0x8] sm:$0xff] %vm373, 0.0
      %381 = vst.msk [vmem:[%s378 + $0x10] sm:$0x3] %vm376, 0.0
      %vm382 = vcmask 24576
      %383 = vst.msk [vmem:[#allocation2] sm:$0x1] %vm382, 0.0
      %384 = vst.msk [vmem:[#allocation2 + $0x18] sm:$0x1] %vm382, 0.0
      %385 = vst.msk [vmem:[#allocation2 + $0x30] sm:$0x1] %vm382, 0.0
      %386 = vst.msk [vmem:[#allocation2 + $0x48] sm:$0x1] %vm382, 0.0
      %387 = vst.msk [vmem:[#allocation2 + $0x60] sm:$0x1] %vm382, 0.0
      %388 = vst.msk [vmem:[#allocation2 + $0x78] sm:$0x1] %vm382, 0.0
      %389 = vst.msk [vmem:[#allocation2 + $0x90] sm:$0x1] %vm382, 0.0
      %390 = vst.msk [vmem:[#allocation2 + $0xa8] sm:$0x1] %vm382, 0.0
      %391 = vst.msk [vmem:[#allocation2 + $0xc0] sm:$0x1] %vm382, 0.0
      %392 = vst.msk [vmem:[#allocation2 + $0xd8] sm:$0x1] %vm382, 0.0
      %393 = vst.msk [vmem:[#allocation2 + $0xf0] sm:$0x1] %vm382, 0.0
      %394 = vst.msk [vmem:[#allocation2 + $0x108] sm:$0x1] %vm382, 0.0
      %395 = vst.msk [vmem:[#allocation2 + $0x120] sm:$0x1] %vm382, 0.0
      %396 = vst.msk [vmem:[#allocation2 + $0x138] sm:$0x1] %vm382, 0.0
      %397 = vst.msk [vmem:[#allocation2 + $0x150] sm:$0x1] %vm382, 0.0
      %398 = vst.msk [vmem:[#allocation2 + $0x168] sm:$0x1] %vm382, 0.0
      %399 = vst.msk [vmem:[#allocation2 + $0x180] sm:$0x1] %vm382, 0.0
      %400 = vst.msk [vmem:[#allocation2 + $0x198] sm:$0x1] %vm382, 0.0
      %401 = vst.msk [vmem:[#allocation2 + $0x11] sm:$0x1] %vm382, 0.0
      %402 = vst.msk [vmem:[#allocation2 + $0x29] sm:$0x1] %vm382, 0.0
      %403 = vst.msk [vmem:[#allocation2 + $0x41] sm:$0x1] %vm382, 0.0
      %404 = vst.msk [vmem:[#allocation2 + $0x59] sm:$0x1] %vm382, 0.0
      %405 = vst.msk [vmem:[#allocation2 + $0x71] sm:$0x1] %vm382, 0.0
      %406 = vst.msk [vmem:[#allocation2 + $0x89] sm:$0x1] %vm382, 0.0
      %407 = vst.msk [vmem:[#allocation2 + $0xa1] sm:$0x1] %vm382, 0.0
      %408 = vst.msk [vmem:[#allocation2 + $0xb9] sm:$0x1] %vm382, 0.0
      %409 = vst.msk [vmem:[#allocation2 + $0xd1] sm:$0x1] %vm382, 0.0
      %410 = vst.msk [vmem:[#allocation2 + $0xe9] sm:$0x1] %vm382, 0.0
      %411 = vst.msk [vmem:[#allocation2 + $0x101] sm:$0x1] %vm382, 0.0
      %412 = vst.msk [vmem:[#allocation2 + $0x119] sm:$0x1] %vm382, 0.0
      %413 = vst.msk [vmem:[#allocation2 + $0x131] sm:$0x1] %vm382, 0.0
      %414 = vst.msk [vmem:[#allocation2 + $0x149] sm:$0x1] %vm382, 0.0
      %415 = vst.msk [vmem:[#allocation2 + $0x161] sm:$0x1] %vm382, 0.0
      %416 = vst.msk [vmem:[#allocation2 + $0x179] sm:$0x1] %vm382, 0.0
      %417 = vst.msk [vmem:[#allocation2 + $0x191] sm:$0x1] %vm382, 0.0
      %418 = vst.msk [vmem:[#allocation2 + $0x1a9] sm:$0x1] %vm382, 0.0
      %s419 = scalar_lea.vmem [#allocation2], 24
      %420 = vst.msk [vmem:[%s419 + $0x1] sm:$0xff] %vm373, %v341
      %421 = vst.msk [vmem:[%s419 + $0x9] sm:$0xff] %vm373, %v342
      %422 = vst.msk [vmem:[%s419 + $0x19] sm:$0xff] %vm373, %v343
      %423 = vst.msk [vmem:[%s419 + $0x21] sm:$0xff] %vm373, %v344
      %424 = vst.msk [vmem:[%s419 + $0x31] sm:$0xff] %vm373, %v345
      %425 = vst.msk [vmem:[%s419 + $0x39] sm:$0xff] %vm373, %v346
      %426 = vst.msk [vmem:[%s419 + $0x49] sm:$0xff] %vm373, %v347
      %427 = vst.msk [vmem:[%s419 + $0x51] sm:$0xff] %vm373, %v348
      %428 = vst.msk [vmem:[%s419 + $0x61] sm:$0xff] %vm373, %v349
      %429 = vst.msk [vmem:[%s419 + $0x69] sm:$0xff] %vm373, %v350
      %430 = vst.msk [vmem:[%s419 + $0x79] sm:$0xff] %vm373, %v351
      %431 = vst.msk [vmem:[%s419 + $0x81] sm:$0xff] %vm373, %v352
      %432 = vst.msk [vmem:[%s419 + $0x91] sm:$0xff] %vm373, %v353
      %433 = vst.msk [vmem:[%s419 + $0x99] sm:$0xff] %vm373, %v354
      %434 = vst.msk [vmem:[%s419 + $0xa9] sm:$0xff] %vm373, %v355
      %435 = vst.msk [vmem:[%s419 + $0xb1] sm:$0xff] %vm373, %v356
      %436 = vst.msk [vmem:[%s419 + $0xc1] sm:$0xff] %vm373, %v357
      %437 = vst.msk [vmem:[%s419 + $0xc9] sm:$0xff] %vm373, %v358
      %438 = vst.msk [vmem:[%s419 + $0xd9] sm:$0xff] %vm373, %v359
      %439 = vst.msk [vmem:[%s419 + $0xe1] sm:$0xff] %vm373, %v360
      %440 = vst.msk [vmem:[%s419 + $0xf1] sm:$0xff] %vm373, %v361
      %441 = vst.msk [vmem:[%s419 + $0xf9] sm:$0xff] %vm373, %v362
      %442 = vst.msk [vmem:[%s419 + $0x109] sm:$0xff] %vm373, %v363
      %443 = vst.msk [vmem:[%s419 + $0x111] sm:$0xff] %vm373, %v364
      %444 = vst.msk [vmem:[%s419 + $0x121] sm:$0xff] %vm373, %v365
      %445 = vst.msk [vmem:[%s419 + $0x129] sm:$0xff] %vm373, %v366
      %446 = vst.msk [vmem:[%s419 + $0x139] sm:$0xff] %vm373, %v367
      %447 = vst.msk [vmem:[%s419 + $0x141] sm:$0xff] %vm373, %v368
      %448 = vst.msk [vmem:[%s419 + $0x151] sm:$0xff] %vm373, %v369
      %449 = vst.msk [vmem:[%s419 + $0x159] sm:$0xff] %vm373, %v370
      %450 = vst.msk [vmem:[%s419 + $0x169] sm:$0xff] %vm373, %v371
      %451 = vst.msk [vmem:[%s419 + $0x171] sm:$0xff] %vm373, %v372
      %v452 = vld [vmem:[#allocation2] sm:$0xff]
      %v453 = vld [vmem:[#allocation2 + $0x8] sm:$0xff]
      %v454 = vld [vmem:[#allocation2 + $0x10] sm:$0x3]
      %v455 = vld [vmem:[#allocation2 + $0x18] sm:$0xff]
      %v456 = vld [vmem:[#allocation2 + $0x20] sm:$0xff]
      %v457 = vld [vmem:[#allocation2 + $0x28] sm:$0x3]
      %v458 = vld [vmem:[#allocation2 + $0x30] sm:$0xff]
      %v459 = vld [vmem:[#allocation2 + $0x38] sm:$0xff]
      %v460 = vld [vmem:[#allocation2 + $0x40] sm:$0x3]
      %v461 = vld [vmem:[#allocation2 + $0x48] sm:$0xff]
      %v462 = vld [vmem:[#allocation2 + $0x50] sm:$0xff]
      %v463 = vld [vmem:[#allocation2 + $0x58] sm:$0x3]
      %v464 = vld [vmem:[#allocation2 + $0x60] sm:$0xff]
      %v465 = vld [vmem:[#allocation2 + $0x68] sm:$0xff]
      %v466 = vld [vmem:[#allocation2 + $0x70] sm:$0x3]
      %v467 = vld [vmem:[#allocation2 + $0x78] sm:$0xff]
      %v468 = vld [vmem:[#allocation2 + $0x80] sm:$0xff]
      %v469 = vld [vmem:[#allocation2 + $0x88] sm:$0x3]
      %v470 = vld [vmem:[#allocation2 + $0x90] sm:$0xff]
      %v471 = vld [vmem:[#allocation2 + $0x98] sm:$0xff]
      %v472 = vld [vmem:[#allocation2 + $0xa0] sm:$0x3]
      %v473 = vld [vmem:[#allocation2 + $0xa8] sm:$0xff]
      %v474 = vld [vmem:[#allocation2 + $0xb0] sm:$0xff]
      %v475 = vld [vmem:[#allocation2 + $0xb8] sm:$0x3]
      %v476 = vld [vmem:[#allocation2 + $0xc0] sm:$0xff]
      %v477 = vld [vmem:[#allocation2 + $0xc8] sm:$0xff]
      %v478 = vld [vmem:[#allocation2 + $0xd0] sm:$0x3]
      %v479 = vld [vmem:[#allocation2 + $0xd8] sm:$0xff]
      %v480 = vld [vmem:[#allocation2 + $0xe0] sm:$0xff]
      %v481 = vld [vmem:[#allocation2 + $0xe8] sm:$0x3]
      %v482 = vld [vmem:[#allocation2 + $0xf0] sm:$0xff]
      %v483 = vld [vmem:[#allocation2 + $0xf8] sm:$0xff]
      %v484 = vld [vmem:[#allocation2 + $0x100] sm:$0x3]
      %v485 = vld [vmem:[#allocation2 + $0x108] sm:$0xff]
      %v486 = vld [vmem:[#allocation2 + $0x110] sm:$0xff]
      %v487 = vld [vmem:[#allocation2 + $0x118] sm:$0x3]
      %v488 = vld [vmem:[#allocation2 + $0x120] sm:$0xff]
      %v489 = vld [vmem:[#allocation2 + $0x128] sm:$0xff]
      %v490 = vld [vmem:[#allocation2 + $0x130] sm:$0x3]
      %v491 = vld [vmem:[#allocation2 + $0x138] sm:$0xff]
      %v492 = vld [vmem:[#allocation2 + $0x140] sm:$0xff]
      %v493 = vld [vmem:[#allocation2 + $0x148] sm:$0x3]
      %v494 = vld [vmem:[#allocation2 + $0x150] sm:$0xff]
      %v495 = vld [vmem:[#allocation2 + $0x158] sm:$0xff]
      %v496 = vld [vmem:[#allocation2 + $0x160] sm:$0x3]
      %v497 = vld [vmem:[#allocation2 + $0x168] sm:$0xff]
      %v498 = vld [vmem:[#allocation2 + $0x170] sm:$0xff]
      %v499 = vld [vmem:[#allocation2 + $0x178] sm:$0x3]
      %v500 = vld [vmem:[#allocation2 + $0x180] sm:$0xff]
      %v501 = vld [vmem:[#allocation2 + $0x188] sm:$0xff]
      %v502 = vld [vmem:[#allocation2 + $0x190] sm:$0x3]
      %v503 = vld [vmem:[#allocation2 + $0x198] sm:$0xff]
      %v504 = vld [vmem:[#allocation2 + $0x1a0] sm:$0xff]
      %v505 = vld [vmem:[#allocation2 + $0x1a8] sm:$0x3]
      %506 = vst.msk [vmem:[#allocation3] sm:$0xff] %vm373, %v452
      %507 = vst.msk [vmem:[#allocation3 + $0x8] sm:$0xff] %vm373, %v453
      %508 = vst.msk [vmem:[#allocation3 + $0x10] sm:$0xff] %vm373, %v455
      %509 = vst.msk [vmem:[#allocation3 + $0x18] sm:$0xff] %vm373, %v456
      %510 = vst.msk [vmem:[#allocation3 + $0x20] sm:$0xff] %vm373, %v458
      %511 = vst.msk [vmem:[#allocation3 + $0x28] sm:$0xff] %vm373, %v459
      %512 = vst.msk [vmem:[#allocation3 + $0x30] sm:$0xff] %vm373, %v461
      %513 = vst.msk [vmem:[#allocation3 + $0x38] sm:$0xff] %vm373, %v462
      %514 = vst.msk [vmem:[#allocation3 + $0x40] sm:$0xff] %vm373, %v464
      %515 = vst.msk [vmem:[#allocation3 + $0x48] sm:$0xff] %vm373, %v465
      %516 = vst.msk [vmem:[#allocation3 + $0x50] sm:$0xff] %vm373, %v467
      %517 = vst.msk [vmem:[#allocation3 + $0x58] sm:$0xff] %vm373, %v468
      %518 = vst.msk [vmem:[#allocation3 + $0x60] sm:$0xff] %vm373, %v470
      %519 = vst.msk [vmem:[#allocation3 + $0x68] sm:$0xff] %vm373, %v471
      %520 = vst.msk [vmem:[#allocation3 + $0x70] sm:$0xff] %vm373, %v473
      %521 = vst.msk [vmem:[#allocation3 + $0x78] sm:$0xff] %vm373, %v474
      %522 = vst.msk [vmem:[#allocation3 + $0x80] sm:$0xff] %vm373, %v476
      %523 = vst.msk [vmem:[#allocation3 + $0x88] sm:$0xff] %vm373, %v477
      %524 = vst.msk [vmem:[#allocation3 + $0x90] sm:$0xff] %vm373, %v479
      %525 = vst.msk [vmem:[#allocation3 + $0x98] sm:$0xff] %vm373, %v480
      %526 = vst.msk [vmem:[#allocation3 + $0xa0] sm:$0xff] %vm373, %v482
      %527 = vst.msk [vmem:[#allocation3 + $0xa8] sm:$0xff] %vm373, %v483
      %528 = vst.msk [vmem:[#allocation3 + $0xb0] sm:$0xff] %vm373, %v485
      %529 = vst.msk [vmem:[#allocation3 + $0xb8] sm:$0xff] %vm373, %v486
      %530 = vst.msk [vmem:[#allocation3 + $0xc0] sm:$0xff] %vm373, %v488
      %531 = vst.msk [vmem:[#allocation3 + $0xc8] sm:$0xff] %vm373, %v489
      %532 = vst.msk [vmem:[#allocation3 + $0xd0] sm:$0xff] %vm373, %v491
      %533 = vst.msk [vmem:[#allocation3 + $0xd8] sm:$0xff] %vm373, %v492
      %534 = vst.msk [vmem:[#allocation3 + $0xe0] sm:$0xff] %vm373, %v494
      %535 = vst.msk [vmem:[#allocation3 + $0xe8] sm:$0xff] %vm373, %v495
      %536 = vst.msk [vmem:[#allocation3 + $0xf0] sm:$0xff] %vm373, %v497
      %537 = vst.msk [vmem:[#allocation3 + $0xf8] sm:$0xff] %vm373, %v498
      %vm586 = vcmask 1046528
      %v587 = vrot.slane %v452, 1
      %v588 = vrot.slane %v453, 1
      %v589 = vsel %vm586, %v587, %v588
      %v590 = vrot.slane %v454, 1
      %v591 = vsel %vm586, %v588, %v590
      %v592 = vrot.slane %v455, 1
      %v593 = vrot.slane %v456, 1
      %v594 = vsel %vm586, %v592, %v593
      %v595 = vrot.slane %v457, 1
      %v596 = vsel %vm586, %v593, %v595
      %v597 = vrot.slane %v458, 1
      %v598 = vrot.slane %v459, 1
      %v599 = vsel %vm586, %v597, %v598
      %v600 = vrot.slane %v460, 1
      %v601 = vsel %vm586, %v598, %v600
      %v602 = vrot.slane %v461, 1
      %v603 = vrot.slane %v462, 1
      %v604 = vsel %vm586, %v602, %v603
      %v605 = vrot.slane %v463, 1
      %v606 = vsel %vm586, %v603, %v605
      %v607 = vrot.slane %v464, 1
      %v608 = vrot.slane %v465, 1
      %v609 = vsel %vm586, %v607, %v608
      %v610 = vrot.slane %v466, 1
      %v611 = vsel %vm586, %v608, %v610
      %v612 = vrot.slane %v467, 1
      %v613 = vrot.slane %v468, 1
      %v614 = vsel %vm586, %v612, %v613
      %v615 = vrot.slane %v469, 1
      %v616 = vsel %vm586, %v613, %v615
      %v617 = vrot.slane %v470, 1
      %v618 = vrot.slane %v471, 1
      %v619 = vsel %vm586, %v617, %v618
      %v620 = vrot.slane %v472, 1
      %v621 = vsel %vm586, %v618, %v620
      %v622 = vrot.slane %v473, 1
      %v623 = vrot.slane %v474, 1
      %v624 = vsel %vm586, %v622, %v623
      %v625 = vrot.slane %v475, 1
      %v626 = vsel %vm586, %v623, %v625
      %v627 = vrot.slane %v476, 1
      %v628 = vrot.slane %v477, 1
      %v629 = vsel %vm586, %v627, %v628
      %v630 = vrot.slane %v478, 1
      %v631 = vsel %vm586, %v628, %v630
      %v632 = vrot.slane %v479, 1
      %v633 = vrot.slane %v480, 1
      %v634 = vsel %vm586, %v632, %v633
      %v635 = vrot.slane %v481, 1
      %v636 = vsel %vm586, %v633, %v635
      %v637 = vrot.slane %v482, 1
      %v638 = vrot.slane %v483, 1
      %v639 = vsel %vm586, %v637, %v638
      %v640 = vrot.slane %v484, 1
      %v641 = vsel %vm586, %v638, %v640
      %v642 = vrot.slane %v485, 1
      %v643 = vrot.slane %v486, 1
      %v644 = vsel %vm586, %v642, %v643
      %v645 = vrot.slane %v487, 1
      %v646 = vsel %vm586, %v643, %v645
      %v647 = vrot.slane %v488, 1
      %v648 = vrot.slane %v489, 1
      %v649 = vsel %vm586, %v647, %v648
      %v650 = vrot.slane %v490, 1
      %v651 = vsel %vm586, %v648, %v650
      %v652 = vrot.slane %v491, 1
      %v653 = vrot.slane %v492, 1
      %v654 = vsel %vm586, %v652, %v653
      %v655 = vrot.slane %v493, 1
      %v656 = vsel %vm586, %v653, %v655
      %v657 = vrot.slane %v494, 1
      %v658 = vrot.slane %v495, 1
      %v659 = vsel %vm586, %v657, %v658
      %v660 = vrot.slane %v496, 1
      %v661 = vsel %vm586, %v658, %v660
      %v662 = vrot.slane %v497, 1
      %v663 = vrot.slane %v498, 1
      %v664 = vsel %vm586, %v662, %v663
      %v665 = vrot.slane %v499, 1
      %v666 = vsel %vm586, %v663, %v665
      %667 = vrot.lane.b32.xlu0 %v589, 4
      %v668 = vpop.permute.xlu0 %667
      %669 = vrot.lane.b32.xlu0 %v591, 4
      %v670 = vpop.permute.xlu0 %669
      %671 = vrot.lane.b32.xlu0 %v594, 4
      %v672 = vpop.permute.xlu0 %671
      %673 = vrot.lane.b32.xlu0 %v596, 4
      %v674 = vpop.permute.xlu0 %673
      %675 = vrot.lane.b32.xlu0 %v599, 4
      %v676 = vpop.permute.xlu0 %675
      %677 = vrot.lane.b32.xlu0 %v601, 4
      %v678 = vpop.permute.xlu0 %677
      %679 = vrot.lane.b32.xlu0 %v604, 4
      %v680 = vpop.permute.xlu0 %679
      %681 = vrot.lane.b32.xlu0 %v606, 4
      %v682 = vpop.permute.xlu0 %681
      %683 = vrot.lane.b32.xlu0 %v609, 4
      %v684 = vpop.permute.xlu0 %683
      %685 = vrot.lane.b32.xlu0 %v611, 4
      %v686 = vpop.permute.xlu0 %685
      %687 = vrot.lane.b32.xlu0 %v614, 4
      %v688 = vpop.permute.xlu0 %687
      %689 = vrot.lane.b32.xlu0 %v616, 4
      %v690 = vpop.permute.xlu0 %689
      %691 = vrot.lane.b32.xlu0 %v619, 4
      %v692 = vpop.permute.xlu0 %691
      %693 = vrot.lane.b32.xlu0 %v621, 4
      %v694 = vpop.permute.xlu0 %693
      %695 = vrot.lane.b32.xlu0 %v624, 4
      %v696 = vpop.permute.xlu0 %695
      %697 = vrot.lane.b32.xlu0 %v626, 4
      %v698 = vpop.permute.xlu0 %697
      %699 = vrot.lane.b32.xlu0 %v629, 4
      %v700 = vpop.permute.xlu0 %699
      %701 = vrot.lane.b32.xlu0 %v631, 4
      %v702 = vpop.permute.xlu0 %701
      %703 = vrot.lane.b32.xlu0 %v634, 4
      %v704 = vpop.permute.xlu0 %703
      %705 = vrot.lane.b32.xlu0 %v636, 4
      %v706 = vpop.permute.xlu0 %705
      %707 = vrot.lane.b32.xlu0 %v639, 4
      %v708 = vpop.permute.xlu0 %707
      %709 = vrot.lane.b32.xlu0 %v641, 4
      %v710 = vpop.permute.xlu0 %709
      %711 = vrot.lane.b32.xlu0 %v644, 4
      %v712 = vpop.permute.xlu0 %711
      %713 = vrot.lane.b32.xlu0 %v646, 4
      %v714 = vpop.permute.xlu0 %713
      %715 = vrot.lane.b32.xlu0 %v649, 4
      %v716 = vpop.permute.xlu0 %715
      %717 = vrot.lane.b32.xlu0 %v651, 4
      %v718 = vpop.permute.xlu0 %717
      %719 = vrot.lane.b32.xlu0 %v654, 4
      %v720 = vpop.permute.xlu0 %719
      %721 = vrot.lane.b32.xlu0 %v656, 4
      %v722 = vpop.permute.xlu0 %721
      %723 = vrot.lane.b32.xlu0 %v659, 4
      %v724 = vpop.permute.xlu0 %723
      %725 = vrot.lane.b32.xlu0 %v661, 4
      %v726 = vpop.permute.xlu0 %725
      %727 = vrot.lane.b32.xlu0 %v664, 4
      %v728 = vpop.permute.xlu0 %727
      %729 = vrot.lane.b32.xlu0 %v666, 4
      %v730 = vpop.permute.xlu0 %729
      %vm763 = vcmask 64544
      %764 = vst.msk [vmem:[#allocation3] sm:$0xff] %vm763, %v668
      %765 = vst.msk [vmem:[#allocation3 + $0x8] sm:$0xff] %vm763, %v670
      %766 = vst.msk [vmem:[#allocation3 + $0x10] sm:$0xff] %vm763, %v672
      %767 = vst.msk [vmem:[#allocation3 + $0x18] sm:$0xff] %vm763, %v674
      %768 = vst.msk [vmem:[#allocation3 + $0x20] sm:$0xff] %vm763, %v676
      %769 = vst.msk [vmem:[#allocation3 + $0x28] sm:$0xff] %vm763, %v678
      %770 = vst.msk [vmem:[#allocation3 + $0x30] sm:$0xff] %vm763, %v680
      %771 = vst.msk [vmem:[#allocation3 + $0x38] sm:$0xff] %vm763, %v682
      %772 = vst.msk [vmem:[#allocation3 + $0x40] sm:$0xff] %vm763, %v684
      %773 = vst.msk [vmem:[#allocation3 + $0x48] sm:$0xff] %vm763, %v686
      %774 = vst.msk [vmem:[#allocation3 + $0x50] sm:$0xff] %vm763, %v688
      %775 = vst.msk [vmem:[#allocation3 + $0x58] sm:$0xff] %vm763, %v690
      %776 = vst.msk [vmem:[#allocation3 + $0x60] sm:$0xff] %vm763, %v692
      %777 = vst.msk [vmem:[#allocation3 + $0x68] sm:$0xff] %vm763, %v694
      %778 = vst.msk [vmem:[#allocation3 + $0x70] sm:$0xff] %vm763, %v696
      %779 = vst.msk [vmem:[#allocation3 + $0x78] sm:$0xff] %vm763, %v698
      %780 = vst.msk [vmem:[#allocation3 + $0x80] sm:$0xff] %vm763, %v700
      %781 = vst.msk [vmem:[#allocation3 + $0x88] sm:$0xff] %vm763, %v702
      %782 = vst.msk [vmem:[#allocation3 + $0x90] sm:$0xff] %vm763, %v704
      %783 = vst.msk [vmem:[#allocation3 + $0x98] sm:$0xff] %vm763, %v706
      %784 = vst.msk [vmem:[#allocation3 + $0xa0] sm:$0xff] %vm763, %v708
      %785 = vst.msk [vmem:[#allocation3 + $0xa8] sm:$0xff] %vm763, %v710
      %786 = vst.msk [vmem:[#allocation3 + $0xb0] sm:$0xff] %vm763, %v712
      %787 = vst.msk [vmem:[#allocation3 + $0xb8] sm:$0xff] %vm763, %v714
      %788 = vst.msk [vmem:[#allocation3 + $0xc0] sm:$0xff] %vm763, %v716
      %789 = vst.msk [vmem:[#allocation3 + $0xc8] sm:$0xff] %vm763, %v718
      %790 = vst.msk [vmem:[#allocation3 + $0xd0] sm:$0xff] %vm763, %v720
      %791 = vst.msk [vmem:[#allocation3 + $0xd8] sm:$0xff] %vm763, %v722
      %792 = vst.msk [vmem:[#allocation3 + $0xe0] sm:$0xff] %vm763, %v724
      %793 = vst.msk [vmem:[#allocation3 + $0xe8] sm:$0xff] %vm763, %v726
      %794 = vst.msk [vmem:[#allocation3 + $0xf0] sm:$0xff] %vm763, %v728
      %795 = vst.msk [vmem:[#allocation3 + $0xf8] sm:$0xff] %vm763, %v730
      %vm796 = vcmask 1045504
      %v797 = vrot.slane %v452, 2
      %v798 = vrot.slane %v453, 2
      %v799 = vsel %vm796, %v797, %v798
      %v800 = vrot.slane %v454, 2
      %v801 = vsel %vm796, %v798, %v800
      %v802 = vrot.slane %v455, 2
      %v803 = vrot.slane %v456, 2
      %v804 = vsel %vm796, %v802, %v803
      %v805 = vrot.slane %v457, 2
      %v806 = vsel %vm796, %v803, %v805
      %v807 = vrot.slane %v458, 2
      %v808 = vrot.slane %v459, 2
      %v809 = vsel %vm796, %v807, %v808
      %v810 = vrot.slane %v460, 2
      %v811 = vsel %vm796, %v808, %v810
      %v812 = vrot.slane %v461, 2
      %v813 = vrot.slane %v462, 2
      %v814 = vsel %vm796, %v812, %v813
      %v815 = vrot.slane %v463, 2
      %v816 = vsel %vm796, %v813, %v815
      %v817 = vrot.slane %v464, 2
      %v818 = vrot.slane %v465, 2
      %v819 = vsel %vm796, %v817, %v818
      %v820 = vrot.slane %v466, 2
      %v821 = vsel %vm796, %v818, %v820
      %v822 = vrot.slane %v467, 2
      %v823 = vrot.slane %v468, 2
      %v824 = vsel %vm796, %v822, %v823
      %v825 = vrot.slane %v469, 2
      %v826 = vsel %vm796, %v823, %v825
      %v827 = vrot.slane %v470, 2
      %v828 = vrot.slane %v471, 2
      %v829 = vsel %vm796, %v827, %v828
      %v830 = vrot.slane %v472, 2
      %v831 = vsel %vm796, %v828, %v830
      %v832 = vrot.slane %v473, 2
      %v833 = vrot.slane %v474, 2
      %v834 = vsel %vm796, %v832, %v833
      %v835 = vrot.slane %v475, 2
      %v836 = vsel %vm796, %v833, %v835
      %v837 = vrot.slane %v476, 2
      %v838 = vrot.slane %v477, 2
      %v839 = vsel %vm796, %v837, %v838
      %v840 = vrot.slane %v478, 2
      %v841 = vsel %vm796, %v838, %v840
      %v842 = vrot.slane %v479, 2
      %v843 = vrot.slane %v480, 2
      %v844 = vsel %vm796, %v842, %v843
      %v845 = vrot.slane %v481, 2
      %v846 = vsel %vm796, %v843, %v845
      %v847 = vrot.slane %v482, 2
      %v848 = vrot.slane %v483, 2
      %v849 = vsel %vm796, %v847, %v848
      %v850 = vrot.slane %v484, 2
      %v851 = vsel %vm796, %v848, %v850
      %v852 = vrot.slane %v485, 2
      %v853 = vrot.slane %v486, 2
      %v854 = vsel %vm796, %v852, %v853
      %v855 = vrot.slane %v487, 2
      %v856 = vsel %vm796, %v853, %v855
      %v857 = vrot.slane %v488, 2
      %v858 = vrot.slane %v489, 2
      %v859 = vsel %vm796, %v857, %v858
      %v860 = vrot.slane %v490, 2
      %v861 = vsel %vm796, %v858, %v860
      %v862 = vrot.slane %v491, 2
      %v863 = vrot.slane %v492, 2
      %v864 = vsel %vm796, %v862, %v863
      %v865 = vrot.slane %v493, 2
      %v866 = vsel %vm796, %v863, %v865
      %v867 = vrot.slane %v494, 2
      %v868 = vrot.slane %v495, 2
      %v869 = vsel %vm796, %v867, %v868
      %v870 = vrot.slane %v496, 2
      %v871 = vsel %vm796, %v868, %v870
      %v872 = vrot.slane %v497, 2
      %v873 = vrot.slane %v498, 2
      %v874 = vsel %vm796, %v872, %v873
      %v875 = vrot.slane %v499, 2
      %v876 = vsel %vm796, %v873, %v875
      %877 = vrot.lane.b32.xlu0 %v799, 8
      %v878 = vpop.permute.xlu0 %877
      %879 = vrot.lane.b32.xlu0 %v801, 8
      %v880 = vpop.permute.xlu0 %879
      %881 = vrot.lane.b32.xlu0 %v804, 8
      %v882 = vpop.permute.xlu0 %881
      %883 = vrot.lane.b32.xlu0 %v806, 8
      %v884 = vpop.permute.xlu0 %883
      %885 = vrot.lane.b32.xlu0 %v809, 8
      %v886 = vpop.permute.xlu0 %885
      %887 = vrot.lane.b32.xlu0 %v811, 8
      %v888 = vpop.permute.xlu0 %887
      %889 = vrot.lane.b32.xlu0 %v814, 8
      %v890 = vpop.permute.xlu0 %889
      %891 = vrot.lane.b32.xlu0 %v816, 8
      %v892 = vpop.permute.xlu0 %891
      %893 = vrot.lane.b32.xlu0 %v819, 8
      %v894 = vpop.permute.xlu0 %893
      %895 = vrot.lane.b32.xlu0 %v821, 8
      %v896 = vpop.permute.xlu0 %895
      %897 = vrot.lane.b32.xlu0 %v824, 8
      %v898 = vpop.permute.xlu0 %897
      %899 = vrot.lane.b32.xlu0 %v826, 8
      %v900 = vpop.permute.xlu0 %899
      %901 = vrot.lane.b32.xlu0 %v829, 8
      %v902 = vpop.permute.xlu0 %901
      %903 = vrot.lane.b32.xlu0 %v831, 8
      %v904 = vpop.permute.xlu0 %903
      %905 = vrot.lane.b32.xlu0 %v834, 8
      %v906 = vpop.permute.xlu0 %905
      %907 = vrot.lane.b32.xlu0 %v836, 8
      %v908 = vpop.permute.xlu0 %907
      %909 = vrot.lane.b32.xlu0 %v839, 8
      %v910 = vpop.permute.xlu0 %909
      %911 = vrot.lane.b32.xlu0 %v841, 8
      %v912 = vpop.permute.xlu0 %911
      %913 = vrot.lane.b32.xlu0 %v844, 8
      %v914 = vpop.permute.xlu0 %913
      %915 = vrot.lane.b32.xlu0 %v846, 8
      %v916 = vpop.permute.xlu0 %915
      %917 = vrot.lane.b32.xlu0 %v849, 8
      %v918 = vpop.permute.xlu0 %917
      %919 = vrot.lane.b32.xlu0 %v851, 8
      %v920 = vpop.permute.xlu0 %919
      %921 = vrot.lane.b32.xlu0 %v854, 8
      %v922 = vpop.permute.xlu0 %921
      %923 = vrot.lane.b32.xlu0 %v856, 8
      %v924 = vpop.permute.xlu0 %923
      %925 = vrot.lane.b32.xlu0 %v859, 8
      %v926 = vpop.permute.xlu0 %925
      %927 = vrot.lane.b32.xlu0 %v861, 8
      %v928 = vpop.permute.xlu0 %927
      %929 = vrot.lane.b32.xlu0 %v864, 8
      %v930 = vpop.permute.xlu0 %929
      %931 = vrot.lane.b32.xlu0 %v866, 8
      %v932 = vpop.permute.xlu0 %931
      %933 = vrot.lane.b32.xlu0 %v869, 8
      %v934 = vpop.permute.xlu0 %933
      %935 = vrot.lane.b32.xlu0 %v871, 8
      %v936 = vpop.permute.xlu0 %935
      %937 = vrot.lane.b32.xlu0 %v874, 8
      %v938 = vpop.permute.xlu0 %937
      %939 = vrot.lane.b32.xlu0 %v876, 8
      %v940 = vpop.permute.xlu0 %939
      %vm973 = vcmask 97344
      %974 = vst.msk [vmem:[#allocation3] sm:$0xff] %vm973, %v878
      %975 = vst.msk [vmem:[#allocation3 + $0x8] sm:$0xff] %vm973, %v880
      %976 = vst.msk [vmem:[#allocation3 + $0x10] sm:$0xff] %vm973, %v882
      %977 = vst.msk [vmem:[#allocation3 + $0x18] sm:$0xff] %vm973, %v884
      %978 = vst.msk [vmem:[#allocation3 + $0x20] sm:$0xff] %vm973, %v886
      %979 = vst.msk [vmem:[#allocation3 + $0x28] sm:$0xff] %vm973, %v888
      %980 = vst.msk [vmem:[#allocation3 + $0x30] sm:$0xff] %vm973, %v890
      %981 = vst.msk [vmem:[#allocation3 + $0x38] sm:$0xff] %vm973, %v892
      %982 = vst.msk [vmem:[#allocation3 + $0x40] sm:$0xff] %vm973, %v894
      %983 = vst.msk [vmem:[#allocation3 + $0x48] sm:$0xff] %vm973, %v896
      %984 = vst.msk [vmem:[#allocation3 + $0x50] sm:$0xff] %vm973, %v898
      %985 = vst.msk [vmem:[#allocation3 + $0x58] sm:$0xff] %vm973, %v900
      %986 = vst.msk [vmem:[#allocation3 + $0x60] sm:$0xff] %vm973, %v902
      %987 = vst.msk [vmem:[#allocation3 + $0x68] sm:$0xff] %vm973, %v904
      %988 = vst.msk [vmem:[#allocation3 + $0x70] sm:$0xff] %vm973, %v906
      %989 = vst.msk [vmem:[#allocation3 + $0x78] sm:$0xff] %vm973, %v908
      %990 = vst.msk [vmem:[#allocation3 + $0x80] sm:$0xff] %vm973, %v910
      %991 = vst.msk [vmem:[#allocation3 + $0x88] sm:$0xff] %vm973, %v912
      %992 = vst.msk [vmem:[#allocation3 + $0x90] sm:$0xff] %vm973, %v914
      %993 = vst.msk [vmem:[#allocation3 + $0x98] sm:$0xff] %vm973, %v916
      %994 = vst.msk [vmem:[#allocation3 + $0xa0] sm:$0xff] %vm973, %v918
      %995 = vst.msk [vmem:[#allocation3 + $0xa8] sm:$0xff] %vm973, %v920
      %996 = vst.msk [vmem:[#allocation3 + $0xb0] sm:$0xff] %vm973, %v922
      %997 = vst.msk [vmem:[#allocation3 + $0xb8] sm:$0xff] %vm973, %v924
      %998 = vst.msk [vmem:[#allocation3 + $0xc0] sm:$0xff] %vm973, %v926
      %999 = vst.msk [vmem:[#allocation3 + $0xc8] sm:$0xff] %vm973, %v928
      %1000 = vst.msk [vmem:[#allocation3 + $0xd0] sm:$0xff] %vm973, %v930
      %1001 = vst.msk [vmem:[#allocation3 + $0xd8] sm:$0xff] %vm973, %v932
      %1002 = vst.msk [vmem:[#allocation3 + $0xe0] sm:$0xff] %vm973, %v934
      %1003 = vst.msk [vmem:[#allocation3 + $0xe8] sm:$0xff] %vm973, %v936
      %1004 = vst.msk [vmem:[#allocation3 + $0xf0] sm:$0xff] %vm973, %v938
      %1005 = vst.msk [vmem:[#allocation3 + $0xf8] sm:$0xff] %vm973, %v940
      %1008 = vrot.lane.b32.xlu0 %v455, 12
      %v1009 = vpop.permute.xlu0 %1008
      %1010 = vrot.lane.b32.xlu0 %v456, 12
      %v1011 = vpop.permute.xlu0 %1010
      %1012 = vrot.lane.b32.xlu0 %v458, 12
      %v1013 = vpop.permute.xlu0 %1012
      %1014 = vrot.lane.b32.xlu0 %v459, 12
      %v1015 = vpop.permute.xlu0 %1014
      %1016 = vrot.lane.b32.xlu0 %v461, 12
      %v1017 = vpop.permute.xlu0 %1016
      %1018 = vrot.lane.b32.xlu0 %v462, 12
      %v1019 = vpop.permute.xlu0 %1018
      %1020 = vrot.lane.b32.xlu0 %v464, 12
      %v1021 = vpop.permute.xlu0 %1020
      %1022 = vrot.lane.b32.xlu0 %v465, 12
      %v1023 = vpop.permute.xlu0 %1022
      %1024 = vrot.lane.b32.xlu0 %v467, 12
      %v1025 = vpop.permute.xlu0 %1024
      %1026 = vrot.lane.b32.xlu0 %v468, 12
      %v1027 = vpop.permute.xlu0 %1026
      %1028 = vrot.lane.b32.xlu0 %v470, 12
      %v1029 = vpop.permute.xlu0 %1028
      %1030 = vrot.lane.b32.xlu0 %v471, 12
      %v1031 = vpop.permute.xlu0 %1030
      %1032 = vrot.lane.b32.xlu0 %v473, 12
      %v1033 = vpop.permute.xlu0 %1032
      %1034 = vrot.lane.b32.xlu0 %v474, 12
      %v1035 = vpop.permute.xlu0 %1034
      %1036 = vrot.lane.b32.xlu0 %v476, 12
      %v1037 = vpop.permute.xlu0 %1036
      %1038 = vrot.lane.b32.xlu0 %v477, 12
      %v1039 = vpop.permute.xlu0 %1038
      %1040 = vrot.lane.b32.xlu0 %v479, 12
      %v1041 = vpop.permute.xlu0 %1040
      %1042 = vrot.lane.b32.xlu0 %v480, 12
      %v1043 = vpop.permute.xlu0 %1042
      %1044 = vrot.lane.b32.xlu0 %v482, 12
      %v1045 = vpop.permute.xlu0 %1044
      %1046 = vrot.lane.b32.xlu0 %v483, 12
      %v1047 = vpop.permute.xlu0 %1046
      %1048 = vrot.lane.b32.xlu0 %v485, 12
      %v1049 = vpop.permute.xlu0 %1048
      %1050 = vrot.lane.b32.xlu0 %v486, 12
      %v1051 = vpop.permute.xlu0 %1050
      %1052 = vrot.lane.b32.xlu0 %v488, 12
      %v1053 = vpop.permute.xlu0 %1052
      %1054 = vrot.lane.b32.xlu0 %v489, 12
      %v1055 = vpop.permute.xlu0 %1054
      %1056 = vrot.lane.b32.xlu0 %v491, 12
      %v1057 = vpop.permute.xlu0 %1056
      %1058 = vrot.lane.b32.xlu0 %v492, 12
      %v1059 = vpop.permute.xlu0 %1058
      %1060 = vrot.lane.b32.xlu0 %v494, 12
      %v1061 = vpop.permute.xlu0 %1060
      %1062 = vrot.lane.b32.xlu0 %v495, 12
      %v1063 = vpop.permute.xlu0 %1062
      %1064 = vrot.lane.b32.xlu0 %v497, 12
      %v1065 = vpop.permute.xlu0 %1064
      %1066 = vrot.lane.b32.xlu0 %v498, 12
      %v1067 = vpop.permute.xlu0 %1066
      %1068 = vrot.lane.b32.xlu0 %v500, 12
      %v1069 = vpop.permute.xlu0 %1068
      %1070 = vrot.lane.b32.xlu0 %v501, 12
      %v1071 = vpop.permute.xlu0 %1070
      %vm1104 = vcmask 130144
      %1105 = vst.msk [vmem:[#allocation3] sm:$0xff] %vm1104, %v1009
      %1106 = vst.msk [vmem:[#allocation3 + $0x8] sm:$0xff] %vm1104, %v1011
      %1107 = vst.msk [vmem:[#allocation3 + $0x10] sm:$0xff] %vm1104, %v1013
      %1108 = vst.msk [vmem:[#allocation3 + $0x18] sm:$0xff] %vm1104, %v1015
      %1109 = vst.msk [vmem:[#allocation3 + $0x20] sm:$0xff] %vm1104, %v1017
      %1110 = vst.msk [vmem:[#allocation3 + $0x28] sm:$0xff] %vm1104, %v1019
      %1111 = vst.msk [vmem:[#allocation3 + $0x30] sm:$0xff] %vm1104, %v1021
      %1112 = vst.msk [vmem:[#allocation3 + $0x38] sm:$0xff] %vm1104, %v1023
      %1113 = vst.msk [vmem:[#allocation3 + $0x40] sm:$0xff] %vm1104, %v1025
      %1114 = vst.msk [vmem:[#allocation3 + $0x48] sm:$0xff] %vm1104, %v1027
      %1115 = vst.msk [vmem:[#allocation3 + $0x50] sm:$0xff] %vm1104, %v1029
      %1116 = vst.msk [vmem:[#allocation3 + $0x58] sm:$0xff] %vm1104, %v1031
      %1117 = vst.msk [vmem:[#allocation3 + $0x60] sm:$0xff] %vm1104, %v1033
      %1118 = vst.msk [vmem:[#allocation3 + $0x68] sm:$0xff] %vm1104, %v1035
      %1119 = vst.msk [vmem:[#allocation3 + $0x70] sm:$0xff] %vm1104, %v1037
      %1120 = vst.msk [vmem:[#allocation3 + $0x78] sm:$0xff] %vm1104, %v1039
      %1121 = vst.msk [vmem:[#allocation3 + $0x80] sm:$0xff] %vm1104, %v1041
      %1122 = vst.msk [vmem:[#allocation3 + $0x88] sm:$0xff] %vm1104, %v1043
      %1123 = vst.msk [vmem:[#allocation3 + $0x90] sm:$0xff] %vm1104, %v1045
      %1124 = vst.msk [vmem:[#allocation3 + $0x98] sm:$0xff] %vm1104, %v1047
      %1125 = vst.msk [vmem:[#allocation3 + $0xa0] sm:$0xff] %vm1104, %v1049
      %1126 = vst.msk [vmem:[#allocation3 + $0xa8] sm:$0xff] %vm1104, %v1051
      %1127 = vst.msk [vmem:[#allocation3 + $0xb0] sm:$0xff] %vm1104, %v1053
      %1128 = vst.msk [vmem:[#allocation3 + $0xb8] sm:$0xff] %vm1104, %v1055
      %1129 = vst.msk [vmem:[#allocation3 + $0xc0] sm:$0xff] %vm1104, %v1057
      %1130 = vst.msk [vmem:[#allocation3 + $0xc8] sm:$0xff] %vm1104, %v1059
      %1131 = vst.msk [vmem:[#allocation3 + $0xd0] sm:$0xff] %vm1104, %v1061
      %1132 = vst.msk [vmem:[#allocation3 + $0xd8] sm:$0xff] %vm1104, %v1063
      %1133 = vst.msk [vmem:[#allocation3 + $0xe0] sm:$0xff] %vm1104, %v1065
      %1134 = vst.msk [vmem:[#allocation3 + $0xe8] sm:$0xff] %vm1104, %v1067
      %1135 = vst.msk [vmem:[#allocation3 + $0xf0] sm:$0xff] %vm1104, %v1069
      %1136 = vst.msk [vmem:[#allocation3 + $0xf8] sm:$0xff] %vm1104, %v1071
      %v1138 = vrot.slane %v500, 1
      %v1139 = vrot.slane %v501, 1
      %v1140 = vsel %vm586, %v1138, %v1139
      %v1141 = vrot.slane %v502, 1
      %v1142 = vsel %vm586, %v1139, %v1141
      %1143 = vrot.lane.b32.xlu0 %v594, 16
      %v1144 = vpop.permute.xlu0 %1143
      %1145 = vrot.lane.b32.xlu0 %v596, 16
      %v1146 = vpop.permute.xlu0 %1145
      %1147 = vrot.lane.b32.xlu0 %v599, 16
      %v1148 = vpop.permute.xlu0 %1147
      %1149 = vrot.lane.b32.xlu0 %v601, 16
      %v1150 = vpop.permute.xlu0 %1149
      %1151 = vrot.lane.b32.xlu0 %v604, 16
      %v1152 = vpop.permute.xlu0 %1151
      %1153 = vrot.lane.b32.xlu0 %v606, 16
      %v1154 = vpop.permute.xlu0 %1153
      %1155 = vrot.lane.b32.xlu0 %v609, 16
      %v1156 = vpop.permute.xlu0 %1155
      %1157 = vrot.lane.b32.xlu0 %v611, 16
      %v1158 = vpop.permute.xlu0 %1157
      %1159 = vrot.lane.b32.xlu0 %v614, 16
      %v1160 = vpop.permute.xlu0 %1159
      %1161 = vrot.lane.b32.xlu0 %v616, 16
      %v1162 = vpop.permute.xlu0 %1161
      %1163 = vrot.lane.b32.xlu0 %v619, 16
      %v1164 = vpop.permute.xlu0 %1163
      %1165 = vrot.lane.b32.xlu0 %v621, 16
      %v1166 = vpop.permute.xlu0 %1165
      %1167 = vrot.lane.b32.xlu0 %v624, 16
      %v1168 = vpop.permute.xlu0 %1167
      %1169 = vrot.lane.b32.xlu0 %v626, 16
      %v1170 = vpop.permute.xlu0 %1169
      %1171 = vrot.lane.b32.xlu0 %v629, 16
      %v1172 = vpop.permute.xlu0 %1171
      %1173 = vrot.lane.b32.xlu0 %v631, 16
      %v1174 = vpop.permute.xlu0 %1173
      %1175 = vrot.lane.b32.xlu0 %v634, 16
      %v1176 = vpop.permute.xlu0 %1175
      %1177 = vrot.lane.b32.xlu0 %v636, 16
      %v1178 = vpop.permute.xlu0 %1177
      %1179 = vrot.lane.b32.xlu0 %v639, 16
      %v1180 = vpop.permute.xlu0 %1179
      %1181 = vrot.lane.b32.xlu0 %v641, 16
      %v1182 = vpop.permute.xlu0 %1181
      %1183 = vrot.lane.b32.xlu0 %v644, 16
      %v1184 = vpop.permute.xlu0 %1183
      %1185 = vrot.lane.b32.xlu0 %v646, 16
      %v1186 = vpop.permute.xlu0 %1185
      %1187 = vrot.lane.b32.xlu0 %v649, 16
      %v1188 = vpop.permute.xlu0 %1187
      %1189 = vrot.lane.b32.xlu0 %v651, 16
      %v1190 = vpop.permute.xlu0 %1189
      %1191 = vrot.lane.b32.xlu0 %v654, 16
      %v1192 = vpop.permute.xlu0 %1191
      %1193 = vrot.lane.b32.xlu0 %v656, 16
      %v1194 = vpop.permute.xlu0 %1193
      %1195 = vrot.lane.b32.xlu0 %v659, 16
      %v1196 = vpop.permute.xlu0 %1195
      %1197 = vrot.lane.b32.xlu0 %v661, 16
      %v1198 = vpop.permute.xlu0 %1197
      %1199 = vrot.lane.b32.xlu0 %v664, 16
      %v1200 = vpop.permute.xlu0 %1199
      %1201 = vrot.lane.b32.xlu0 %v666, 16
      %v1202 = vpop.permute.xlu0 %1201
      %1203 = vrot.lane.b32.xlu0 %v1140, 16
      %v1204 = vpop.permute.xlu0 %1203
      %1205 = vrot.lane.b32.xlu0 %v1142, 16
      %v1206 = vpop.permute.xlu0 %1205
      %vm1239 = vcmask 162944
      %1240 = vst.msk [vmem:[#allocation3] sm:$0xff] %vm1239, %v1144
      %1241 = vst.msk [vmem:[#allocation3 + $0x8] sm:$0xff] %vm1239, %v1146
      %1242 = vst.msk [vmem:[#allocation3 + $0x10] sm:$0xff] %vm1239, %v1148
      %1243 = vst.msk [vmem:[#allocation3 + $0x18] sm:$0xff] %vm1239, %v1150
      %1244 = vst.msk [vmem:[#allocation3 + $0x20] sm:$0xff] %vm1239, %v1152
      %1245 = vst.msk [vmem:[#allocation3 + $0x28] sm:$0xff] %vm1239, %v1154
      %1246 = vst.msk [vmem:[#allocation3 + $0x30] sm:$0xff] %vm1239, %v1156
      %1247 = vst.msk [vmem:[#allocation3 + $0x38] sm:$0xff] %vm1239, %v1158
      %1248 = vst.msk [vmem:[#allocation3 + $0x40] sm:$0xff] %vm1239, %v1160
      %1249 = vst.msk [vmem:[#allocation3 + $0x48] sm:$0xff] %vm1239, %v1162
      %1250 = vst.msk [vmem:[#allocation3 + $0x50] sm:$0xff] %vm1239, %v1164
      %1251 = vst.msk [vmem:[#allocation3 + $0x58] sm:$0xff] %vm1239, %v1166
      %1252 = vst.msk [vmem:[#allocation3 + $0x60] sm:$0xff] %vm1239, %v1168
      %1253 = vst.msk [vmem:[#allocation3 + $0x68] sm:$0xff] %vm1239, %v1170
      %1254 = vst.msk [vmem:[#allocation3 + $0x70] sm:$0xff] %vm1239, %v1172
      %1255 = vst.msk [vmem:[#allocation3 + $0x78] sm:$0xff] %vm1239, %v1174
      %1256 = vst.msk [vmem:[#allocation3 + $0x80] sm:$0xff] %vm1239, %v1176
      %1257 = vst.msk [vmem:[#allocation3 + $0x88] sm:$0xff] %vm1239, %v1178
      %1258 = vst.msk [vmem:[#allocation3 + $0x90] sm:$0xff] %vm1239, %v1180
      %1259 = vst.msk [vmem:[#allocation3 + $0x98] sm:$0xff] %vm1239, %v1182
      %1260 = vst.msk [vmem:[#allocation3 + $0xa0] sm:$0xff] %vm1239, %v1184
      %1261 = vst.msk [vmem:[#allocation3 + $0xa8] sm:$0xff] %vm1239, %v1186
      %1262 = vst.msk [vmem:[#allocation3 + $0xb0] sm:$0xff] %vm1239, %v1188
      %1263 = vst.msk [vmem:[#allocation3 + $0xb8] sm:$0xff] %vm1239, %v1190
      %1264 = vst.msk [vmem:[#allocation3 + $0xc0] sm:$0xff] %vm1239, %v1192
      %1265 = vst.msk [vmem:[#allocation3 + $0xc8] sm:$0xff] %vm1239, %v1194
      %1266 = vst.msk [vmem:[#allocation3 + $0xd0] sm:$0xff] %vm1239, %v1196
      %1267 = vst.msk [vmem:[#allocation3 + $0xd8] sm:$0xff] %vm1239, %v1198
      %1268 = vst.msk [vmem:[#allocation3 + $0xe0] sm:$0xff] %vm1239, %v1200
      %1269 = vst.msk [vmem:[#allocation3 + $0xe8] sm:$0xff] %vm1239, %v1202
      %1270 = vst.msk [vmem:[#allocation3 + $0xf0] sm:$0xff] %vm1239, %v1204
      %1271 = vst.msk [vmem:[#allocation3 + $0xf8] sm:$0xff] %vm1239, %v1206
      %v1272 = vrot.slane %v500, 2
      %v1273 = vrot.slane %v501, 2
      %v1274 = vsel %vm796, %v1272, %v1273
      %v1275 = vrot.slane %v502, 2
      %v1276 = vsel %vm796, %v1273, %v1275
      %1277 = vrot.lane.b32.xlu0 %v804, 20
      %v1278 = vpop.permute.xlu0 %1277
      %1279 = vrot.lane.b32.xlu0 %v806, 20
      %v1280 = vpop.permute.xlu0 %1279
      %1281 = vrot.lane.b32.xlu0 %v809, 20
      %v1282 = vpop.permute.xlu0 %1281
      %1283 = vrot.lane.b32.xlu0 %v811, 20
      %v1284 = vpop.permute.xlu0 %1283
      %1285 = vrot.lane.b32.xlu0 %v814, 20
      %v1286 = vpop.permute.xlu0 %1285
      %1287 = vrot.lane.b32.xlu0 %v816, 20
      %v1288 = vpop.permute.xlu0 %1287
      %1289 = vrot.lane.b32.xlu0 %v819, 20
      %v1290 = vpop.permute.xlu0 %1289
      %1291 = vrot.lane.b32.xlu0 %v821, 20
      %v1292 = vpop.permute.xlu0 %1291
      %1293 = vrot.lane.b32.xlu0 %v824, 20
      %v1294 = vpop.permute.xlu0 %1293
      %1295 = vrot.lane.b32.xlu0 %v826, 20
      %v1296 = vpop.permute.xlu0 %1295
      %1297 = vrot.lane.b32.xlu0 %v829, 20
      %v1298 = vpop.permute.xlu0 %1297
      %1299 = vrot.lane.b32.xlu0 %v831, 20
      %v1300 = vpop.permute.xlu0 %1299
      %1301 = vrot.lane.b32.xlu0 %v834, 20
      %v1302 = vpop.permute.xlu0 %1301
      %1303 = vrot.lane.b32.xlu0 %v836, 20
      %v1304 = vpop.permute.xlu0 %1303
      %1305 = vrot.lane.b32.xlu0 %v839, 20
      %v1306 = vpop.permute.xlu0 %1305
      %1307 = vrot.lane.b32.xlu0 %v841, 20
      %v1308 = vpop.permute.xlu0 %1307
      %1309 = vrot.lane.b32.xlu0 %v844, 20
      %v1310 = vpop.permute.xlu0 %1309
      %1311 = vrot.lane.b32.xlu0 %v846, 20
      %v1312 = vpop.permute.xlu0 %1311
      %1313 = vrot.lane.b32.xlu0 %v849, 20
      %v1314 = vpop.permute.xlu0 %1313
      %1315 = vrot.lane.b32.xlu0 %v851, 20
      %v1316 = vpop.permute.xlu0 %1315
      %1317 = vrot.lane.b32.xlu0 %v854, 20
      %v1318 = vpop.permute.xlu0 %1317
      %1319 = vrot.lane.b32.xlu0 %v856, 20
      %v1320 = vpop.permute.xlu0 %1319
      %1321 = vrot.lane.b32.xlu0 %v859, 20
      %v1322 = vpop.permute.xlu0 %1321
      %1323 = vrot.lane.b32.xlu0 %v861, 20
      %v1324 = vpop.permute.xlu0 %1323
      %1325 = vrot.lane.b32.xlu0 %v864, 20
      %v1326 = vpop.permute.xlu0 %1325
      %1327 = vrot.lane.b32.xlu0 %v866, 20
      %v1328 = vpop.permute.xlu0 %1327
      %1329 = vrot.lane.b32.xlu0 %v869, 20
      %v1330 = vpop.permute.xlu0 %1329
      %1331 = vrot.lane.b32.xlu0 %v871, 20
      %v1332 = vpop.permute.xlu0 %1331
      %1333 = vrot.lane.b32.xlu0 %v874, 20
      %v1334 = vpop.permute.xlu0 %1333
      %1335 = vrot.lane.b32.xlu0 %v876, 20
      %v1336 = vpop.permute.xlu0 %1335
      %1337 = vrot.lane.b32.xlu0 %v1274, 20
      %v1338 = vpop.permute.xlu0 %1337
      %1339 = vrot.lane.b32.xlu0 %v1276, 20
      %v1340 = vpop.permute.xlu0 %1339
      %vm1373 = vcmask 195744
      %1374 = vst.msk [vmem:[#allocation3] sm:$0xff] %vm1373, %v1278
      %1375 = vst.msk [vmem:[#allocation3 + $0x8] sm:$0xff] %vm1373, %v1280
      %1376 = vst.msk [vmem:[#allocation3 + $0x10] sm:$0xff] %vm1373, %v1282
      %1377 = vst.msk [vmem:[#allocation3 + $0x18] sm:$0xff] %vm1373, %v1284
      %1378 = vst.msk [vmem:[#allocation3 + $0x20] sm:$0xff] %vm1373, %v1286
      %1379 = vst.msk [vmem:[#allocation3 + $0x28] sm:$0xff] %vm1373, %v1288
      %1380 = vst.msk [vmem:[#allocation3 + $0x30] sm:$0xff] %vm1373, %v1290
      %1381 = vst.msk [vmem:[#allocation3 + $0x38] sm:$0xff] %vm1373, %v1292
      %1382 = vst.msk [vmem:[#allocation3 + $0x40] sm:$0xff] %vm1373, %v1294
      %1383 = vst.msk [vmem:[#allocation3 + $0x48] sm:$0xff] %vm1373, %v1296
      %1384 = vst.msk [vmem:[#allocation3 + $0x50] sm:$0xff] %vm1373, %v1298
      %1385 = vst.msk [vmem:[#allocation3 + $0x58] sm:$0xff] %vm1373, %v1300
      %1386 = vst.msk [vmem:[#allocation3 + $0x60] sm:$0xff] %vm1373, %v1302
      %1387 = vst.msk [vmem:[#allocation3 + $0x68] sm:$0xff] %vm1373, %v1304
      %1388 = vst.msk [vmem:[#allocation3 + $0x70] sm:$0xff] %vm1373, %v1306
      %1389 = vst.msk [vmem:[#allocation3 + $0x78] sm:$0xff] %vm1373, %v1308
      %1390 = vst.msk [vmem:[#allocation3 + $0x80] sm:$0xff] %vm1373, %v1310
      %1391 = vst.msk [vmem:[#allocation3 + $0x88] sm:$0xff] %vm1373, %v1312
      %1392 = vst.msk [vmem:[#allocation3 + $0x90] sm:$0xff] %vm1373, %v1314
      %1393 = vst.msk [vmem:[#allocation3 + $0x98] sm:$0xff] %vm1373, %v1316
      %1394 = vst.msk [vmem:[#allocation3 + $0xa0] sm:$0xff] %vm1373, %v1318
      %1395 = vst.msk [vmem:[#allocation3 + $0xa8] sm:$0xff] %vm1373, %v1320
      %1396 = vst.msk [vmem:[#allocation3 + $0xb0] sm:$0xff] %vm1373, %v1322
      %1397 = vst.msk [vmem:[#allocation3 + $0xb8] sm:$0xff] %vm1373, %v1324
      %1398 = vst.msk [vmem:[#allocation3 + $0xc0] sm:$0xff] %vm1373, %v1326
      %1399 = vst.msk [vmem:[#allocation3 + $0xc8] sm:$0xff] %vm1373, %v1328
      %1400 = vst.msk [vmem:[#allocation3 + $0xd0] sm:$0xff] %vm1373, %v1330
      %1401 = vst.msk [vmem:[#allocation3 + $0xd8] sm:$0xff] %vm1373, %v1332
      %1402 = vst.msk [vmem:[#allocation3 + $0xe0] sm:$0xff] %vm1373, %v1334
      %1403 = vst.msk [vmem:[#allocation3 + $0xe8] sm:$0xff] %vm1373, %v1336
      %1404 = vst.msk [vmem:[#allocation3 + $0xf0] sm:$0xff] %vm1373, %v1338
      %1405 = vst.msk [vmem:[#allocation3 + $0xf8] sm:$0xff] %vm1373, %v1340
      %1408 = vrot.lane.b32.xlu0 %v458, 24
      %v1409 = vpop.permute.xlu0 %1408
      %1410 = vrot.lane.b32.xlu0 %v459, 24
      %v1411 = vpop.permute.xlu0 %1410
      %1412 = vrot.lane.b32.xlu0 %v461, 24
      %v1413 = vpop.permute.xlu0 %1412
      %1414 = vrot.lane.b32.xlu0 %v462, 24
      %v1415 = vpop.permute.xlu0 %1414
      %1416 = vrot.lane.b32.xlu0 %v464, 24
      %v1417 = vpop.permute.xlu0 %1416
      %1418 = vrot.lane.b32.xlu0 %v465, 24
      %v1419 = vpop.permute.xlu0 %1418
      %1420 = vrot.lane.b32.xlu0 %v467, 24
      %v1421 = vpop.permute.xlu0 %1420
      %1422 = vrot.lane.b32.xlu0 %v468, 24
      %v1423 = vpop.permute.xlu0 %1422
      %1424 = vrot.lane.b32.xlu0 %v470, 24
      %v1425 = vpop.permute.xlu0 %1424
      %1426 = vrot.lane.b32.xlu0 %v471, 24
      %v1427 = vpop.permute.xlu0 %1426
      %1428 = vrot.lane.b32.xlu0 %v473, 24
      %v1429 = vpop.permute.xlu0 %1428
      %1430 = vrot.lane.b32.xlu0 %v474, 24
      %v1431 = vpop.permute.xlu0 %1430
      %1432 = vrot.lane.b32.xlu0 %v476, 24
      %v1433 = vpop.permute.xlu0 %1432
      %1434 = vrot.lane.b32.xlu0 %v477, 24
      %v1435 = vpop.permute.xlu0 %1434
      %1436 = vrot.lane.b32.xlu0 %v479, 24
      %v1437 = vpop.permute.xlu0 %1436
      %1438 = vrot.lane.b32.xlu0 %v480, 24
      %v1439 = vpop.permute.xlu0 %1438
      %1440 = vrot.lane.b32.xlu0 %v482, 24
      %v1441 = vpop.permute.xlu0 %1440
      %1442 = vrot.lane.b32.xlu0 %v483, 24
      %v1443 = vpop.permute.xlu0 %1442
      %1444 = vrot.lane.b32.xlu0 %v485, 24
      %v1445 = vpop.permute.xlu0 %1444
      %1446 = vrot.lane.b32.xlu0 %v486, 24
      %v1447 = vpop.permute.xlu0 %1446
      %1448 = vrot.lane.b32.xlu0 %v488, 24
      %v1449 = vpop.permute.xlu0 %1448
      %1450 = vrot.lane.b32.xlu0 %v489, 24
      %v1451 = vpop.permute.xlu0 %1450
      %1452 = vrot.lane.b32.xlu0 %v491, 24
      %v1453 = vpop.permute.xlu0 %1452
      %1454 = vrot.lane.b32.xlu0 %v492, 24
      %v1455 = vpop.permute.xlu0 %1454
      %1456 = vrot.lane.b32.xlu0 %v494, 24
      %v1457 = vpop.permute.xlu0 %1456
      %1458 = vrot.lane.b32.xlu0 %v495, 24
      %v1459 = vpop.permute.xlu0 %1458
      %1460 = vrot.lane.b32.xlu0 %v497, 24
      %v1461 = vpop.permute.xlu0 %1460
      %1462 = vrot.lane.b32.xlu0 %v498, 24
      %v1463 = vpop.permute.xlu0 %1462
      %1464 = vrot.lane.b32.xlu0 %v500, 24
      %v1465 = vpop.permute.xlu0 %1464
      %1466 = vrot.lane.b32.xlu0 %v501, 24
      %v1467 = vpop.permute.xlu0 %1466
      %1468 = vrot.lane.b32.xlu0 %v503, 24
      %v1469 = vpop.permute.xlu0 %1468
      %1470 = vrot.lane.b32.xlu0 %v504, 24
      %v1471 = vpop.permute.xlu0 %1470
      %vm1504 = vcmask 228544
      %1505 = vst.msk [vmem:[#allocation3] sm:$0xff] %vm1504, %v1409
      %1506 = vst.msk [vmem:[#allocation3 + $0x8] sm:$0xff] %vm1504, %v1411
      %1507 = vst.msk [vmem:[#allocation3 + $0x10] sm:$0xff] %vm1504, %v1413
      %1508 = vst.msk [vmem:[#allocation3 + $0x18] sm:$0xff] %vm1504, %v1415
      %1509 = vst.msk [vmem:[#allocation3 + $0x20] sm:$0xff] %vm1504, %v1417
      %1510 = vst.msk [vmem:[#allocation3 + $0x28] sm:$0xff] %vm1504, %v1419
      %1511 = vst.msk [vmem:[#allocation3 + $0x30] sm:$0xff] %vm1504, %v1421
      %1512 = vst.msk [vmem:[#allocation3 + $0x38] sm:$0xff] %vm1504, %v1423
      %1513 = vst.msk [vmem:[#allocation3 + $0x40] sm:$0xff] %vm1504, %v1425
      %1514 = vst.msk [vmem:[#allocation3 + $0x48] sm:$0xff] %vm1504, %v1427
      %1515 = vst.msk [vmem:[#allocation3 + $0x50] sm:$0xff] %vm1504, %v1429
      %1516 = vst.msk [vmem:[#allocation3 + $0x58] sm:$0xff] %vm1504, %v1431
      %1517 = vst.msk [vmem:[#allocation3 + $0x60] sm:$0xff] %vm1504, %v1433
      %1518 = vst.msk [vmem:[#allocation3 + $0x68] sm:$0xff] %vm1504, %v1435
      %1519 = vst.msk [vmem:[#allocation3 + $0x70] sm:$0xff] %vm1504, %v1437
      %1520 = vst.msk [vmem:[#allocation3 + $0x78] sm:$0xff] %vm1504, %v1439
      %1521 = vst.msk [vmem:[#allocation3 + $0x80] sm:$0xff] %vm1504, %v1441
      %1522 = vst.msk [vmem:[#allocation3 + $0x88] sm:$0xff] %vm1504, %v1443
      %1523 = vst.msk [vmem:[#allocation3 + $0x90] sm:$0xff] %vm1504, %v1445
      %1524 = vst.msk [vmem:[#allocation3 + $0x98] sm:$0xff] %vm1504, %v1447
      %1525 = vst.msk [vmem:[#allocation3 + $0xa0] sm:$0xff] %vm1504, %v1449
      %1526 = vst.msk [vmem:[#allocation3 + $0xa8] sm:$0xff] %vm1504, %v1451
      %1527 = vst.msk [vmem:[#allocation3 + $0xb0] sm:$0xff] %vm1504, %v1453
      %1528 = vst.msk [vmem:[#allocation3 + $0xb8] sm:$0xff] %vm1504, %v1455
      %1529 = vst.msk [vmem:[#allocation3 + $0xc0] sm:$0xff] %vm1504, %v1457
      %1530 = vst.msk [vmem:[#allocation3 + $0xc8] sm:$0xff] %vm1504, %v1459
      %1531 = vst.msk [vmem:[#allocation3 + $0xd0] sm:$0xff] %vm1504, %v1461
      %1532 = vst.msk [vmem:[#allocation3 + $0xd8] sm:$0xff] %vm1504, %v1463
      %1533 = vst.msk [vmem:[#allocation3 + $0xe0] sm:$0xff] %vm1504, %v1465
      %1534 = vst.msk [vmem:[#allocation3 + $0xe8] sm:$0xff] %vm1504, %v1467
      %1535 = vst.msk [vmem:[#allocation3 + $0xf0] sm:$0xff] %vm1504, %v1469
      %1536 = vst.msk [vmem:[#allocation3 + $0xf8] sm:$0xff] %vm1504, %v1471
      %v1538 = vrot.slane %v503, 1
      %v1539 = vrot.slane %v504, 1
      %v1540 = vsel %vm586, %v1538, %v1539
      %v1541 = vrot.slane %v505, 1
      %v1542 = vsel %vm586, %v1539, %v1541
      %1543 = vrot.lane.b32.xlu0 %v599, 28
      %v1544 = vpop.permute.xlu0 %1543
      %1545 = vrot.lane.b32.xlu0 %v601, 28
      %v1546 = vpop.permute.xlu0 %1545
      %1547 = vrot.lane.b32.xlu0 %v604, 28
      %v1548 = vpop.permute.xlu0 %1547
      %1549 = vrot.lane.b32.xlu0 %v606, 28
      %v1550 = vpop.permute.xlu0 %1549
      %1551 = vrot.lane.b32.xlu0 %v609, 28
      %v1552 = vpop.permute.xlu0 %1551
      %1553 = vrot.lane.b32.xlu0 %v611, 28
      %v1554 = vpop.permute.xlu0 %1553
      %1555 = vrot.lane.b32.xlu0 %v614, 28
      %v1556 = vpop.permute.xlu0 %1555
      %1557 = vrot.lane.b32.xlu0 %v616, 28
      %v1558 = vpop.permute.xlu0 %1557
      %1559 = vrot.lane.b32.xlu0 %v619, 28
      %v1560 = vpop.permute.xlu0 %1559
      %1561 = vrot.lane.b32.xlu0 %v621, 28
      %v1562 = vpop.permute.xlu0 %1561
      %1563 = vrot.lane.b32.xlu0 %v624, 28
      %v1564 = vpop.permute.xlu0 %1563
      %1565 = vrot.lane.b32.xlu0 %v626, 28
      %v1566 = vpop.permute.xlu0 %1565
      %1567 = vrot.lane.b32.xlu0 %v629, 28
      %v1568 = vpop.permute.xlu0 %1567
      %1569 = vrot.lane.b32.xlu0 %v631, 28
      %v1570 = vpop.permute.xlu0 %1569
      %1571 = vrot.lane.b32.xlu0 %v634, 28
      %v1572 = vpop.permute.xlu0 %1571
      %1573 = vrot.lane.b32.xlu0 %v636, 28
      %v1574 = vpop.permute.xlu0 %1573
      %1575 = vrot.lane.b32.xlu0 %v639, 28
      %v1576 = vpop.permute.xlu0 %1575
      %1577 = vrot.lane.b32.xlu0 %v641, 28
      %v1578 = vpop.permute.xlu0 %1577
      %1579 = vrot.lane.b32.xlu0 %v644, 28
      %v1580 = vpop.permute.xlu0 %1579
      %1581 = vrot.lane.b32.xlu0 %v646, 28
      %v1582 = vpop.permute.xlu0 %1581
      %1583 = vrot.lane.b32.xlu0 %v649, 28
      %v1584 = vpop.permute.xlu0 %1583
      %1585 = vrot.lane.b32.xlu0 %v651, 28
      %v1586 = vpop.permute.xlu0 %1585
      %1587 = vrot.lane.b32.xlu0 %v654, 28
      %v1588 = vpop.permute.xlu0 %1587
      %1589 = vrot.lane.b32.xlu0 %v656, 28
      %v1590 = vpop.permute.xlu0 %1589
      %1591 = vrot.lane.b32.xlu0 %v659, 28
      %v1592 = vpop.permute.xlu0 %1591
      %1593 = vrot.lane.b32.xlu0 %v661, 28
      %v1594 = vpop.permute.xlu0 %1593
      %1595 = vrot.lane.b32.xlu0 %v664, 28
      %v1596 = vpop.permute.xlu0 %1595
      %1597 = vrot.lane.b32.xlu0 %v666, 28
      %v1598 = vpop.permute.xlu0 %1597
      %1599 = vrot.lane.b32.xlu0 %v1140, 28
      %v1600 = vpop.permute.xlu0 %1599
      %1601 = vrot.lane.b32.xlu0 %v1142, 28
      %v1602 = vpop.permute.xlu0 %1601
      %1603 = vrot.lane.b32.xlu0 %v1540, 28
      %v1604 = vpop.permute.xlu0 %1603
      %1605 = vrot.lane.b32.xlu0 %v1542, 28
      %v1606 = vpop.permute.xlu0 %1605
      %vm1639 = vcmask 261344
      %1640 = vst.msk [vmem:[#allocation3] sm:$0xff] %vm1639, %v1544
      %1641 = vst.msk [vmem:[#allocation3 + $0x8] sm:$0xff] %vm1639, %v1546
      %1642 = vst.msk [vmem:[#allocation3 + $0x10] sm:$0xff] %vm1639, %v1548
      %1643 = vst.msk [vmem:[#allocation3 + $0x18] sm:$0xff] %vm1639, %v1550
      %1644 = vst.msk [vmem:[#allocation3 + $0x20] sm:$0xff] %vm1639, %v1552
      %1645 = vst.msk [vmem:[#allocation3 + $0x28] sm:$0xff] %vm1639, %v1554
      %1646 = vst.msk [vmem:[#allocation3 + $0x30] sm:$0xff] %vm1639, %v1556
      %1647 = vst.msk [vmem:[#allocation3 + $0x38] sm:$0xff] %vm1639, %v1558
      %1648 = vst.msk [vmem:[#allocation3 + $0x40] sm:$0xff] %vm1639, %v1560
      %1649 = vst.msk [vmem:[#allocation3 + $0x48] sm:$0xff] %vm1639, %v1562
      %1650 = vst.msk [vmem:[#allocation3 + $0x50] sm:$0xff] %vm1639, %v1564
      %1651 = vst.msk [vmem:[#allocation3 + $0x58] sm:$0xff] %vm1639, %v1566
      %1652 = vst.msk [vmem:[#allocation3 + $0x60] sm:$0xff] %vm1639, %v1568
      %1653 = vst.msk [vmem:[#allocation3 + $0x68] sm:$0xff] %vm1639, %v1570
      %1654 = vst.msk [vmem:[#allocation3 + $0x70] sm:$0xff] %vm1639, %v1572
      %1655 = vst.msk [vmem:[#allocation3 + $0x78] sm:$0xff] %vm1639, %v1574
      %1656 = vst.msk [vmem:[#allocation3 + $0x80] sm:$0xff] %vm1639, %v1576
      %1657 = vst.msk [vmem:[#allocation3 + $0x88] sm:$0xff] %vm1639, %v1578
      %1658 = vst.msk [vmem:[#allocation3 + $0x90] sm:$0xff] %vm1639, %v1580
      %1659 = vst.msk [vmem:[#allocation3 + $0x98] sm:$0xff] %vm1639, %v1582
      %1660 = vst.msk [vmem:[#allocation3 + $0xa0] sm:$0xff] %vm1639, %v1584
      %1661 = vst.msk [vmem:[#allocation3 + $0xa8] sm:$0xff] %vm1639, %v1586
      %1662 = vst.msk [vmem:[#allocation3 + $0xb0] sm:$0xff] %vm1639, %v1588
      %1663 = vst.msk [vmem:[#allocation3 + $0xb8] sm:$0xff] %vm1639, %v1590
      %1664 = vst.msk [vmem:[#allocation3 + $0xc0] sm:$0xff] %vm1639, %v1592
      %1665 = vst.msk [vmem:[#allocation3 + $0xc8] sm:$0xff] %vm1639, %v1594
      %1666 = vst.msk [vmem:[#allocation3 + $0xd0] sm:$0xff] %vm1639, %v1596
      %1667 = vst.msk [vmem:[#allocation3 + $0xd8] sm:$0xff] %vm1639, %v1598
      %1668 = vst.msk [vmem:[#allocation3 + $0xe0] sm:$0xff] %vm1639, %v1600
      %1669 = vst.msk [vmem:[#allocation3 + $0xe8] sm:$0xff] %vm1639, %v1602
      %1670 = vst.msk [vmem:[#allocation3 + $0xf0] sm:$0xff] %vm1639, %v1604
      %1671 = vst.msk [vmem:[#allocation3 + $0xf8] sm:$0xff] %vm1639, %v1606
      %v1672 = vrot.slane %v503, 2
      %v1673 = vrot.slane %v504, 2
      %v1674 = vsel %vm796, %v1672, %v1673
      %v1675 = vrot.slane %v505, 2
      %v1676 = vsel %vm796, %v1673, %v1675
      %1677 = vrot.lane.b32.xlu0 %v809, 32
      %v1678 = vpop.permute.xlu0 %1677
      %1679 = vrot.lane.b32.xlu0 %v811, 32
      %v1680 = vpop.permute.xlu0 %1679
      %1681 = vrot.lane.b32.xlu0 %v814, 32
      %v1682 = vpop.permute.xlu0 %1681
      %1683 = vrot.lane.b32.xlu0 %v816, 32
      %v1684 = vpop.permute.xlu0 %1683
      %1685 = vrot.lane.b32.xlu0 %v819, 32
      %v1686 = vpop.permute.xlu0 %1685
      %1687 = vrot.lane.b32.xlu0 %v821, 32
      %v1688 = vpop.permute.xlu0 %1687
      %1689 = vrot.lane.b32.xlu0 %v824, 32
      %v1690 = vpop.permute.xlu0 %1689
      %1691 = vrot.lane.b32.xlu0 %v826, 32
      %v1692 = vpop.permute.xlu0 %1691
      %1693 = vrot.lane.b32.xlu0 %v829, 32
      %v1694 = vpop.permute.xlu0 %1693
      %1695 = vrot.lane.b32.xlu0 %v831, 32
      %v1696 = vpop.permute.xlu0 %1695
      %1697 = vrot.lane.b32.xlu0 %v834, 32
      %v1698 = vpop.permute.xlu0 %1697
      %1699 = vrot.lane.b32.xlu0 %v836, 32
      %v1700 = vpop.permute.xlu0 %1699
      %1701 = vrot.lane.b32.xlu0 %v839, 32
      %v1702 = vpop.permute.xlu0 %1701
      %1703 = vrot.lane.b32.xlu0 %v841, 32
      %v1704 = vpop.permute.xlu0 %1703
      %1705 = vrot.lane.b32.xlu0 %v844, 32
      %v1706 = vpop.permute.xlu0 %1705
      %1707 = vrot.lane.b32.xlu0 %v846, 32
      %v1708 = vpop.permute.xlu0 %1707
      %1709 = vrot.lane.b32.xlu0 %v849, 32
      %v1710 = vpop.permute.xlu0 %1709
      %1711 = vrot.lane.b32.xlu0 %v851, 32
      %v1712 = vpop.permute.xlu0 %1711
      %1713 = vrot.lane.b32.xlu0 %v854, 32
      %v1714 = vpop.permute.xlu0 %1713
      %1715 = vrot.lane.b32.xlu0 %v856, 32
      %v1716 = vpop.permute.xlu0 %1715
      %1717 = vrot.lane.b32.xlu0 %v859, 32
      %v1718 = vpop.permute.xlu0 %1717
      %1719 = vrot.lane.b32.xlu0 %v861, 32
      %v1720 = vpop.permute.xlu0 %1719
      %1721 = vrot.lane.b32.xlu0 %v864, 32
      %v1722 = vpop.permute.xlu0 %1721
      %1723 = vrot.lane.b32.xlu0 %v866, 32
      %v1724 = vpop.permute.xlu0 %1723
      %1725 = vrot.lane.b32.xlu0 %v869, 32
      %v1726 = vpop.permute.xlu0 %1725
      %1727 = vrot.lane.b32.xlu0 %v871, 32
      %v1728 = vpop.permute.xlu0 %1727
      %1729 = vrot.lane.b32.xlu0 %v874, 32
      %v1730 = vpop.permute.xlu0 %1729
      %1731 = vrot.lane.b32.xlu0 %v876, 32
      %v1732 = vpop.permute.xlu0 %1731
      %1733 = vrot.lane.b32.xlu0 %v1274, 32
      %v1734 = vpop.permute.xlu0 %1733
      %1735 = vrot.lane.b32.xlu0 %v1276, 32
      %v1736 = vpop.permute.xlu0 %1735
      %1737 = vrot.lane.b32.xlu0 %v1674, 32
      %v1738 = vpop.permute.xlu0 %1737
      %1739 = vrot.lane.b32.xlu0 %v1676, 32
      %v1740 = vpop.permute.xlu0 %1739
      %vm1773 = vcmask 294144
      %1774 = vst.msk [vmem:[#allocation3] sm:$0xff] %vm1773, %v1678
      %1775 = vst.msk [vmem:[#allocation3 + $0x8] sm:$0xff] %vm1773, %v1680
      %1776 = vst.msk [vmem:[#allocation3 + $0x10] sm:$0xff] %vm1773, %v1682
      %1777 = vst.msk [vmem:[#allocation3 + $0x18] sm:$0xff] %vm1773, %v1684
      %1778 = vst.msk [vmem:[#allocation3 + $0x20] sm:$0xff] %vm1773, %v1686
      %1779 = vst.msk [vmem:[#allocation3 + $0x28] sm:$0xff] %vm1773, %v1688
      %1780 = vst.msk [vmem:[#allocation3 + $0x30] sm:$0xff] %vm1773, %v1690
      %1781 = vst.msk [vmem:[#allocation3 + $0x38] sm:$0xff] %vm1773, %v1692
      %1782 = vst.msk [vmem:[#allocation3 + $0x40] sm:$0xff] %vm1773, %v1694
      %1783 = vst.msk [vmem:[#allocation3 + $0x48] sm:$0xff] %vm1773, %v1696
      %1784 = vst.msk [vmem:[#allocation3 + $0x50] sm:$0xff] %vm1773, %v1698
      %1785 = vst.msk [vmem:[#allocation3 + $0x58] sm:$0xff] %vm1773, %v1700
      %1786 = vst.msk [vmem:[#allocation3 + $0x60] sm:$0xff] %vm1773, %v1702
      %1787 = vst.msk [vmem:[#allocation3 + $0x68] sm:$0xff] %vm1773, %v1704
      %1788 = vst.msk [vmem:[#allocation3 + $0x70] sm:$0xff] %vm1773, %v1706
      %1789 = vst.msk [vmem:[#allocation3 + $0x78] sm:$0xff] %vm1773, %v1708
      %1790 = vst.msk [vmem:[#allocation3 + $0x80] sm:$0xff] %vm1773, %v1710
      %1791 = vst.msk [vmem:[#allocation3 + $0x88] sm:$0xff] %vm1773, %v1712
      %1792 = vst.msk [vmem:[#allocation3 + $0x90] sm:$0xff] %vm1773, %v1714
      %1793 = vst.msk [vmem:[#allocation3 + $0x98] sm:$0xff] %vm1773, %v1716
      %1794 = vst.msk [vmem:[#allocation3 + $0xa0] sm:$0xff] %vm1773, %v1718
      %1795 = vst.msk [vmem:[#allocation3 + $0xa8] sm:$0xff] %vm1773, %v1720
      %1796 = vst.msk [vmem:[#allocation3 + $0xb0] sm:$0xff] %vm1773, %v1722
      %1797 = vst.msk [vmem:[#allocation3 + $0xb8] sm:$0xff] %vm1773, %v1724
      %1798 = vst.msk [vmem:[#allocation3 + $0xc0] sm:$0xff] %vm1773, %v1726
      %1799 = vst.msk [vmem:[#allocation3 + $0xc8] sm:$0xff] %vm1773, %v1728
      %1800 = vst.msk [vmem:[#allocation3 + $0xd0] sm:$0xff] %vm1773, %v1730
      %1801 = vst.msk [vmem:[#allocation3 + $0xd8] sm:$0xff] %vm1773, %v1732
      %1802 = vst.msk [vmem:[#allocation3 + $0xe0] sm:$0xff] %vm1773, %v1734
      %1803 = vst.msk [vmem:[#allocation3 + $0xe8] sm:$0xff] %vm1773, %v1736
      %1804 = vst.msk [vmem:[#allocation3 + $0xf0] sm:$0xff] %vm1773, %v1738
      %1805 = vst.msk [vmem:[#allocation3 + $0xf8] sm:$0xff] %vm1773, %v1740
      %v1806 = vld [vmem:[#allocation3] sm:$0xff]
      %v1807 = vld [vmem:[#allocation3 + $0x8] sm:$0xff]
      %v1808 = vld [vmem:[#allocation3 + $0x10] sm:$0xff]
      %v1809 = vld [vmem:[#allocation3 + $0x18] sm:$0xff]
      %v1810 = vld [vmem:[#allocation3 + $0x20] sm:$0xff]
      %v1811 = vld [vmem:[#allocation3 + $0x28] sm:$0xff]
      %v1812 = vld [vmem:[#allocation3 + $0x30] sm:$0xff]
      %v1813 = vld [vmem:[#allocation3 + $0x38] sm:$0xff]
      %v1814 = vld [vmem:[#allocation3 + $0x40] sm:$0xff]
      %v1815 = vld [vmem:[#allocation3 + $0x48] sm:$0xff]
      %v1816 = vld [vmem:[#allocation3 + $0x50] sm:$0xff]
      %v1817 = vld [vmem:[#allocation3 + $0x58] sm:$0xff]
      %v1818 = vld [vmem:[#allocation3 + $0x60] sm:$0xff]
      %v1819 = vld [vmem:[#allocation3 + $0x68] sm:$0xff]
      %v1820 = vld [vmem:[#allocation3 + $0x70] sm:$0xff]
      %v1821 = vld [vmem:[#allocation3 + $0x78] sm:$0xff]
      %v1822 = vld [vmem:[#allocation3 + $0x80] sm:$0xff]
      %v1823 = vld [vmem:[#allocation3 + $0x88] sm:$0xff]
      %v1824 = vld [vmem:[#allocation3 + $0x90] sm:$0xff]
      %v1825 = vld [vmem:[#allocation3 + $0x98] sm:$0xff]
      %v1826 = vld [vmem:[#allocation3 + $0xa0] sm:$0xff]
      %v1827 = vld [vmem:[#allocation3 + $0xa8] sm:$0xff]
      %v1828 = vld [vmem:[#allocation3 + $0xb0] sm:$0xff]
      %v1829 = vld [vmem:[#allocation3 + $0xb8] sm:$0xff]
      %v1830 = vld [vmem:[#allocation3 + $0xc0] sm:$0xff]
      %v1831 = vld [vmem:[#allocation3 + $0xc8] sm:$0xff]
      %v1832 = vld [vmem:[#allocation3 + $0xd0] sm:$0xff]
      %v1833 = vld [vmem:[#allocation3 + $0xd8] sm:$0xff]
      %v1834 = vld [vmem:[#allocation3 + $0xe0] sm:$0xff]
      %v1835 = vld [vmem:[#allocation3 + $0xe8] sm:$0xff]
      %v1836 = vld [vmem:[#allocation3 + $0xf0] sm:$0xff]
      %v1837 = vld [vmem:[#allocation3 + $0xf8] sm:$0xff]
      %v1838 = vld [vmem:[%s3] sm:$0xff]
      %v1839 = vld [vmem:[%s3 + $0x8] sm:$0xff]
      %v1840 = vld [vmem:[%s3 + $0x10] sm:$0xff]
      %v1841 = vld [vmem:[%s3 + $0x18] sm:$0xff]
      %v1842 = vld [vmem:[%s3 + $0x20] sm:$0xf]
      %v1843 = vld [vmem:[%s4] sm:$0x1]
      %v1845 = vlaneseq
      %v1846 = vshrl.u32 %v1845, 7
      %v1847 = vsub.s32 0, %v1846
      %v1848 = vrot.slane %v1843, %v1847
      %vm1850 = vcmask 293888
      %v1852 = vsel %vm1850, %v1806, 0
      %v1855 = vsel %vm1850, %v1807, 0
      %v1858 = vsel %vm1850, %v1808, 0
      %v1861 = vsel %vm1850, %v1809, 0
      %v1864 = vsel %vm1850, %v1810, 0
      %v1867 = vsel %vm1850, %v1811, 0
      %v1870 = vsel %vm1850, %v1812, 0
      %v1873 = vsel %vm1850, %v1813, 0
      %v1876 = vsel %vm1850, %v1814, 0
      %v1879 = vsel %vm1850, %v1815, 0
      %v1882 = vsel %vm1850, %v1816, 0
      %v1885 = vsel %vm1850, %v1817, 0
      %v1888 = vsel %vm1850, %v1818, 0
      %v1891 = vsel %vm1850, %v1819, 0
      %v1894 = vsel %vm1850, %v1820, 0
      %v1897 = vsel %vm1850, %v1821, 0
      %v1900 = vsel %vm1850, %v1822, 0
      %v1903 = vsel %vm1850, %v1823, 0
      %v1906 = vsel %vm1850, %v1824, 0
      %v1909 = vsel %vm1850, %v1825, 0
      %v1912 = vsel %vm1850, %v1826, 0
      %v1915 = vsel %vm1850, %v1827, 0
      %v1918 = vsel %vm1850, %v1828, 0
      %v1921 = vsel %vm1850, %v1829, 0
      %v1924 = vsel %vm1850, %v1830, 0
      %v1927 = vsel %vm1850, %v1831, 0
      %v1930 = vsel %vm1850, %v1832, 0
      %v1933 = vsel %vm1850, %v1833, 0
      %v1936 = vsel %vm1850, %v1834, 0
      %v1939 = vsel %vm1850, %v1835, 0
      %v1942 = vsel %vm1850, %v1836, 0
      %v1945 = vsel %vm1850, %v1837, 0
      %vm1947 = vcmask 1043456
      %v1949 = vsel %vm1947, %v1842, 0
      %1951 = vmatprep.subr.mxu0 0.0
      %1952 = vmatpush1.msra.mxu0 %v1838
      %1953 = vmatprep.subr.mxu0 0.0
      %1954 = vmatpush1.msra.mxu0 %v1839
      %1955 = vmatprep.subr.mxu0 0.0
      %1956 = vmatpush1.msra.mxu0 %v1840
      %1957 = vmatprep.subr.mxu0 0.0
      %1958 = vmatpush1.msra.mxu0 %v1841
      %1959 = vmatprep.subr.mxu0 0.0
      %1960 = vmatpush1.msra.mxu0 %v1949
      %1961 = vmatprep.subr.mxu0 0.0
      %1962 = vmatpush1.msra.mxu0 0.0
      %1963 = vmatprep.subr.mxu0 0.0
      %1964 = vmatpush1.msra.mxu0 0.0
      %1965 = vmatprep.subr.mxu0 0.0
      %1966 = vmatpush1.msra.mxu0 0.0
      %1967 = vmatprep.subr.mxu0 0.0
      %1968 = vmatpush1.msra.mxu0 0.0
      %1969 = vmatprep.subr.mxu0 0.0
      %1970 = vmatpush1.msra.mxu0 0.0
      %1971 = vmatprep.subr.mxu0 0.0
      %1972 = vmatpush1.msra.mxu0 0.0
      %1973 = vmatprep.subr.mxu0 0.0
      %1974 = vmatpush1.msra.mxu0 0.0
      %1975 = vmatprep.subr.mxu0 0.0
      %1976 = vmatpush1.msra.mxu0 0.0
      %1977 = vmatprep.subr.mxu0 0.0
      %1978 = vmatpush1.msra.mxu0 0.0
      %1979 = vmatprep.subr.mxu0 0.0
      %1980 = vmatpush1.msra.mxu0 0.0
      %1981 = vmatprep.subr.mxu0 0.0
      %1982 = vmatpush1.msra.mxu0 0.0
      %1983 = vmatprep.subr.mxu0 0.0
      %1984 = vmatpush1.msra.mxu0 0.0
      %1985 = vmatprep.subr.mxu0 0.0
      %1986 = vmatpush1.msra.mxu0 0.0
      %1987 = vmatprep.subr.mxu0 0.0
      %1988 = vmatpush1.msra.mxu0 0.0
      %1989 = vmatprep.subr.mxu0 0.0
      %1990 = vmatpush1.msra.mxu0 0.0
      %1991 = vmatprep.subr.mxu0 0.0
      %1992 = vmatpush1.msra.mxu0 0.0
      %1993 = vmatprep.subr.mxu0 0.0
      %1994 = vmatpush1.msra.mxu0 0.0
      %1995 = vmatprep.subr.mxu0 0.0
      %1996 = vmatpush1.msra.mxu0 0.0
      %1997 = vmatprep.subr.mxu0 0.0
      %1998 = vmatpush1.msra.mxu0 0.0
      %1999 = vmatprep.subr.mxu0 0.0
      %2000 = vmatpush1.msra.mxu0 0.0
      %2001 = vmatprep.subr.mxu0 0.0
      %2002 = vmatpush1.msra.mxu0 0.0
      %2003 = vmatprep.subr.mxu0 0.0
      %2004 = vmatpush1.msra.mxu0 0.0
      %2005 = vmatprep.subr.mxu0 0.0
      %2006 = vmatpush1.msra.mxu0 0.0
      %2007 = vmatprep.subr.mxu0 0.0
      %2008 = vmatpush1.msra.mxu0 0.0
      %2009 = vmatprep.subr.mxu0 0.0
      %2010 = vmatpush1.msra.mxu0 0.0
      %2011 = vmatprep.subr.mxu0 0.0
      %2012 = vmatpush1.msra.mxu0 0.0
      %2013 = vmatprep.subr.mxu0 0.0
      %2014 = vmatpush1.msra.mxu0 0.0
      %2015 = vmatprep.mubr.f32.mxu0 0.0
      %2016 = vmatmul.mubr.f32.gmra.mrb[0].mxu0 %v1852
      %v2017 = vpop.f32.mrb[0].mxu0
      %v2018 = vadd.f32 %v1848, %v2017
      %v2019 = vpop.f32.mrb[0].mxu0
      %2020 = vmatprep.mubr.f32.mxu0 0.0
      %2021 = vmatmul.mubr.f32.gmra.mrb[0].mxu0 %v1855
      %v2022 = vpop.f32.mrb[0].mxu0
      %v2023 = vadd.f32 %v1848, %v2022
      %v2024 = vpop.f32.mrb[0].mxu0
      %2025 = vmatprep.mubr.f32.mxu0 0.0
      %2026 = vmatmul.mubr.f32.gmra.mrb[0].mxu0 %v1858
      %v2027 = vpop.f32.mrb[0].mxu0
      %v2028 = vadd.f32 %v1848, %v2027
      %v2029 = vpop.f32.mrb[0].mxu0
      %2030 = vmatprep.mubr.f32.mxu0 0.0
      %2031 = vmatmul.mubr.f32.gmra.mrb[0].mxu0 %v1861
      %v2032 = vpop.f32.mrb[0].mxu0
      %v2033 = vadd.f32 %v1848, %v2032
      %v2034 = vpop.f32.mrb[0].mxu0
      %2035 = vmatprep.mubr.f32.mxu0 0.0
      %2036 = vmatmul.mubr.f32.gmra.mrb[0].mxu0 %v1864
      %v2037 = vpop.f32.mrb[0].mxu0
      %v2038 = vadd.f32 %v1848, %v2037
      %v2039 = vpop.f32.mrb[0].mxu0
      %2040 = vmatprep.mubr.f32.mxu0 0.0
      %2041 = vmatmul.mubr.f32.gmra.mrb[0].mxu0 %v1867
      %v2042 = vpop.f32.mrb[0].mxu0
      %v2043 = vadd.f32 %v1848, %v2042
      %v2044 = vpop.f32.mrb[0].mxu0
      %2045 = vmatprep.mubr.f32.mxu0 0.0
      %2046 = vmatmul.mubr.f32.gmra.mrb[0].mxu0 %v1870
      %v2047 = vpop.f32.mrb[0].mxu0
      %v2048 = vadd.f32 %v1848, %v2047
      %v2049 = vpop.f32.mrb[0].mxu0
      %2050 = vmatprep.mubr.f32.mxu0 0.0
      %2051 = vmatmul.mubr.f32.gmra.mrb[0].mxu0 %v1873
      %v2052 = vpop.f32.mrb[0].mxu0
      %v2053 = vadd.f32 %v1848, %v2052
      %v2054 = vpop.f32.mrb[0].mxu0
      %2055 = vmatprep.mubr.f32.mxu0 0.0
      %2056 = vmatmul.mubr.f32.gmra.mrb[0].mxu0 %v1876
      %v2057 = vpop.f32.mrb[0].mxu0
      %v2058 = vadd.f32 %v1848, %v2057
      %v2059 = vpop.f32.mrb[0].mxu0
      %2060 = vmatprep.mubr.f32.mxu0 0.0
      %2061 = vmatmul.mubr.f32.gmra.mrb[0].mxu0 %v1879
      %v2062 = vpop.f32.mrb[0].mxu0
      %v2063 = vadd.f32 %v1848, %v2062
      %v2064 = vpop.f32.mrb[0].mxu0
      %2065 = vmatprep.mubr.f32.mxu0 0.0
      %2066 = vmatmul.mubr.f32.gmra.mrb[0].mxu0 %v1882
      %v2067 = vpop.f32.mrb[0].mxu0
      %v2068 = vadd.f32 %v1848, %v2067
      %v2069 = vpop.f32.mrb[0].mxu0
      %2070 = vmatprep.mubr.f32.mxu0 0.0
      %2071 = vmatmul.mubr.f32.gmra.mrb[0].mxu0 %v1885
      %v2072 = vpop.f32.mrb[0].mxu0
      %v2073 = vadd.f32 %v1848, %v2072
      %v2074 = vpop.f32.mrb[0].mxu0
      %2075 = vmatprep.mubr.f32.mxu0 0.0
      %2076 = vmatmul.mubr.f32.gmra.mrb[0].mxu0 %v1888
      %v2077 = vpop.f32.mrb[0].mxu0
      %v2078 = vadd.f32 %v1848, %v2077
      %v2079 = vpop.f32.mrb[0].mxu0
      %2080 = vmatprep.mubr.f32.mxu0 0.0
      %2081 = vmatmul.mubr.f32.gmra.mrb[0].mxu0 %v1891
      %v2082 = vpop.f32.mrb[0].mxu0
      %v2083 = vadd.f32 %v1848, %v2082
      %v2084 = vpop.f32.mrb[0].mxu0
      %2085 = vmatprep.mubr.f32.mxu0 0.0
      %2086 = vmatmul.mubr.f32.gmra.mrb[0].mxu0 %v1894
      %v2087 = vpop.f32.mrb[0].mxu0
      %v2088 = vadd.f32 %v1848, %v2087
      %v2089 = vpop.f32.mrb[0].mxu0
      %2090 = vmatprep.mubr.f32.mxu0 0.0
      %2091 = vmatmul.mubr.f32.gmra.mrb[0].mxu0 %v1897
      %v2092 = vpop.f32.mrb[0].mxu0
      %v2093 = vadd.f32 %v1848, %v2092
      %v2094 = vpop.f32.mrb[0].mxu0
      %2095 = vmatprep.mubr.f32.mxu0 0.0
      %2096 = vmatmul.mubr.f32.gmra.mrb[0].mxu0 %v1900
      %v2097 = vpop.f32.mrb[0].mxu0
      %v2098 = vadd.f32 %v1848, %v2097
      %v2099 = vpop.f32.mrb[0].mxu0
      %2100 = vmatprep.mubr.f32.mxu0 0.0
      %2101 = vmatmul.mubr.f32.gmra.mrb[0].mxu0 %v1903
      %v2102 = vpop.f32.mrb[0].mxu0
      %v2103 = vadd.f32 %v1848, %v2102
      %v2104 = vpop.f32.mrb[0].mxu0
      %2105 = vmatprep.mubr.f32.mxu0 0.0
      %2106 = vmatmul.mubr.f32.gmra.mrb[0].mxu0 %v1906
      %v2107 = vpop.f32.mrb[0].mxu0
      %v2108 = vadd.f32 %v1848, %v2107
      %v2109 = vpop.f32.mrb[0].mxu0
      %2110 = vmatprep.mubr.f32.mxu0 0.0
      %2111 = vmatmul.mubr.f32.gmra.mrb[0].mxu0 %v1909
      %v2112 = vpop.f32.mrb[0].mxu0
      %v2113 = vadd.f32 %v1848, %v2112
      %v2114 = vpop.f32.mrb[0].mxu0
      %2115 = vmatprep.mubr.f32.mxu0 0.0
      %2116 = vmatmul.mubr.f32.gmra.mrb[0].mxu0 %v1912
      %v2117 = vpop.f32.mrb[0].mxu0
      %v2118 = vadd.f32 %v1848, %v2117
      %v2119 = vpop.f32.mrb[0].mxu0
      %2120 = vmatprep.mubr.f32.mxu0 0.0
      %2121 = vmatmul.mubr.f32.gmra.mrb[0].mxu0 %v1915
      %v2122 = vpop.f32.mrb[0].mxu0
      %v2123 = vadd.f32 %v1848, %v2122
      %v2124 = vpop.f32.mrb[0].mxu0
      %2125 = vmatprep.mubr.f32.mxu0 0.0
      %2126 = vmatmul.mubr.f32.gmra.mrb[0].mxu0 %v1918
      %v2127 = vpop.f32.mrb[0].mxu0
      %v2128 = vadd.f32 %v1848, %v2127
      %v2129 = vpop.f32.mrb[0].mxu0
      %2130 = vmatprep.mubr.f32.mxu0 0.0
      %2131 = vmatmul.mubr.f32.gmra.mrb[0].mxu0 %v1921
      %v2132 = vpop.f32.mrb[0].mxu0
      %v2133 = vadd.f32 %v1848, %v2132
      %v2134 = vpop.f32.mrb[0].mxu0
      %2135 = vmatprep.mubr.f32.mxu0 0.0
      %2136 = vmatmul.mubr.f32.gmra.mrb[0].mxu0 %v1924
      %v2137 = vpop.f32.mrb[0].mxu0
      %v2138 = vadd.f32 %v1848, %v2137
      %v2139 = vpop.f32.mrb[0].mxu0
      %2140 = vmatprep.mubr.f32.mxu0 0.0
      %2141 = vmatmul.mubr.f32.gmra.mrb[0].mxu0 %v1927
      %v2142 = vpop.f32.mrb[0].mxu0
      %v2143 = vadd.f32 %v1848, %v2142
      %v2144 = vpop.f32.mrb[0].mxu0
      %2145 = vmatprep.mubr.f32.mxu0 0.0
      %2146 = vmatmul.mubr.f32.gmra.mrb[0].mxu0 %v1930
      %v2147 = vpop.f32.mrb[0].mxu0
      %v2148 = vadd.f32 %v1848, %v2147
      %v2149 = vpop.f32.mrb[0].mxu0
      %2150 = vmatprep.mubr.f32.mxu0 0.0
      %2151 = vmatmul.mubr.f32.gmra.mrb[0].mxu0 %v1933
      %v2152 = vpop.f32.mrb[0].mxu0
      %v2153 = vadd.f32 %v1848, %v2152
      %v2154 = vpop.f32.mrb[0].mxu0
      %2155 = vmatprep.mubr.f32.mxu0 0.0
      %2156 = vmatmul.mubr.f32.gmra.mrb[0].mxu0 %v1936
      %v2157 = vpop.f32.mrb[0].mxu0
      %v2158 = vadd.f32 %v1848, %v2157
      %v2159 = vpop.f32.mrb[0].mxu0
      %2160 = vmatprep.mubr.f32.mxu0 0.0
      %2161 = vmatmul.mubr.f32.gmra.mrb[0].mxu0 %v1939
      %v2162 = vpop.f32.mrb[0].mxu0
      %v2163 = vadd.f32 %v1848, %v2162
      %v2164 = vpop.f32.mrb[0].mxu0
      %2165 = vmatprep.mubr.f32.mxu0 0.0
      %2166 = vmatmul.mubr.f32.gmra.mrb[0].mxu0 %v1942
      %v2167 = vpop.f32.mrb[0].mxu0
      %v2168 = vadd.f32 %v1848, %v2167
      %v2169 = vpop.f32.mrb[0].mxu0
      %2170 = vmatprep.mubr.f32.mxu0 0.0
      %2171 = vmatmul.mubr.f32.gmra.mrb[0].mxu0 %v1945
      %v2172 = vpop.f32.mrb[0].mxu0
      %v2173 = vadd.f32 %v1848, %v2172
      %v2174 = vpop.f32.mrb[0].mxu0
      %2175 = vdwg.mxu0
      %v2176 = vmax.f32 %v2018, 0.0
      %v2177 = vmax.f32 %v2023, 0.0
      %v2178 = vmax.f32 %v2028, 0.0
      %v2179 = vmax.f32 %v2033, 0.0
      %v2180 = vmax.f32 %v2038, 0.0
      %v2181 = vmax.f32 %v2043, 0.0
      %v2182 = vmax.f32 %v2048, 0.0
      %v2183 = vmax.f32 %v2053, 0.0
      %v2184 = vmax.f32 %v2058, 0.0
      %v2185 = vmax.f32 %v2063, 0.0
      %v2186 = vmax.f32 %v2068, 0.0
      %v2187 = vmax.f32 %v2073, 0.0
      %v2188 = vmax.f32 %v2078, 0.0
      %v2189 = vmax.f32 %v2083, 0.0
      %v2190 = vmax.f32 %v2088, 0.0
      %v2191 = vmax.f32 %v2093, 0.0
      %v2192 = vmax.f32 %v2098, 0.0
      %v2193 = vmax.f32 %v2103, 0.0
      %v2194 = vmax.f32 %v2108, 0.0
      %v2195 = vmax.f32 %v2113, 0.0
      %v2196 = vmax.f32 %v2118, 0.0
      %v2197 = vmax.f32 %v2123, 0.0
      %v2198 = vmax.f32 %v2128, 0.0
      %v2199 = vmax.f32 %v2133, 0.0
      %v2200 = vmax.f32 %v2138, 0.0
      %v2201 = vmax.f32 %v2143, 0.0
      %v2202 = vmax.f32 %v2148, 0.0
      %v2203 = vmax.f32 %v2153, 0.0
      %v2204 = vmax.f32 %v2158, 0.0
      %v2205 = vmax.f32 %v2163, 0.0
      %v2206 = vmax.f32 %v2168, 0.0
      %v2207 = vmax.f32 %v2173, 0.0
      %vm2208 = vcmask 64512
      %v2209 = vsel %vm2208, %v2176, 0.0
      %v2210 = vsel %vm2208, %v2177, 0.0
      %v2211 = vadd.f32 %v2209, %v2210
      %v2212 = vsel %vm2208, %v2178, 0.0
      %v2213 = vadd.f32 %v2211, %v2212
      %v2214 = vsel %vm2208, %v2179, 0.0
      %v2215 = vadd.f32 %v2213, %v2214
      %v2216 = vsel %vm2208, %v2180, 0.0
      %v2217 = vadd.f32 %v2215, %v2216
      %v2218 = vsel %vm2208, %v2181, 0.0
      %v2219 = vadd.f32 %v2217, %v2218
      %v2220 = vsel %vm2208, %v2182, 0.0
      %v2221 = vadd.f32 %v2219, %v2220
      %v2222 = vsel %vm2208, %v2183, 0.0
      %v2223 = vadd.f32 %v2221, %v2222
      %v2224 = vsel %vm2208, %v2184, 0.0
      %v2225 = vadd.f32 %v2223, %v2224
      %v2226 = vsel %vm2208, %v2185, 0.0
      %v2227 = vadd.f32 %v2225, %v2226
      %v2228 = vsel %vm2208, %v2186, 0.0
      %v2229 = vadd.f32 %v2227, %v2228
      %v2230 = vsel %vm2208, %v2187, 0.0
      %v2231 = vadd.f32 %v2229, %v2230
      %v2232 = vsel %vm2208, %v2188, 0.0
      %v2233 = vadd.f32 %v2231, %v2232
      %v2234 = vsel %vm2208, %v2189, 0.0
      %v2235 = vadd.f32 %v2233, %v2234
      %v2236 = vsel %vm2208, %v2190, 0.0
      %v2237 = vadd.f32 %v2235, %v2236
      %v2238 = vsel %vm2208, %v2191, 0.0
      %v2239 = vadd.f32 %v2237, %v2238
      %v2240 = vsel %vm2208, %v2192, 0.0
      %v2241 = vadd.f32 %v2239, %v2240
      %v2242 = vsel %vm2208, %v2193, 0.0
      %v2243 = vadd.f32 %v2241, %v2242
      %v2244 = vsel %vm2208, %v2194, 0.0
      %v2245 = vadd.f32 %v2243, %v2244
      %v2246 = vsel %vm2208, %v2195, 0.0
      %v2247 = vadd.f32 %v2245, %v2246
      %v2248 = vsel %vm2208, %v2196, 0.0
      %v2249 = vadd.f32 %v2247, %v2248
      %v2250 = vsel %vm2208, %v2197, 0.0
      %v2251 = vadd.f32 %v2249, %v2250
      %v2252 = vsel %vm2208, %v2198, 0.0
      %v2253 = vadd.f32 %v2251, %v2252
      %v2254 = vsel %vm2208, %v2199, 0.0
      %v2255 = vadd.f32 %v2253, %v2254
      %v2256 = vsel %vm2208, %v2200, 0.0
      %v2257 = vadd.f32 %v2255, %v2256
      %v2258 = vsel %vm2208, %v2201, 0.0
      %v2259 = vadd.f32 %v2257, %v2258
      %v2260 = vsel %vm2208, %v2202, 0.0
      %v2261 = vadd.f32 %v2259, %v2260
      %v2262 = vsel %vm2208, %v2203, 0.0
      %v2263 = vadd.f32 %v2261, %v2262
      %v2264 = vsel %vm2208, %v2204, 0.0
      %v2265 = vadd.f32 %v2263, %v2264
      %v2266 = vsel %vm2208, %v2205, 0.0
      %v2267 = vadd.f32 %v2265, %v2266
      %v2268 = vsel %vm2208, %v2206, 0.0
      %v2269 = vadd.f32 %v2267, %v2268
      %v2270 = vsel %vm2208, %v2207, 0.0
      %v2271 = vadd.f32 %v2269, %v2270
      %v2272 = vrot.slane %v2271, 4
      %v2273 = vadd.f32 %v2271, %v2272
      %v2274 = vrot.slane %v2273, 2
      %v2275 = vadd.f32 %v2273, %v2274
      %v2276 = vrot.slane %v2275, 1
      %v2277 = vadd.f32 %v2275, %v2276
      %vm2278 = vcmask 57344
      %2279 = vst.msk [vmem:[%s262] sm:$0x1] %vm2278, %v2277
      %v2280 = vmul.f32 %v2176, %v2176
      %v2281 = vmul.f32 %v2177, %v2177
      %v2282 = vmul.f32 %v2178, %v2178
      %v2283 = vmul.f32 %v2179, %v2179
      %v2284 = vmul.f32 %v2180, %v2180
      %v2285 = vmul.f32 %v2181, %v2181
      %v2286 = vmul.f32 %v2182, %v2182
      %v2287 = vmul.f32 %v2183, %v2183
      %v2288 = vmul.f32 %v2184, %v2184
      %v2289 = vmul.f32 %v2185, %v2185
      %v2290 = vmul.f32 %v2186, %v2186
      %v2291 = vmul.f32 %v2187, %v2187
      %v2292 = vmul.f32 %v2188, %v2188
      %v2293 = vmul.f32 %v2189, %v2189
      %v2294 = vmul.f32 %v2190, %v2190
      %v2295 = vmul.f32 %v2191, %v2191
      %v2296 = vmul.f32 %v2192, %v2192
      %v2297 = vmul.f32 %v2193, %v2193
      %v2298 = vmul.f32 %v2194, %v2194
      %v2299 = vmul.f32 %v2195, %v2195
      %v2300 = vmul.f32 %v2196, %v2196
      %v2301 = vmul.f32 %v2197, %v2197
      %v2302 = vmul.f32 %v2198, %v2198
      %v2303 = vmul.f32 %v2199, %v2199
      %v2304 = vmul.f32 %v2200, %v2200
      %v2305 = vmul.f32 %v2201, %v2201
      %v2306 = vmul.f32 %v2202, %v2202
      %v2307 = vmul.f32 %v2203, %v2203
      %v2308 = vmul.f32 %v2204, %v2204
      %v2309 = vmul.f32 %v2205, %v2205
      %v2310 = vmul.f32 %v2206, %v2206
      %v2311 = vmul.f32 %v2207, %v2207
      %v2312 = vsel %vm2208, %v2280, 0.0
      %v2313 = vsel %vm2208, %v2281, 0.0
      %v2314 = vadd.f32 %v2312, %v2313
      %v2315 = vsel %vm2208, %v2282, 0.0
      %v2316 = vadd.f32 %v2314, %v2315
      %v2317 = vsel %vm2208, %v2283, 0.0
      %v2318 = vadd.f32 %v2316, %v2317
      %v2319 = vsel %vm2208, %v2284, 0.0
      %v2320 = vadd.f32 %v2318, %v2319
      %v2321 = vsel %vm2208, %v2285, 0.0
      %v2322 = vadd.f32 %v2320, %v2321
      %v2323 = vsel %vm2208, %v2286, 0.0
      %v2324 = vadd.f32 %v2322, %v2323
      %v2325 = vsel %vm2208, %v2287, 0.0
      %v2326 = vadd.f32 %v2324, %v2325
      %v2327 = vsel %vm2208, %v2288, 0.0
      %v2328 = vadd.f32 %v2326, %v2327
      %v2329 = vsel %vm2208, %v2289, 0.0
      %v2330 = vadd.f32 %v2328, %v2329
      %v2331 = vsel %vm2208, %v2290, 0.0
      %v2332 = vadd.f32 %v2330, %v2331
      %v2333 = vsel %vm2208, %v2291, 0.0
      %v2334 = vadd.f32 %v2332, %v2333
      %v2335 = vsel %vm2208, %v2292, 0.0
      %v2336 = vadd.f32 %v2334, %v2335
      %v2337 = vsel %vm2208, %v2293, 0.0
      %v2338 = vadd.f32 %v2336, %v2337
      %v2339 = vsel %vm2208, %v2294, 0.0
      %v2340 = vadd.f32 %v2338, %v2339
      %v2341 = vsel %vm2208, %v2295, 0.0
      %v2342 = vadd.f32 %v2340, %v2341
      %v2343 = vsel %vm2208, %v2296, 0.0
      %v2344 = vadd.f32 %v2342, %v2343
      %v2345 = vsel %vm2208, %v2297, 0.0
      %v2346 = vadd.f32 %v2344, %v2345
      %v2347 = vsel %vm2208, %v2298, 0.0
      %v2348 = vadd.f32 %v2346, %v2347
      %v2349 = vsel %vm2208, %v2299, 0.0
      %v2350 = vadd.f32 %v2348, %v2349
      %v2351 = vsel %vm2208, %v2300, 0.0
      %v2352 = vadd.f32 %v2350, %v2351
      %v2353 = vsel %vm2208, %v2301, 0.0
      %v2354 = vadd.f32 %v2352, %v2353
      %v2355 = vsel %vm2208, %v2302, 0.0
      %v2356 = vadd.f32 %v2354, %v2355
      %v2357 = vsel %vm2208, %v2303, 0.0
      %v2358 = vadd.f32 %v2356, %v2357
      %v2359 = vsel %vm2208, %v2304, 0.0
      %v2360 = vadd.f32 %v2358, %v2359
      %v2361 = vsel %vm2208, %v2305, 0.0
      %v2362 = vadd.f32 %v2360, %v2361
      %v2363 = vsel %vm2208, %v2306, 0.0
      %v2364 = vadd.f32 %v2362, %v2363
      %v2365 = vsel %vm2208, %v2307, 0.0
      %v2366 = vadd.f32 %v2364, %v2365
      %v2367 = vsel %vm2208, %v2308, 0.0
      %v2368 = vadd.f32 %v2366, %v2367
      %v2369 = vsel %vm2208, %v2309, 0.0
      %v2370 = vadd.f32 %v2368, %v2369
      %v2371 = vsel %vm2208, %v2310, 0.0
      %v2372 = vadd.f32 %v2370, %v2371
      %v2373 = vsel %vm2208, %v2311, 0.0
      %v2374 = vadd.f32 %v2372, %v2373
      %v2375 = vrot.slane %v2374, 4
      %v2376 = vadd.f32 %v2374, %v2375
      %v2377 = vrot.slane %v2376, 2
      %v2378 = vadd.f32 %v2376, %v2377
      %v2379 = vrot.slane %v2378, 1
      %v2380 = vadd.f32 %v2378, %v2379
      %2381 = vst.msk [vmem:[%s262 + $0x1] sm:$0x1] %vm2278, %v2380
      %2382 = vst.msk [vmem:[%s258] sm:$0xff] %vm2208, %v2176
      %2383 = vst.msk [vmem:[%s258 + $0x8] sm:$0xff] %vm2208, %v2177
      %2384 = vst.msk [vmem:[%s258 + $0x10] sm:$0xff] %vm2208, %v2178
      %2385 = vst.msk [vmem:[%s258 + $0x18] sm:$0xff] %vm2208, %v2179
      %2386 = vst.msk [vmem:[%s258 + $0x20] sm:$0xff] %vm2208, %v2180
      %2387 = vst.msk [vmem:[%s258 + $0x28] sm:$0xff] %vm2208, %v2181
      %2388 = vst.msk [vmem:[%s258 + $0x30] sm:$0xff] %vm2208, %v2182
      %2389 = vst.msk [vmem:[%s258 + $0x38] sm:$0xff] %vm2208, %v2183
      %2390 = vst.msk [vmem:[%s258 + $0x40] sm:$0xff] %vm2208, %v2184
      %2391 = vst.msk [vmem:[%s258 + $0x48] sm:$0xff] %vm2208, %v2185
      %2392 = vst.msk [vmem:[%s258 + $0x50] sm:$0xff] %vm2208, %v2186
      %2393 = vst.msk [vmem:[%s258 + $0x58] sm:$0xff] %vm2208, %v2187
      %2394 = vst.msk [vmem:[%s258 + $0x60] sm:$0xff] %vm2208, %v2188
      %2395 = vst.msk [vmem:[%s258 + $0x68] sm:$0xff] %vm2208, %v2189
      %2396 = vst.msk [vmem:[%s258 + $0x70] sm:$0xff] %vm2208, %v2190
      %2397 = vst.msk [vmem:[%s258 + $0x78] sm:$0xff] %vm2208, %v2191
      %2398 = vst.msk [vmem:[%s258 + $0x80] sm:$0xff] %vm2208, %v2192
      %2399 = vst.msk [vmem:[%s258 + $0x88] sm:$0xff] %vm2208, %v2193
      %2400 = vst.msk [vmem:[%s258 + $0x90] sm:$0xff] %vm2208, %v2194
      %2401 = vst.msk [vmem:[%s258 + $0x98] sm:$0xff] %vm2208, %v2195
      %2402 = vst.msk [vmem:[%s258 + $0xa0] sm:$0xff] %vm2208, %v2196
      %2403 = vst.msk [vmem:[%s258 + $0xa8] sm:$0xff] %vm2208, %v2197
      %2404 = vst.msk [vmem:[%s258 + $0xb0] sm:$0xff] %vm2208, %v2198
      %2405 = vst.msk [vmem:[%s258 + $0xb8] sm:$0xff] %vm2208, %v2199
      %2406 = vst.msk [vmem:[%s258 + $0xc0] sm:$0xff] %vm2208, %v2200
      %2407 = vst.msk [vmem:[%s258 + $0xc8] sm:$0xff] %vm2208, %v2201
      %2408 = vst.msk [vmem:[%s258 + $0xd0] sm:$0xff] %vm2208, %v2202
      %2409 = vst.msk [vmem:[%s258 + $0xd8] sm:$0xff] %vm2208, %v2203
      %2410 = vst.msk [vmem:[%s258 + $0xe0] sm:$0xff] %vm2208, %v2204
      %2411 = vst.msk [vmem:[%s258 + $0xe8] sm:$0xff] %vm2208, %v2205
      %2412 = vst.msk [vmem:[%s258 + $0xf0] sm:$0xff] %vm2208, %v2206
      %2413 = vst.msk [vmem:[%s258 + $0xf8] sm:$0xff] %vm2208, %v2207
      %p2414 = scmp.lt.s32.totalorder %s18, 1
      %s2415 = scalar_select %p2414, %s18, 1
      %s2416 = smul.addr %s2415, 32
      %s2417 = smul.addr %s2416, 8
      %s2418 = scalar_lea.vmem %s5, %s2417
      %p2419 = scmp.lt.s32.totalorder %s18, 1
      %s2420 = scalar_select %p2419, %s18, 1
      %s2421 = smul.addr %s2420, 2
      %s2422 = scalar_lea.vmem %s6, %s2421
      // Predicated region
      $region41: #{unet_conv_block.3} parent=39 // pred_check
        %p2423 = pneg %p146
      $region42: #{unet_conv_block.3} parent=39 // pred_check_branch
        %2425 = sbr.rel (%p2423) target = $region44
      $region43: #{unet_conv_block.3} parent=39 // pred_region
        _
      $region44: #{unet_conv_block.3} parent=39 // pred_fallthru
        _
      // Predicated region
      $region45: #{unet_conv_block.3} parent=39 // pred_check
        %p2426 = pneg %p172
      $region46: #{unet_conv_block.3} parent=39 // pred_check_branch
        %2428 = sbr.rel (%p2426) target = $region48
      $region47: #{unet_conv_block.3} parent=39 // pred_region
        _
      $region48: #{unet_conv_block.3} parent=39 // pred_fallthru
        _
    $region40: #{unet_conv_block.3} parent=5 // pred_fallthru
      _
    %p2429 = scmp.le.s32.totalorder 2, %s13
    // Predicated region
    $region49: #{unet_conv_block.3} parent=5 // pred_check
      %p2430 = pneg %p2429
    $region50: #{unet_conv_block.3} parent=5 // pred_check_branch
      %2432 = sbr.rel (%p2430) target = $region52
    $region51: #{unet_conv_block.3} parent=5 // pred_region
      %s2433 = ssub.s32 %s13, 2
      // Predicated region
      $region53: #{unet_conv_block.3} parent=51 // pred_check
        %p2434 = pneg %p152
      $region54: #{unet_conv_block.3} parent=51 // pred_check_branch
        %2436 = sbr.rel (%p2434) target = $region56
      $region55: #{unet_conv_block.3} parent=51 // pred_region
        %p2437 = scmp.lt.s32.totalorder %s19, 1
        %s2438 = scalar_select %p2437, %s19, 1
        %s2439 = smul.addr %s2438, 32
        %s2440 = smul.addr %s2439, 8
        %s2441 = scalar_lea.vmem %s5, %s2440
      $region56: #{unet_conv_block.3} parent=51 // pred_fallthru
        _
      // Predicated region
      $region57: #{unet_conv_block.3} parent=51 // pred_check
        %p2442 = pneg %p178
      $region58: #{unet_conv_block.3} parent=51 // pred_check_branch
        %2444 = sbr.rel (%p2442) target = $region60
      $region59: #{unet_conv_block.3} parent=51 // pred_region
        %p2445 = scmp.lt.s32.totalorder %s19, 1
        %s2446 = scalar_select %p2445, %s19, 1
        %s2447 = smul.addr %s2446, 2
        %s2448 = scalar_lea.vmem %s6, %s2447
      $region60: #{unet_conv_block.3} parent=51 // pred_fallthru
        _
    $region52: #{unet_conv_block.3} parent=5 // pred_fallthru
      _
  $region6: #{unet_conv_block.3} parent=0 // loop_footer
    %s17 = sadd.s32 1, %s13
  $region7: #{unet_conv_block.3} parent=0 // loop_footer_branch
    %12 = sbr.rel target = $region3
  $region8: #{unet_conv_block.3} parent=0 // loop_exit
    _

// kernel: unet_conv_block.4
$region0: #{unet_conv_block.4}
  #allocation0 [shape = 'u32[]', space=smem, size = 0x4, offset = 0x4, fixed_abs, tag = 'smem constant byte address 0x4 - core index']
  #allocation1 [shape = 'u32[144,128]{1,0:T(1,128)}', space=vmem, size = 0x12000, scoped, tag = 'internal scratch']
  #allocation2 [shape = 'f32[1,18,18,8]{3,2,1,0:T(8,128)}', space=vmem, size = 0x36000, scoped, tag = 'scratch operand']
  #allocation3 [shape = 'f32[256,72]{1,0:T(8,128)}', space=vmem, size = 0x20000, scoped, tag = 'scratch operand']
  %s0 = inlined_call_operand.vmem [shape: f32[2,16,16,8], index: 0, kind: input, shape index: {}]
  %s1 = inlined_call_operand.vmem [shape: f32[1,8], index: 1, kind: input, shape index: {}]
  %s2 = inlined_call_operand.vmem [shape: f32[1,8], index: 2, kind: input, shape index: {}]
  %s3 = inlined_call_operand.vmem [shape: f32[72,8], index: 3, kind: input, shape index: {}]
  %s4 = inlined_call_operand.vmem [shape: f32[1,8], index: 4, kind: input, shape index: {}]
  %s5 = inlined_call_operand.vmem [shape: f32[2,16,16,8], index: 5, kind: output, shape index: {0}]
  %s6 = inlined_call_operand.vmem [shape: f32[2,2,8], index: 6, kind: output, shape index: {1}]
  %7 = xla_tuple %s5, %s6
  %s8 = sld [smem:[#allocation0]]
  $region61: #{unet_conv_block.4} parent=0
    _
  %s10 = ssub.s32 1, %s8
  %s11 = scalar_select 0, %s10, %s8
  loop: start=0, step=1, limit=4
  $region2: #{unet_conv_block.4} parent=0 // loop_pre_header
    _
  $region3: #{unet_conv_block.4} parent=0 // loop_header
    %s13 = sphi 0, %s17
    %p14 = scmp.ge.s32.totalorder %s13, 4
    %s23 = sphi 0, %s25
    %s26 = sphi 0, %s23
    %s27 = sphi 0, %s26
    %s43 = sphi 0, %s27
    %s47 = sphi 0, %s47
    %s49 = sphi 0, %s47
    %s50 = sphi 0, %s49
    %s64 = sphi 0, %s50
    %s68 = sphi 0, %s68
    %s70 = sphi 0, %s68
    %s71 = sphi 0, %s70
    %s85 = sphi 0, %s71
    %s89 = sphi 0, %s89
    %s91 = sphi 0, %s89
    %s92 = sphi 0, %s91
    %s106 = sphi 0, %s92
    %s110 = sphi 0, %s110
    %s112 = sphi 0, %s110
    %s113 = sphi 0, %s112
    %s127 = sphi 0, %s113
    %s133 = sphi 0, %s135
    %s136 = sphi 0, %s133
    %s137 = sphi 0, %s136
    %s153 = sphi 0, %s137
    %s159 = sphi 0, %s161
    %s162 = sphi 0, %s159
    %s163 = sphi 0, %s162
    %s179 = sphi 0, %s163
  $region4: #{unet_conv_block.4} parent=0 // loop_header_branch
    %16 = sbr.rel (%p14) target = $region8
  $region5: #{unet_conv_block.4} parent=0 // loop_body
    %s18 = ssub.s32 %s13, 1
    %s19 = ssub.s32 %s13, 2
    %s20 = sadd.s32 %s13, 1
    %s21 = ssub.s32 %s13, %s20
    %p22 = scmp.eq.s32.totalorder %s21, 0
    %s24 = sadd.s32 %s23, 1
    %s25 = scalar_select %p22, %s23, %s24
    %p28 = pneg %p22
    %p29 = scmp.eq.s32.totalorder %s13, 1
    %p30 = por %p28, %p29
    %p31 = scmp.ne.s32.totalorder %s23, %s26
    %p32 = scmp.eq.s32.totalorder %s13, 0
    %p33 = por %p31, %p32
    %p34 = scmp.ne.s32.totalorder %s23, %s26
    %p35 = scmp.eq.s32.totalorder %s18, 1
    %p36 = por %p34, %p35
    %p37 = scmp.ne.s32.totalorder %s26, %s27
    %p38 = scmp.eq.s32.totalorder %s18, 0
    %p39 = por %p37, %p38
    %p40 = scmp.ne.s32.totalorder %s26, %s27
    %p41 = scmp.eq.s32.totalorder %s19, 1
    %p42 = por %p40, %p41
    %p44 = scmp.ne.s32.totalorder %s27, %s43
    %p45 = scmp.eq.s32.totalorder %s19, 0
    %p46 = por %p44, %p45
    %s48 = sadd.s32 %s47, 1
    %p51 = scmp.eq.s32.totalorder %s13, 1
    %p52 = scmp.ne.s32.totalorder %s47, %s49
    %p53 = scmp.eq.s32.totalorder %s13, 0
    %p54 = por %p52, %p53
    %p55 = scmp.ne.s32.totalorder %s47, %s49
    %p56 = scmp.eq.s32.totalorder %s18, 1
    %p57 = por %p55, %p56
    %p58 = scmp.ne.s32.totalorder %s49, %s50
    %p59 = scmp.eq.s32.totalorder %s18, 0
    %p60 = por %p58, %p59
    %p61 = scmp.ne.s32.totalorder %s49, %s50
    %p62 = scmp.eq.s32.totalorder %s19, 1
    %p63 = por %p61, %p62
    %p65 = scmp.ne.s32.totalorder %s50, %s64
    %p66 = scmp.eq.s32.totalorder %s19, 0
    %p67 = por %p65, %p66
    %s69 = sadd.s32 %s68, 1
    %p72 = scmp.eq.s32.totalorder %s13, 1
    %p73 = scmp.ne.s32.totalorder %s68, %s70
    %p74 = scmp.eq.s32.totalorder %s13, 0
    %p75 = por %p73, %p74
    %p76 = scmp.ne.s32.totalorder %s68, %s70
    %p77 = scmp.eq.s32.totalorder %s18, 1
    %p78 = por %p76, %p77
    %p79 = scmp.ne.s32.totalorder %s70, %s71
    %p80 = scmp.eq.s32.totalorder %s18, 0
    %p81 = por %p79, %p80
    %p82 = scmp.ne.s32.totalorder %s70, %s71
    %p83 = scmp.eq.s32.totalorder %s19, 1
    %p84 = por %p82, %p83
    %p86 = scmp.ne.s32.totalorder %s71, %s85
    %p87 = scmp.eq.s32.totalorder %s19, 0
    %p88 = por %p86, %p87
    %s90 = sadd.s32 %s89, 1
    %p93 = scmp.eq.s32.totalorder %s13, 1
    %p94 = scmp.ne.s32.totalorder %s89, %s91
    %p95 = scmp.eq.s32.totalorder %s13, 0
    %p96 = por %p94, %p95
    %p97 = scmp.ne.s32.totalorder %s89, %s91
    %p98 = scmp.eq.s32.totalorder %s18, 1
    %p99 = por %p97, %p98
    %p100 = scmp.ne.s32.totalorder %s91, %s92
    %p101 = scmp.eq.s32.totalorder %s18, 0
    %p102 = por %p100, %p101
    %p103 = scmp.ne.s32.totalorder %s91, %s92
    %p104 = scmp.eq.s32.totalorder %s19, 1
    %p105 = por %p103, %p104
    %p107 = scmp.ne.s32.totalorder %s92, %s106
    %p108 = scmp.eq.s32.totalorder %s19, 0
    %p109 = por %p107, %p108
    %s111 = sadd.s32 %s110, 1
    %p114 = scmp.eq.s32.totalorder %s13, 1
    %p115 = scmp.ne.s32.totalorder %s110, %s112
    %p116 = scmp.eq.s32.totalorder %s13, 0
    %p117 = por %p115, %p116
    %p118 = scmp.ne.s32.totalorder %s110, %s112
    %p119 = scmp.eq.s32.totalorder %s18, 1
    %p120 = por %p118, %p119
    %p121 = scmp.ne.s32.totalorder %s112, %s113
    %p122 = scmp.eq.s32.totalorder %s18, 0
    %p123 = por %p121, %p122
    %p124 = scmp.ne.s32.totalorder %s112, %s113
    %p125 = scmp.eq.s32.totalorder %s19, 1
    %p126 = por %p124, %p125
    %p128 = scmp.ne.s32.totalorder %s113, %s127
    %p129 = scmp.eq.s32.totalorder %s19, 0
    %p130 = por %p128, %p129
    %s131 = ssub.s32 %s13, %s20
    %p132 = scmp.eq.s32.totalorder %s131, 0
    %s134 = sadd.s32 %s133, 1
    %s135 = scalar_select %p132, %s133, %s134
    %p138 = pneg %p132
    %p139 = scmp.eq.s32.totalorder %s13, 1
    %p140 = por %p138, %p139
    %p141 = scmp.ne.s32.totalorder %s133, %s136
    %p142 = scmp.eq.s32.totalorder %s13, 0
    %p143 = por %p141, %p142
    %p144 = scmp.ne.s32.totalorder %s133, %s136
    %p145 = scmp.eq.s32.totalorder %s18, 1
    %p146 = por %p144, %p145
    %p147 = scmp.ne.s32.totalorder %s136, %s137
    %p148 = scmp.eq.s32.totalorder %s18, 0
    %p149 = por %p147, %p148
    %p150 = scmp.ne.s32.totalorder %s136, %s137
    %p151 = scmp.eq.s32.totalorder %s19, 1
    %p152 = por %p150, %p151
    %p154 = scmp.ne.s32.totalorder %s137, %s153
    %p155 = scmp.eq.s32.totalorder %s19, 0
    %p156 = por %p154, %p155
    %s157 = ssub.s32 %s13, %s20
    %p158 = scmp.eq.s32.totalorder %s157, 0
    %s160 = sadd.s32 %s159, 1
    %s161 = scalar_select %p158, %s159, %s160
    %p164 = pneg %p158
    %p165 = scmp.eq.s32.totalorder %s13, 1
    %p166 = por %p164, %p165
    %p167 = scmp.ne.s32.totalorder %s159, %s162
    %p168 = scmp.eq.s32.totalorder %s13, 0
    %p169 = por %p167, %p168
    %p170 = scmp.ne.s32.totalorder %s159, %s162
    %p171 = scmp.eq.s32.totalorder %s18, 1
    %p172 = por %p170, %p171
    %p173 = scmp.ne.s32.totalorder %s162, %s163
    %p174 = scmp.eq.s32.totalorder %s18, 0
    %p175 = por %p173, %p174
    %p176 = scmp.ne.s32.totalorder %s162, %s163
    %p177 = scmp.eq.s32.totalorder %s19, 1
    %p178 = por %p176, %p177
    %p180 = scmp.ne.s32.totalorder %s163, %s179
    %p181 = scmp.eq.s32.totalorder %s19, 0
    %p182 = por %p180, %p181
    %p183 = scmp.le.s32.totalorder 1, %s13
    %p184 = scmp.lt.s32.totalorder %s13, 3
    %p185 = pnand %p183, %p184
    %p186 = pneg %p185
    // Predicated region
    $region9: #{unet_conv_block.4} parent=5 // pred_check
      _
    $region10: #{unet_conv_block.4} parent=5 // pred_check_branch
      %188 = sbr.rel (%p185) target = $region12
    $region11: #{unet_conv_block.4} parent=5 // pred_region
      %s189 = ssub.s32 %s13, 1
      // Predicated region
      $region13: #{unet_conv_block.4} parent=11 // pred_check
        %p190 = pneg %p60
      $region14: #{unet_conv_block.4} parent=11 // pred_check_branch
        %192 = sbr.rel (%p190) target = $region16
      $region15: #{unet_conv_block.4} parent=11 // pred_region
        _
      $region16: #{unet_conv_block.4} parent=11 // pred_fallthru
        _
      // Predicated region
      $region17: #{unet_conv_block.4} parent=11 // pred_check
        %p193 = pneg %p81
      $region18: #{unet_conv_block.4} parent=11 // pred_check_branch
        %195 = sbr.rel (%p193) target = $region20
      $region19: #{unet_conv_block.4} parent=11 // pred_region
        _
      $region20: #{unet_conv_block.4} parent=11 // pred_fallthru
        _
      // Predicated region
      $region21: #{unet_conv_block.4} parent=11 // pred_check
        %p196 = pneg %p102
      $region22: #{unet_conv_block.4} parent=11 // pred_check_branch
        %198 = sbr.rel (%p196) target = $region24
      $region23: #{unet_conv_block.4} parent=11 // pred_region
        _
      $region24: #{unet_conv_block.4} parent=11 // pred_fallthru
        _
      // Predicated region
      $region25: #{unet_conv_block.4} parent=11 // pred_check
        %p199 = pneg %p123
      $region26: #{unet_conv_block.4} parent=11 // pred_check_branch
        %201 = sbr.rel (%p199) target = $region28
      $region27: #{unet_conv_block.4} parent=11 // pred_region
        _
      $region28: #{unet_conv_block.4} parent=11 // pred_fallthru
        _
    $region12: #{unet_conv_block.4} parent=5 // pred_fallthru
      _
    %p202 = scmp.lt.s32.totalorder %s13, 2
    // Predicated region
    $region29: #{unet_conv_block.4} parent=5 // pred_check
      %p203 = pneg %p202
    $region30: #{unet_conv_block.4} parent=5 // pred_check_branch
      %205 = sbr.rel (%p203) target = $region32
    $region31: #{unet_conv_block.4} parent=5 // pred_region
      // Predicated region
      $region33: #{unet_conv_block.4} parent=31 // pred_check
        %p206 = pneg %p33
      $region34: #{unet_conv_block.4} parent=31 // pred_check_branch
        %208 = sbr.rel (%p206) target = $region36
      $region35: #{unet_conv_block.4} parent=31 // pred_region
        %p209 = scmp.lt.s32.totalorder %s13, 1
        %s210 = scalar_select %p209, %s13, 1
        %s211 = smul.addr %s210, 32
        %s212 = smul.addr %s211, 8
        %s213 = scalar_lea.vmem %s0, %s212
      $region36: #{unet_conv_block.4} parent=31 // pred_fallthru
        _
    $region32: #{unet_conv_block.4} parent=5 // pred_fallthru
      _
    %p214 = scmp.le.s32.totalorder 1, %s13
    %p215 = scmp.lt.s32.totalorder %s13, 3
    %p216 = pnand %p214, %p215
    %p217 = pneg %p216
    // Predicated region
    $region37: #{unet_conv_block.4} parent=5 // pred_check
      _
    $region38: #{unet_conv_block.4} parent=5 // pred_check_branch
      %219 = sbr.rel (%p216) target = $region40
    $region39: #{unet_conv_block.4} parent=5 // pred_region
      %s220 = ssub.s32 %s13, 1
      %p221 = scmp.lt.s32.totalorder %s18, 1
      %s222 = scalar_select %p221, %s18, 1
      %s223 = smul.addr %s222, 32
      %s224 = smul.addr %s223, 8
      %s225 = scalar_lea.vmem %s0, %s224
      %p226 = pneg %p39
      %p227 = pneg %p36
      %p228 = pneg %p60
      %p229 = pneg %p57
      %p230 = pneg %p81
      %p231 = pneg %p78
      %p232 = pneg %p102
      %p233 = pneg %p99
      %p234 = pneg %p123
      %p235 = pneg %p120
      %p236 = pneg %p149
      %p237 = pneg %p146
      %p238 = scmp.lt.s32.totalorder %s18, 1
      %s239 = scalar_select %p238, %s18, 1
      %s240 = smul.addr %s239, 32
      %s241 = smul.addr %s240, 8
      %s242 = scalar_lea.vmem %s5, %s241
      %p243 = pneg %p175
      %p244 = pneg %p172
      %p245 = scmp.lt.s32.totalorder %s18, 1
      %s246 = scalar_select %p245, %s18, 1
      %s247 = smul.addr %s246, 2
      %s248 = scalar_lea.vmem %s6, %s247
      %p249 = scmp.lt.s32.totalorder %s18, 1
      %s250 = scalar_select %p249, %s18, 1
      %s251 = smul.addr %s250, 32
      %s252 = smul.addr %s251, 8
      %s253 = scalar_lea.vmem %s0, %s252
      %p254 = scmp.lt.s32.totalorder %s18, 1
      %s255 = scalar_select %p254, %s18, 1
      %s256 = smul.addr %s255, 32
      %s257 = smul.addr %s256, 8
      %s258 = scalar_lea.vmem %s5, %s257
      %p259 = scmp.lt.s32.totalorder %s18, 1
      %s260 = scalar_select %p259, %s18, 1
      %s261 = smul.addr %s260, 2
      %s262 = scalar_lea.vmem %s6, %s261
      %v263 = vld [vmem:[%s253] sm:$0xff]
      %v264 = vld [vmem:[%s253 + $0x8] sm:$0xff]
      %v265 = vld [vmem:[%s253 + $0x10] sm:$0xff]
      %v266 = vld [vmem:[%s253 + $0x18] sm:$0xff]
      %v267 = vld [vmem:[%s253 + $0x20] sm:$0xff]
      %v268 = vld [vmem:[%s253 + $0x28] sm:$0xff]
      %v269 = vld [vmem:[%s253 + $0x30] sm:$0xff]
      %v270 = vld [vmem:[%s253 + $0x38] sm:$0xff]
      %v271 = vld [vmem:[%s253 + $0x40] sm:$0xff]
      %v272 = vld [vmem:[%s253 + $0x48] sm:$0xff]
      %v273 = vld [vmem:[%s253 + $0x50] sm:$0xff]
      %v274 = vld [vmem:[%s253 + $0x58] sm:$0xff]
      %v275 = vld [vmem:[%s253 + $0x60] sm:$0xff]
      %v276 = vld [vmem:[%s253 + $0x68] sm:$0xff]
      %v277 = vld [vmem:[%s253 + $0x70] sm:$0xff]
      %v278 = vld [vmem:[%s253 + $0x78] sm:$0xff]
      %v279 = vld [vmem:[%s253 + $0x80] sm:$0xff]
      %v280 = vld [vmem:[%s253 + $0x88] sm:$0xff]
      %v281 = vld [vmem:[%s253 + $0x90] sm:$0xff]
      %v282 = vld [vmem:[%s253 + $0x98] sm:$0xff]
      %v283 = vld [vmem:[%s253 + $0xa0] sm:$0xff]
      %v284 = vld [vmem:[%s253 + $0xa8] sm:$0xff]
      %v285 = vld [vmem:[%s253 + $0xb0] sm:$0xff]
      %v286 = vld [vmem:[%s253 + $0xb8] sm:$0xff]
      %v287 = vld [vmem:[%s253 + $0xc0] sm:$0xff]
      %v288 = vld [vmem:[%s253 + $0xc8] sm:$0xff]
      %v289 = vld [vmem:[%s253 + $0xd0] sm:$0xff]
      %v290 = vld [vmem:[%s253 + $0xd8] sm:$0xff]
      %v291 = vld [vmem:[%s253 + $0xe0] sm:$0xff]
      %v292 = vld [vmem:[%s253 + $0xe8] sm:$0xff]
      %v293 = vld [vmem:[%s253 + $0xf0] sm:$0xff]
      %v294 = vld [vmem:[%s253 + $0xf8] sm:$0xff]
      %v295 = vld [vmem:[%s1] sm:$0x1]
      %v297 = vlaneseq
      %v298 = vshrl.u32 %v297, 7
      %v299 = vsub.s32 0, %v298
      %v300 = vrot.slane %v295, %v299
      %v302 = vmul.f32 %v263, %v300
      %v303 = vmul.f32 %v264, %v300
      %v304 = vmul.f32 %v265, %v300
      %v305 = vmul.f32 %v266, %v300
      %v306 = vmul.f32 %v267, %v300
      %v307 = vmul.f32 %v268, %v300
      %v308 = vmul.f32 %v269, %v300
      %v309 = vmul.f32 %v270, %v300
      %v310 = vmul.f32 %v271, %v300
      %v311 = vmul.f32 %v272, %v300
      %v312 = vmul.f32 %v273, %v300
      %v313 = vmul.f32 %v274, %v300
      %v314 = vmul.f32 %v275, %v300
      %v315 = vmul.f32 %v276, %v300
      %v316 = vmul.f32 %v277, %v300
      %v317 = vmul.f32 %v278, %v300
      %v318 = vmul.f32 %v279, %v300
      %v319 = vmul.f32 %v280, %v300
      %v320 = vmul.f32 %v281, %v300
      %v321 = vmul.f32 %v282, %v300
      %v322 = vmul.f32 %v283, %v300
      %v323 = vmul.f32 %v284, %v300
      %v324 = vmul.f32 %v285, %v300
      %v325 = vmul.f32 %v286, %v300
      %v326 = vmul.f32 %v287, %v300
      %v327 = vmul.f32 %v288, %v300
      %v328 = vmul.f32 %v289, %v300
      %v329 = vmul.f32 %v290, %v300
      %v330 = vmul.f32 %v291, %v300
      %v331 = vmul.f32 %v292, %v300
      %v332 = vmul.f32 %v293, %v300
      %v333 = vmul.f32 %v294, %v300
      %v334 = vld [vmem:[%s2] sm:$0x1]
      %v336 = vlaneseq
      %v337 = vshrl.u32 %v336, 7
      %v338 = vsub.s32 0, %v337
      %v339 = vrot.slane %v334, %v338
      %v341 = vadd.f32 %v302, %v339
      %v342 = vadd.f32 %v303, %v339
      %v343 = vadd.f32 %v304, %v339
      %v344 = vadd.f32 %v305, %v339
      %v345 = vadd.f32 %v306, %v339
      %v346 = vadd.f32 %v307, %v339
      %v347 = vadd.f32 %v308, %v339
      %v348 = vadd.f32 %v309, %v339
      %v349 = vadd.f32 %v310, %v339
      %v350 = vadd.f32 %v311, %v339
      %v351 = vadd.f32 %v312, %v339
      %v352 = vadd.f32 %v313, %v339
      %v353 = vadd.f32 %v314, %v339
      %v354 = vadd.f32 %v315, %v339
      %v355 = vadd.f32 %v316, %v339
      %v356 = vadd.f32 %v317, %v339
      %v357 = vadd.f32 %v318, %v339
      %v358 = vadd.f32 %v319, %v339
      %v359 = vadd.f32 %v320, %v339
      %v360 = vadd.f32 %v321, %v339
      %v361 = vadd.f32 %v322, %v339
      %v362 = vadd.f32 %v323, %v339
      %v363 = vadd.f32 %v324, %v339
      %v364 = vadd.f32 %v325, %v339
      %v365 = vadd.f32 %v326, %v339
      %v366 = vadd.f32 %v327, %v339
      %v367 = vadd.f32 %v328, %v339
      %v368 = vadd.f32 %v329, %v339
      %v369 = vadd.f32 %v330, %v339
      %v370 = vadd.f32 %v331, %v339
      %v371 = vadd.f32 %v332, %v339
      %v372 = vadd.f32 %v333, %v339
      %vm373 = vcmask 64512
      %374 = vst.msk [vmem:[#allocation2] sm:$0xff] %vm373, 0.0
      %375 = vst.msk [vmem:[#allocation2 + $0x8] sm:$0xff] %vm373, 0.0
      %vm376 = vcmask 58368
      %377 = vst.msk [vmem:[#allocation2 + $0x10] sm:$0x3] %vm376, 0.0
      %s378 = scalar_lea.vmem [#allocation2], 408
      %379 = vst.msk [vmem:[%s378] sm:$0xff] %vm373, 0.0
      %380 = vst.msk [vmem:[%s378 + $0x8] sm:$0xff] %vm373, 0.0
      %381 = vst.msk [vmem:[%s378 + $0x10] sm:$0x3] %vm376, 0.0
      %vm382 = vcmask 57344
      %383 = vst.msk [vmem:[#allocation2] sm:$0x1] %vm382, 0.0
      %384 = vst.msk [vmem:[#allocation2 + $0x18] sm:$0x1] %vm382, 0.0
      %385 = vst.msk [vmem:[#allocation2 + $0x30] sm:$0x1] %vm382, 0.0
      %386 = vst.msk [vmem:[#allocation2 + $0x48] sm:$0x1] %vm382, 0.0
      %387 = vst.msk [vmem:[#allocation2 + $0x60] sm:$0x1] %vm382, 0.0
      %388 = vst.msk [vmem:[#allocation2 + $0x78] sm:$0x1] %vm382, 0.0
      %389 = vst.msk [vmem:[#allocation2 + $0x90] sm:$0x1] %vm382, 0.0
      %390 = vst.msk [vmem:[#allocation2 + $0xa8] sm:$0x1] %vm382, 0.0
      %391 = vst.msk [vmem:[#allocation2 + $0xc0] sm:$0x1] %vm382, 0.0
      %392 = vst.msk [vmem:[#allocation2 + $0xd8] sm:$0x1] %vm382, 0.0
      %393 = vst.msk [vmem:[#allocation2 + $0xf0] sm:$0x1] %vm382, 0.0
      %394 = vst.msk [vmem:[#allocation2 + $0x108] sm:$0x1] %vm382, 0.0
      %395 = vst.msk [vmem:[#allocation2 + $0x120] sm:$0x1] %vm382, 0.0
      %396 = vst.msk [vmem:[#allocation2 + $0x138] sm:$0x1] %vm382, 0.0
      %397 = vst.msk [vmem:[#allocation2 + $0x150] sm:$0x1] %vm382, 0.0
      %398 = vst.msk [vmem:[#allocation2 + $0x168] sm:$0x1] %vm382, 0.0
      %399 = vst.msk [vmem:[#allocation2 + $0x180] sm:$0x1] %vm382, 0.0
      %400 = vst.msk [vmem:[#allocation2 + $0x198] sm:$0x1] %vm382, 0.0
      %401 = vst.msk [vmem:[#allocation2 + $0x11] sm:$0x1] %vm382, 0.0
      %402 = vst.msk [vmem:[#allocation2 + $0x29] sm:$0x1] %vm382, 0.0
      %403 = vst.msk [vmem:[#allocation2 + $0x41] sm:$0x1] %vm382, 0.0
      %404 = vst.msk [vmem:[#allocation2 + $0x59] sm:$0x1] %vm382, 0.0
      %405 = vst.msk [vmem:[#allocation2 + $0x71] sm:$0x1] %vm382, 0.0
      %406 = vst.msk [vmem:[#allocation2 + $0x89] sm:$0x1] %vm382, 0.0
      %407 = vst.msk [vmem:[#allocation2 + $0xa1] sm:$0x1] %vm382, 0.0
      %408 = vst.msk [vmem:[#allocation2 + $0xb9] sm:$0x1] %vm382, 0.0
      %409 = vst.msk [vmem:[#allocation2 + $0xd1] sm:$0x1] %vm382, 0.0
      %410 = vst.msk [vmem:[#allocation2 + $0xe9] sm:$0x1] %vm382, 0.0
      %411 = vst.msk [vmem:[#allocation2 + $0x101] sm:$0x1] %vm382, 0.0
      %412 = vst.msk [vmem:[#allocation2 + $0x119] sm:$0x1] %vm382, 0.0
      %413 = vst.msk [vmem:[#allocation2 + $0x131] sm:$0x1] %vm382, 0.0
      %414 = vst.msk [vmem:[#allocation2 + $0x149] sm:$0x1] %vm382, 0.0
      %415 = vst.msk [vmem:[#allocation2 + $0x161] sm:$0x1] %vm382, 0.0
      %416 = vst.msk [vmem:[#allocation2 + $0x179] sm:$0x1] %vm382, 0.0
      %417 = vst.msk [vmem:[#allocation2 + $0x191] sm:$0x1] %vm382, 0.0
      %418 = vst.msk [vmem:[#allocation2 + $0x1a9] sm:$0x1] %vm382, 0.0
      %s419 = scalar_lea.vmem [#allocation2], 24
      %420 = vst.msk [vmem:[%s419 + $0x1] sm:$0xff] %vm373, %v341
      %421 = vst.msk [vmem:[%s419 + $0x9] sm:$0xff] %vm373, %v342
      %422 = vst.msk [vmem:[%s419 + $0x19] sm:$0xff] %vm373, %v343
      %423 = vst.msk [vmem:[%s419 + $0x21] sm:$0xff] %vm373, %v344
      %424 = vst.msk [vmem:[%s419 + $0x31] sm:$0xff] %vm373, %v345
      %425 = vst.msk [vmem:[%s419 + $0x39] sm:$0xff] %vm373, %v346
      %426 = vst.msk [vmem:[%s419 + $0x49] sm:$0xff] %vm373, %v347
      %427 = vst.msk [vmem:[%s419 + $0x51] sm:$0xff] %vm373, %v348
      %428 = vst.msk [vmem:[%s419 + $0x61] sm:$0xff] %vm373, %v349
      %429 = vst.msk [vmem:[%s419 + $0x69] sm:$0xff] %vm373, %v350
      %430 = vst.msk [vmem:[%s419 + $0x79] sm:$0xff] %vm373, %v351
      %431 = vst.msk [vmem:[%s419 + $0x81] sm:$0xff] %vm373, %v352
      %432 = vst.msk [vmem:[%s419 + $0x91] sm:$0xff] %vm373, %v353
      %433 = vst.msk [vmem:[%s419 + $0x99] sm:$0xff] %vm373, %v354
      %434 = vst.msk [vmem:[%s419 + $0xa9] sm:$0xff] %vm373, %v355
      %435 = vst.msk [vmem:[%s419 + $0xb1] sm:$0xff] %vm373, %v356
      %436 = vst.msk [vmem:[%s419 + $0xc1] sm:$0xff] %vm373, %v357
      %437 = vst.msk [vmem:[%s419 + $0xc9] sm:$0xff] %vm373, %v358
      %438 = vst.msk [vmem:[%s419 + $0xd9] sm:$0xff] %vm373, %v359
      %439 = vst.msk [vmem:[%s419 + $0xe1] sm:$0xff] %vm373, %v360
      %440 = vst.msk [vmem:[%s419 + $0xf1] sm:$0xff] %vm373, %v361
      %441 = vst.msk [vmem:[%s419 + $0xf9] sm:$0xff] %vm373, %v362
      %442 = vst.msk [vmem:[%s419 + $0x109] sm:$0xff] %vm373, %v363
      %443 = vst.msk [vmem:[%s419 + $0x111] sm:$0xff] %vm373, %v364
      %444 = vst.msk [vmem:[%s419 + $0x121] sm:$0xff] %vm373, %v365
      %445 = vst.msk [vmem:[%s419 + $0x129] sm:$0xff] %vm373, %v366
      %446 = vst.msk [vmem:[%s419 + $0x139] sm:$0xff] %vm373, %v367
      %447 = vst.msk [vmem:[%s419 + $0x141] sm:$0xff] %vm373, %v368
      %448 = vst.msk [vmem:[%s419 + $0x151] sm:$0xff] %vm373, %v369
      %449 = vst.msk [vmem:[%s419 + $0x159] sm:$0xff] %vm373, %v370
      %450 = vst.msk [vmem:[%s419 + $0x169] sm:$0xff] %vm373, %v371
      %451 = vst.msk [vmem:[%s419 + $0x171] sm:$0xff] %vm373, %v372
      %v452 = vld [vmem:[#allocation2] sm:$0xff]
      %v453 = vld [vmem:[#allocation2 + $0x8] sm:$0xff]
      %v454 = vld [vmem:[#allocation2 + $0x10] sm:$0x3]
      %v455 = vld [vmem:[#allocation2 + $0x18] sm:$0xff]
      %v456 = vld [vmem:[#allocation2 + $0x20] sm:$0xff]
      %v457 = vld [vmem:[#allocation2 + $0x28] sm:$0x3]
      %v458 = vld [vmem:[#allocation2 + $0x30] sm:$0xff]
      %v459 = vld [vmem:[#allocation2 + $0x38] sm:$0xff]
      %v460 = vld [vmem:[#allocation2 + $0x40] sm:$0x3]
      %v461 = vld [vmem:[#allocation2 + $0x48] sm:$0xff]
      %v462 = vld [vmem:[#allocation2 + $0x50] sm:$0xff]
      %v463 = vld [vmem:[#allocation2 + $0x58] sm:$0x3]
      %v464 = vld [vmem:[#allocation2 + $0x60] sm:$0xff]
      %v465 = vld [vmem:[#allocation2 + $0x68] sm:$0xff]
      %v466 = vld [vmem:[#allocation2 + $0x70] sm:$0x3]
      %v467 = vld [vmem:[#allocation2 + $0x78] sm:$0xff]
      %v468 = vld [vmem:[#allocation2 + $0x80] sm:$0xff]
      %v469 = vld [vmem:[#allocation2 + $0x88] sm:$0x3]
      %v470 = vld [vmem:[#allocation2 + $0x90] sm:$0xff]
      %v471 = vld [vmem:[#allocation2 + $0x98] sm:$0xff]
      %v472 = vld [vmem:[#allocation2 + $0xa0] sm:$0x3]
      %v473 = vld [vmem:[#allocation2 + $0xa8] sm:$0xff]
      %v474 = vld [vmem:[#allocation2 + $0xb0] sm:$0xff]
      %v475 = vld [vmem:[#allocation2 + $0xb8] sm:$0x3]
      %v476 = vld [vmem:[#allocation2 + $0xc0] sm:$0xff]
      %v477 = vld [vmem:[#allocation2 + $0xc8] sm:$0xff]
      %v478 = vld [vmem:[#allocation2 + $0xd0] sm:$0x3]
      %v479 = vld [vmem:[#allocation2 + $0xd8] sm:$0xff]
      %v480 = vld [vmem:[#allocation2 + $0xe0] sm:$0xff]
      %v481 = vld [vmem:[#allocation2 + $0xe8] sm:$0x3]
      %v482 = vld [vmem:[#allocation2 + $0xf0] sm:$0xff]
      %v483 = vld [vmem:[#allocation2 + $0xf8] sm:$0xff]
      %v484 = vld [vmem:[#allocation2 + $0x100] sm:$0x3]
      %v485 = vld [vmem:[#allocation2 + $0x108] sm:$0xff]
      %v486 = vld [vmem:[#allocation2 + $0x110] sm:$0xff]
      %v487 = vld [vmem:[#allocation2 + $0x118] sm:$0x3]
      %v488 = vld [vmem:[#allocation2 + $0x120] sm:$0xff]
      %v489 = vld [vmem:[#allocation2 + $0x128] sm:$0xff]
      %v490 = vld [vmem:[#allocation2 + $0x130] sm:$0x3]
      %v491 = vld [vmem:[#allocation2 + $0x138] sm:$0xff]
      %v492 = vld [vmem:[#allocation2 + $0x140] sm:$0xff]
      %v493 = vld [vmem:[#allocation2 + $0x148] sm:$0x3]
      %v494 = vld [vmem:[#allocation2 + $0x150] sm:$0xff]
      %v495 = vld [vmem:[#allocation2 + $0x158] sm:$0xff]
      %v496 = vld [vmem:[#allocation2 + $0x160] sm:$0x3]
      %v497 = vld [vmem:[#allocation2 + $0x168] sm:$0xff]
      %v498 = vld [vmem:[#allocation2 + $0x170] sm:$0xff]
      %v499 = vld [vmem:[#allocation2 + $0x178] sm:$0x3]
      %v500 = vld [vmem:[#allocation2 + $0x180] sm:$0xff]
      %v501 = vld [vmem:[#allocation2 + $0x188] sm:$0xff]
      %v502 = vld [vmem:[#allocation2 + $0x190] sm:$0x3]
      %v503 = vld [vmem:[#allocation2 + $0x198] sm:$0xff]
      %v504 = vld [vmem:[#allocation2 + $0x1a0] sm:$0xff]
      %v505 = vld [vmem:[#allocation2 + $0x1a8] sm:$0x3]
      %506 = vst.msk [vmem:[#allocation3] sm:$0xff] %vm373, %v452
      %507 = vst.msk [vmem:[#allocation3 + $0x8] sm:$0xff] %vm373, %v453
      %508 = vst.msk [vmem:[#allocation3 + $0x10] sm:$0xff] %vm373, %v455
      %509 = vst.msk [vmem:[#allocation3 + $0x18] sm:$0xff] %vm373, %v456
      %510 = vst.msk [vmem:[#allocation3 + $0x20] sm:$0xff] %vm373, %v458
      %511 = vst.msk [vmem:[#allocation3 + $0x28] sm:$0xff] %vm373, %v459
      %512 = vst.msk [vmem:[#allocation3 + $0x30] sm:$0xff] %vm373, %v461
      %513 = vst.msk [vmem:[#allocation3 + $0x38] sm:$0xff] %vm373, %v462
      %514 = vst.msk [vmem:[#allocation3 + $0x40] sm:$0xff] %vm373, %v464
      %515 = vst.msk [vmem:[#allocation3 + $0x48] sm:$0xff] %vm373, %v465
      %516 = vst.msk [vmem:[#allocation3 + $0x50] sm:$0xff] %vm373, %v467
      %517 = vst.msk [vmem:[#allocation3 + $0x58] sm:$0xff] %vm373, %v468
      %518 = vst.msk [vmem:[#allocation3 + $0x60] sm:$0xff] %vm373, %v470
      %519 = vst.msk [vmem:[#allocation3 + $0x68] sm:$0xff] %vm373, %v471
      %520 = vst.msk [vmem:[#allocation3 + $0x70] sm:$0xff] %vm373, %v473
      %521 = vst.msk [vmem:[#allocation3 + $0x78] sm:$0xff] %vm373, %v474
      %522 = vst.msk [vmem:[#allocation3 + $0x80] sm:$0xff] %vm373, %v476
      %523 = vst.msk [vmem:[#allocation3 + $0x88] sm:$0xff] %vm373, %v477
      %524 = vst.msk [vmem:[#allocation3 + $0x90] sm:$0xff] %vm373, %v479
      %525 = vst.msk [vmem:[#allocation3 + $0x98] sm:$0xff] %vm373, %v480
      %526 = vst.msk [vmem:[#allocation3 + $0xa0] sm:$0xff] %vm373, %v482
      %527 = vst.msk [vmem:[#allocation3 + $0xa8] sm:$0xff] %vm373, %v483
      %528 = vst.msk [vmem:[#allocation3 + $0xb0] sm:$0xff] %vm373, %v485
      %529 = vst.msk [vmem:[#allocation3 + $0xb8] sm:$0xff] %vm373, %v486
      %530 = vst.msk [vmem:[#allocation3 + $0xc0] sm:$0xff] %vm373, %v488
      %531 = vst.msk [vmem:[#allocation3 + $0xc8] sm:$0xff] %vm373, %v489
      %532 = vst.msk [vmem:[#allocation3 + $0xd0] sm:$0xff] %vm373, %v491
      %533 = vst.msk [vmem:[#allocation3 + $0xd8] sm:$0xff] %vm373, %v492
      %534 = vst.msk [vmem:[#allocation3 + $0xe0] sm:$0xff] %vm373, %v494
      %535 = vst.msk [vmem:[#allocation3 + $0xe8] sm:$0xff] %vm373, %v495
      %536 = vst.msk [vmem:[#allocation3 + $0xf0] sm:$0xff] %vm373, %v497
      %537 = vst.msk [vmem:[#allocation3 + $0xf8] sm:$0xff] %vm373, %v498
      %vm586 = vcmask 1046528
      %v587 = vrot.slane %v452, 1
      %v588 = vrot.slane %v453, 1
      %v589 = vsel %vm586, %v587, %v588
      %v590 = vrot.slane %v454, 1
      %v591 = vsel %vm586, %v588, %v590
      %v592 = vrot.slane %v455, 1
      %v593 = vrot.slane %v456, 1
      %v594 = vsel %vm586, %v592, %v593
      %v595 = vrot.slane %v457, 1
      %v596 = vsel %vm586, %v593, %v595
      %v597 = vrot.slane %v458, 1
      %v598 = vrot.slane %v459, 1
      %v599 = vsel %vm586, %v597, %v598
      %v600 = vrot.slane %v460, 1
      %v601 = vsel %vm586, %v598, %v600
      %v602 = vrot.slane %v461, 1
      %v603 = vrot.slane %v462, 1
      %v604 = vsel %vm586, %v602, %v603
      %v605 = vrot.slane %v463, 1
      %v606 = vsel %vm586, %v603, %v605
      %v607 = vrot.slane %v464, 1
      %v608 = vrot.slane %v465, 1
      %v609 = vsel %vm586, %v607, %v608
      %v610 = vrot.slane %v466, 1
      %v611 = vsel %vm586, %v608, %v610
      %v612 = vrot.slane %v467, 1
      %v613 = vrot.slane %v468, 1
      %v614 = vsel %vm586, %v612, %v613
      %v615 = vrot.slane %v469, 1
      %v616 = vsel %vm586, %v613, %v615
      %v617 = vrot.slane %v470, 1
      %v618 = vrot.slane %v471, 1
      %v619 = vsel %vm586, %v617, %v618
      %v620 = vrot.slane %v472, 1
      %v621 = vsel %vm586, %v618, %v620
      %v622 = vrot.slane %v473, 1
      %v623 = vrot.slane %v474, 1
      %v624 = vsel %vm586, %v622, %v623
      %v625 = vrot.slane %v475, 1
      %v626 = vsel %vm586, %v623, %v625
      %v627 = vrot.slane %v476, 1
      %v628 = vrot.slane %v477, 1
      %v629 = vsel %vm586, %v627, %v628
      %v630 = vrot.slane %v478, 1
      %v631 = vsel %vm586, %v628, %v630
      %v632 = vrot.slane %v479, 1
      %v633 = vrot.slane %v480, 1
      %v634 = vsel %vm586, %v632, %v633
      %v635 = vrot.slane %v481, 1
      %v636 = vsel %vm586, %v633, %v635
      %v637 = vrot.slane %v482, 1
      %v638 = vrot.slane %v483, 1
      %v639 = vsel %vm586, %v637, %v638
      %v640 = vrot.slane %v484, 1
      %v641 = vsel %vm586, %v638, %v640
      %v642 = vrot.slane %v485, 1
      %v643 = vrot.slane %v486, 1
      %v644 = vsel %vm586, %v642, %v643
      %v645 = vrot.slane %v487, 1
      %v646 = vsel %vm586, %v643, %v645
      %v647 = vrot.slane %v488, 1
      %v648 = vrot.slane %v489, 1
      %v649 = vsel %vm586, %v647, %v648
      %v650 = vrot.slane %v490, 1
      %v651 = vsel %vm586, %v648, %v650
      %v652 = vrot.slane %v491, 1
      %v653 = vrot.slane %v492, 1
      %v654 = vsel %vm586, %v652, %v653
      %v655 = vrot.slane %v493, 1
      %v656 = vsel %vm586, %v653, %v655
      %v657 = vrot.slane %v494, 1
      %v658 = vrot.slane %v495, 1
      %v659 = vsel %vm586, %v657, %v658
      %v660 = vrot.slane %v496, 1
      %v661 = vsel %vm586, %v658, %v660
      %v662 = vrot.slane %v497, 1
      %v663 = vrot.slane %v498, 1
      %v664 = vsel %vm586, %v662, %v663
      %v665 = vrot.slane %v499, 1
      %v666 = vsel %vm586, %v663, %v665
      %667 = vrot.lane.b32.xlu0 %v589, 8
      %v668 = vpop.permute.xlu0 %667
      %669 = vrot.lane.b32.xlu0 %v591, 8
      %v670 = vpop.permute.xlu0 %669
      %671 = vrot.lane.b32.xlu0 %v594, 8
      %v672 = vpop.permute.xlu0 %671
      %673 = vrot.lane.b32.xlu0 %v596, 8
      %v674 = vpop.permute.xlu0 %673
      %675 = vrot.lane.b32.xlu0 %v599, 8
      %v676 = vpop.permute.xlu0 %675
      %677 = vrot.lane.b32.xlu0 %v601, 8
      %v678 = vpop.permute.xlu0 %677
      %679 = vrot.lane.b32.xlu0 %v604, 8
      %v680 = vpop.permute.xlu0 %679
      %681 = vrot.lane.b32.xlu0 %v606, 8
      %v682 = vpop.permute.xlu0 %681
      %683 = vrot.lane.b32.xlu0 %v609, 8
      %v684 = vpop.permute.xlu0 %683
      %685 = vrot.lane.b32.xlu0 %v611, 8
      %v686 = vpop.permute.xlu0 %685
      %687 = vrot.lane.b32.xlu0 %v614, 8
      %v688 = vpop.permute.xlu0 %687
      %689 = vrot.lane.b32.xlu0 %v616, 8
      %v690 = vpop.permute.xlu0 %689
      %691 = vrot.lane.b32.xlu0 %v619, 8
      %v692 = vpop.permute.xlu0 %691
      %693 = vrot.lane.b32.xlu0 %v621, 8
      %v694 = vpop.permute.xlu0 %693
      %695 = vrot.lane.b32.xlu0 %v624, 8
      %v696 = vpop.permute.xlu0 %695
      %697 = vrot.lane.b32.xlu0 %v626, 8
      %v698 = vpop.permute.xlu0 %697
      %699 = vrot.lane.b32.xlu0 %v629, 8
      %v700 = vpop.permute.xlu0 %699
      %701 = vrot.lane.b32.xlu0 %v631, 8
      %v702 = vpop.permute.xlu0 %701
      %703 = vrot.lane.b32.xlu0 %v634, 8
      %v704 = vpop.permute.xlu0 %703
      %705 = vrot.lane.b32.xlu0 %v636, 8
      %v706 = vpop.permute.xlu0 %705
      %707 = vrot.lane.b32.xlu0 %v639, 8
      %v708 = vpop.permute.xlu0 %707
      %709 = vrot.lane.b32.xlu0 %v641, 8
      %v710 = vpop.permute.xlu0 %709
      %711 = vrot.lane.b32.xlu0 %v644, 8
      %v712 = vpop.permute.xlu0 %711
      %713 = vrot.lane.b32.xlu0 %v646, 8
      %v714 = vpop.permute.xlu0 %713
      %715 = vrot.lane.b32.xlu0 %v649, 8
      %v716 = vpop.permute.xlu0 %715
      %717 = vrot.lane.b32.xlu0 %v651, 8
      %v718 = vpop.permute.xlu0 %717
      %719 = vrot.lane.b32.xlu0 %v654, 8
      %v720 = vpop.permute.xlu0 %719
      %721 = vrot.lane.b32.xlu0 %v656, 8
      %v722 = vpop.permute.xlu0 %721
      %723 = vrot.lane.b32.xlu0 %v659, 8
      %v724 = vpop.permute.xlu0 %723
      %725 = vrot.lane.b32.xlu0 %v661, 8
      %v726 = vpop.permute.xlu0 %725
      %727 = vrot.lane.b32.xlu0 %v664, 8
      %v728 = vpop.permute.xlu0 %727
      %729 = vrot.lane.b32.xlu0 %v666, 8
      %v730 = vpop.permute.xlu0 %729
      %vm763 = vcmask 130112
      %764 = vst.msk [vmem:[#allocation3] sm:$0xff] %vm763, %v668
      %765 = vst.msk [vmem:[#allocation3 + $0x8] sm:$0xff] %vm763, %v670
      %766 = vst.msk [vmem:[#allocation3 + $0x10] sm:$0xff] %vm763, %v672
      %767 = vst.msk [vmem:[#allocation3 + $0x18] sm:$0xff] %vm763, %v674
      %768 = vst.msk [vmem:[#allocation3 + $0x20] sm:$0xff] %vm763, %v676
      %769 = vst.msk [vmem:[#allocation3 + $0x28] sm:$0xff] %vm763, %v678
      %770 = vst.msk [vmem:[#allocation3 + $0x30] sm:$0xff] %vm763, %v680
      %771 = vst.msk [vmem:[#allocation3 + $0x38] sm:$0xff] %vm763, %v682
      %772 = vst.msk [vmem:[#allocation3 + $0x40] sm:$0xff] %vm763, %v684
      %773 = vst.msk [vmem:[#allocation3 + $0x48] sm:$0xff] %vm763, %v686
      %774 = vst.msk [vmem:[#allocation3 + $0x50] sm:$0xff] %vm763, %v688
      %775 = vst.msk [vmem:[#allocation3 + $0x58] sm:$0xff] %vm763, %v690
      %776 = vst.msk [vmem:[#allocation3 + $0x60] sm:$0xff] %vm763, %v692
      %777 = vst.msk [vmem:[#allocation3 + $0x68] sm:$0xff] %vm763, %v694
      %778 = vst.msk [vmem:[#allocation3 + $0x70] sm:$0xff] %vm763, %v696
      %779 = vst.msk [vmem:[#allocation3 + $0x78] sm:$0xff] %vm763, %v698
      %780 = vst.msk [vmem:[#allocation3 + $0x80] sm:$0xff] %vm763, %v700
      %781 = vst.msk [vmem:[#allocation3 + $0x88] sm:$0xff] %vm763, %v702
      %782 = vst.msk [vmem:[#allocation3 + $0x90] sm:$0xff] %vm763, %v704
      %783 = vst.msk [vmem:[#allocation3 + $0x98] sm:$0xff] %vm763, %v706
      %784 = vst.msk [vmem:[#allocation3 + $0xa0] sm:$0xff] %vm763, %v708
      %785 = vst.msk [vmem:[#allocation3 + $0xa8] sm:$0xff] %vm763, %v710
      %786 = vst.msk [vmem:[#allocation3 + $0xb0] sm:$0xff] %vm763, %v712
      %787 = vst.msk [vmem:[#allocation3 + $0xb8] sm:$0xff] %vm763, %v714
      %788 = vst.msk [vmem:[#allocation3 + $0xc0] sm:$0xff] %vm763, %v716
      %789 = vst.msk [vmem:[#allocation3 + $0xc8] sm:$0xff] %vm763, %v718
      %790 = vst.msk [vmem:[#allocation3 + $0xd0] sm:$0xff] %vm763, %v720
      %791 = vst.msk [vmem:[#allocation3 + $0xd8] sm:$0xff] %vm763, %v722
      %792 = vst.msk [vmem:[#allocation3 + $0xe0] sm:$0xff] %vm763, %v724
      %793 = vst.msk [vmem:[#allocation3 + $0xe8] sm:$0xff] %vm763, %v726
      %794 = vst.msk [vmem:[#allocation3 + $0xf0] sm:$0xff] %vm763, %v728
      %795 = vst.msk [vmem:[#allocation3 + $0xf8] sm:$0xff] %vm763, %v730
      %vm796 = vcmask 1045504
      %v797 = vrot.slane %v452, 2
      %v798 = vrot.slane %v453, 2
      %v799 = vsel %vm796, %v797, %v798
      %v800 = vrot.slane %v454, 2
      %v801 = vsel %vm796, %v798, %v800
      %v802 = vrot.slane %v455, 2
      %v803 = vrot.slane %v456, 2
      %v804 = vsel %vm796, %v802, %v803
      %v805 = vrot.slane %v457, 2
      %v806 = vsel %vm796, %v803, %v805
      %v807 = vrot.slane %v458, 2
      %v808 = vrot.slane %v459, 2
      %v809 = vsel %vm796, %v807, %v808
      %v810 = vrot.slane %v460, 2
      %v811 = vsel %vm796, %v808, %v810
      %v812 = vrot.slane %v461, 2
      %v813 = vrot.slane %v462, 2
      %v814 = vsel %vm796, %v812, %v813
      %v815 = vrot.slane %v463, 2
      %v816 = vsel %vm796, %v813, %v815
      %v817 = vrot.slane %v464, 2
      %v818 = vrot.slane %v465, 2
      %v819 = vsel %vm796, %v817, %v818
      %v820 = vrot.slane %v466, 2
      %v821 = vsel %vm796, %v818, %v820
      %v822 = vrot.slane %v467, 2
      %v823 = vrot.slane %v468, 2
      %v824 = vsel %vm796, %v822, %v823
      %v825 = vrot.slane %v469, 2
      %v826 = vsel %vm796, %v823, %v825
      %v827 = vrot.slane %v470, 2
      %v828 = vrot.slane %v471, 2
      %v829 = vsel %vm796, %v827, %v828
      %v830 = vrot.slane %v472, 2
      %v831 = vsel %vm796, %v828, %v830
      %v832 = vrot.slane %v473, 2
      %v833 = vrot.slane %v474, 2
      %v834 = vsel %vm796, %v832, %v833
      %v835 = vrot.slane %v475, 2
      %v836 = vsel %vm796, %v833, %v835
      %v837 = vrot.slane %v476, 2
      %v838 = vrot.slane %v477, 2
      %v839 = vsel %vm796, %v837, %v838
      %v840 = vrot.slane %v478, 2
      %v841 = vsel %vm796, %v838, %v840
      %v842 = vrot.slane %v479, 2
      %v843 = vrot.slane %v480, 2
      %v844 = vsel %vm796, %v842, %v843
      %v845 = vrot.slane %v481, 2
      %v846 = vsel %vm796, %v843, %v845
      %v847 = vrot.slane %v482, 2
      %v848 = vrot.slane %v483, 2
      %v849 = vsel %vm796, %v847, %v848
      %v850 = vrot.slane %v484, 2
      %v851 = vsel %vm796, %v848, %v850
      %v852 = vrot.slane %v485, 2
      %v853 = vrot.slane %v486, 2
      %v854 = vsel %vm796, %v852, %v853
      %v855 = vrot.slane %v487, 2
      %v856 = vsel %vm796, %v853, %v855
      %v857 = vrot.slane %v488, 2
      %v858 = vrot.slane %v489, 2
      %v859 = vsel %vm796, %v857, %v858
      %v860 = vrot.slane %v490, 2
      %v861 = vsel %vm796, %v858, %v860
      %v862 = vrot.slane %v491, 2
      %v863 = vrot.slane %v492, 2
      %v864 = vsel %vm796, %v862, %v863
      %v865 = vrot.slane %v493, 2
      %v866 = vsel %vm796, %v863, %v865
      %v867 = vrot.slane %v494, 2
      %v868 = vrot.slane %v495, 2
      %v869 = vsel %vm796, %v867, %v868
      %v870 = vrot.slane %v496, 2
      %v871 = vsel %vm796, %v868, %v870
      %v872 = vrot.slane %v497, 2
      %v873 = vrot.slane %v498, 2
      %v874 = vsel %vm796, %v872, %v873
      %v875 = vrot.slane %v499, 2
      %v876 = vsel %vm796, %v873, %v875
      %877 = vrot.lane.b32.xlu0 %v799, 16
      %v878 = vpop.permute.xlu0 %877
      %879 = vrot.lane.b32.xlu0 %v801, 16
      %v880 = vpop.permute.xlu0 %879
      %881 = vrot.lane.b32.xlu0 %v804, 16
      %v882 = vpop.permute.xlu0 %881
      %883 = vrot.lane.b32.xlu0 %v806, 16
      %v884 = vpop.permute.xlu0 %883
      %885 = vrot.lane.b32.xlu0 %v809, 16
      %v886 = vpop.permute.xlu0 %885
      %887 = vrot.lane.b32.xlu0 %v811, 16
      %v888 = vpop.permute.xlu0 %887
      %889 = vrot.lane.b32.xlu0 %v814, 16
      %v890 = vpop.permute.xlu0 %889
      %891 = vrot.lane.b32.xlu0 %v816, 16
      %v892 = vpop.permute.xlu0 %891
      %893 = vrot.lane.b32.xlu0 %v819, 16
      %v894 = vpop.permute.xlu0 %893
      %895 = vrot.lane.b32.xlu0 %v821, 16
      %v896 = vpop.permute.xlu0 %895
      %897 = vrot.lane.b32.xlu0 %v824, 16
      %v898 = vpop.permute.xlu0 %897
      %899 = vrot.lane.b32.xlu0 %v826, 16
      %v900 = vpop.permute.xlu0 %899
      %901 = vrot.lane.b32.xlu0 %v829, 16
      %v902 = vpop.permute.xlu0 %901
      %903 = vrot.lane.b32.xlu0 %v831, 16
      %v904 = vpop.permute.xlu0 %903
      %905 = vrot.lane.b32.xlu0 %v834, 16
      %v906 = vpop.permute.xlu0 %905
      %907 = vrot.lane.b32.xlu0 %v836, 16
      %v908 = vpop.permute.xlu0 %907
      %909 = vrot.lane.b32.xlu0 %v839, 16
      %v910 = vpop.permute.xlu0 %909
      %911 = vrot.lane.b32.xlu0 %v841, 16
      %v912 = vpop.permute.xlu0 %911
      %913 = vrot.lane.b32.xlu0 %v844, 16
      %v914 = vpop.permute.xlu0 %913
      %915 = vrot.lane.b32.xlu0 %v846, 16
      %v916 = vpop.permute.xlu0 %915
      %917 = vrot.lane.b32.xlu0 %v849, 16
      %v918 = vpop.permute.xlu0 %917
      %919 = vrot.lane.b32.xlu0 %v851, 16
      %v920 = vpop.permute.xlu0 %919
      %921 = vrot.lane.b32.xlu0 %v854, 16
      %v922 = vpop.permute.xlu0 %921
      %923 = vrot.lane.b32.xlu0 %v856, 16
      %v924 = vpop.permute.xlu0 %923
      %925 = vrot.lane.b32.xlu0 %v859, 16
      %v926 = vpop.permute.xlu0 %925
      %927 = vrot.lane.b32.xlu0 %v861, 16
      %v928 = vpop.permute.xlu0 %927
      %929 = vrot.lane.b32.xlu0 %v864, 16
      %v930 = vpop.permute.xlu0 %929
      %931 = vrot.lane.b32.xlu0 %v866, 16
      %v932 = vpop.permute.xlu0 %931
      %933 = vrot.lane.b32.xlu0 %v869, 16
      %v934 = vpop.permute.xlu0 %933
      %935 = vrot.lane.b32.xlu0 %v871, 16
      %v936 = vpop.permute.xlu0 %935
      %937 = vrot.lane.b32.xlu0 %v874, 16
      %v938 = vpop.permute.xlu0 %937
      %939 = vrot.lane.b32.xlu0 %v876, 16
      %v940 = vpop.permute.xlu0 %939
      %vm973 = vcmask 195712
      %974 = vst.msk [vmem:[#allocation3] sm:$0xff] %vm973, %v878
      %975 = vst.msk [vmem:[#allocation3 + $0x8] sm:$0xff] %vm973, %v880
      %976 = vst.msk [vmem:[#allocation3 + $0x10] sm:$0xff] %vm973, %v882
      %977 = vst.msk [vmem:[#allocation3 + $0x18] sm:$0xff] %vm973, %v884
      %978 = vst.msk [vmem:[#allocation3 + $0x20] sm:$0xff] %vm973, %v886
      %979 = vst.msk [vmem:[#allocation3 + $0x28] sm:$0xff] %vm973, %v888
      %980 = vst.msk [vmem:[#allocation3 + $0x30] sm:$0xff] %vm973, %v890
      %981 = vst.msk [vmem:[#allocation3 + $0x38] sm:$0xff] %vm973, %v892
      %982 = vst.msk [vmem:[#allocation3 + $0x40] sm:$0xff] %vm973, %v894
      %983 = vst.msk [vmem:[#allocation3 + $0x48] sm:$0xff] %vm973, %v896
      %984 = vst.msk [vmem:[#allocation3 + $0x50] sm:$0xff] %vm973, %v898
      %985 = vst.msk [vmem:[#allocation3 + $0x58] sm:$0xff] %vm973, %v900
      %986 = vst.msk [vmem:[#allocation3 + $0x60] sm:$0xff] %vm973, %v902
      %987 = vst.msk [vmem:[#allocation3 + $0x68] sm:$0xff] %vm973, %v904
      %988 = vst.msk [vmem:[#allocation3 + $0x70] sm:$0xff] %vm973, %v906
      %989 = vst.msk [vmem:[#allocation3 + $0x78] sm:$0xff] %vm973, %v908
      %990 = vst.msk [vmem:[#allocation3 + $0x80] sm:$0xff] %vm973, %v910
      %991 = vst.msk [vmem:[#allocation3 + $0x88] sm:$0xff] %vm973, %v912
      %992 = vst.msk [vmem:[#allocation3 + $0x90] sm:$0xff] %vm973, %v914
      %993 = vst.msk [vmem:[#allocation3 + $0x98] sm:$0xff] %vm973, %v916
      %994 = vst.msk [vmem:[#allocation3 + $0xa0] sm:$0xff] %vm973, %v918
      %995 = vst.msk [vmem:[#allocation3 + $0xa8] sm:$0xff] %vm973, %v920
      %996 = vst.msk [vmem:[#allocation3 + $0xb0] sm:$0xff] %vm973, %v922
      %997 = vst.msk [vmem:[#allocation3 + $0xb8] sm:$0xff] %vm973, %v924
      %998 = vst.msk [vmem:[#allocation3 + $0xc0] sm:$0xff] %vm973, %v926
      %999 = vst.msk [vmem:[#allocation3 + $0xc8] sm:$0xff] %vm973, %v928
      %1000 = vst.msk [vmem:[#allocation3 + $0xd0] sm:$0xff] %vm973, %v930
      %1001 = vst.msk [vmem:[#allocation3 + $0xd8] sm:$0xff] %vm973, %v932
      %1002 = vst.msk [vmem:[#allocation3 + $0xe0] sm:$0xff] %vm973, %v934
      %1003 = vst.msk [vmem:[#allocation3 + $0xe8] sm:$0xff] %vm973, %v936
      %1004 = vst.msk [vmem:[#allocation3 + $0xf0] sm:$0xff] %vm973, %v938
      %1005 = vst.msk [vmem:[#allocation3 + $0xf8] sm:$0xff] %vm973, %v940
      %1008 = vrot.lane.b32.xlu0 %v455, 24
      %v1009 = vpop.permute.xlu0 %1008
      %1010 = vrot.lane.b32.xlu0 %v456, 24
      %v1011 = vpop.permute.xlu0 %1010
      %1012 = vrot.lane.b32.xlu0 %v458, 24
      %v1013 = vpop.permute.xlu0 %1012
      %1014 = vrot.lane.b32.xlu0 %v459, 24
      %v1015 = vpop.permute.xlu0 %1014
      %1016 = vrot.lane.b32.xlu0 %v461, 24
      %v1017 = vpop.permute.xlu0 %1016
      %1018 = vrot.lane.b32.xlu0 %v462, 24
      %v1019 = vpop.permute.xlu0 %1018
      %1020 = vrot.lane.b32.xlu0 %v464, 24
      %v1021 = vpop.permute.xlu0 %1020
      %1022 = vrot.lane.b32.xlu0 %v465, 24
      %v1023 = vpop.permute.xlu0 %1022
      %1024 = vrot.lane.b32.xlu0 %v467, 24
      %v1025 = vpop.permute.xlu0 %1024
      %1026 = vrot.lane.b32.xlu0 %v468, 24
      %v1027 = vpop.permute.xlu0 %1026
      %1028 = vrot.lane.b32.xlu0 %v470, 24
      %v1029 = vpop.permute.xlu0 %1028
      %1030 = vrot.lane.b32.xlu0 %v471, 24
      %v1031 = vpop.permute.xlu0 %1030
      %1032 = vrot.lane.b32.xlu0 %v473, 24
      %v1033 = vpop.permute.xlu0 %1032
      %1034 = vrot.lane.b32.xlu0 %v474, 24
      %v1035 = vpop.permute.xlu0 %1034
      %1036 = vrot.lane.b32.xlu0 %v476, 24
      %v1037 = vpop.permute.xlu0 %1036
      %1038 = vrot.lane.b32.xlu0 %v477, 24
      %v1039 = vpop.permute.xlu0 %1038
      %1040 = vrot.lane.b32.xlu0 %v479, 24
      %v1041 = vpop.permute.xlu0 %1040
      %1042 = vrot.lane.b32.xlu0 %v480, 24
      %v1043 = vpop.permute.xlu0 %1042
      %1044 = vrot.lane.b32.xlu0 %v482, 24
      %v1045 = vpop.permute.xlu0 %1044
      %1046 = vrot.lane.b32.xlu0 %v483, 24
      %v1047 = vpop.permute.xlu0 %1046
      %1048 = vrot.lane.b32.xlu0 %v485, 24
      %v1049 = vpop.permute.xlu0 %1048
      %1050 = vrot.lane.b32.xlu0 %v486, 24
      %v1051 = vpop.permute.xlu0 %1050
      %1052 = vrot.lane.b32.xlu0 %v488, 24
      %v1053 = vpop.permute.xlu0 %1052
      %1054 = vrot.lane.b32.xlu0 %v489, 24
      %v1055 = vpop.permute.xlu0 %1054
      %1056 = vrot.lane.b32.xlu0 %v491, 24
      %v1057 = vpop.permute.xlu0 %1056
      %1058 = vrot.lane.b32.xlu0 %v492, 24
      %v1059 = vpop.permute.xlu0 %1058
      %1060 = vrot.lane.b32.xlu0 %v494, 24
      %v1061 = vpop.permute.xlu0 %1060
      %1062 = vrot.lane.b32.xlu0 %v495, 24
      %v1063 = vpop.permute.xlu0 %1062
      %1064 = vrot.lane.b32.xlu0 %v497, 24
      %v1065 = vpop.permute.xlu0 %1064
      %1066 = vrot.lane.b32.xlu0 %v498, 24
      %v1067 = vpop.permute.xlu0 %1066
      %1068 = vrot.lane.b32.xlu0 %v500, 24
      %v1069 = vpop.permute.xlu0 %1068
      %1070 = vrot.lane.b32.xlu0 %v501, 24
      %v1071 = vpop.permute.xlu0 %1070
      %vm1104 = vcmask 261312
      %1105 = vst.msk [vmem:[#allocation3] sm:$0xff] %vm1104, %v1009
      %1106 = vst.msk [vmem:[#allocation3 + $0x8] sm:$0xff] %vm1104, %v1011
      %1107 = vst.msk [vmem:[#allocation3 + $0x10] sm:$0xff] %vm1104, %v1013
      %1108 = vst.msk [vmem:[#allocation3 + $0x18] sm:$0xff] %vm1104, %v1015
      %1109 = vst.msk [vmem:[#allocation3 + $0x20] sm:$0xff] %vm1104, %v1017
      %1110 = vst.msk [vmem:[#allocation3 + $0x28] sm:$0xff] %vm1104, %v1019
      %1111 = vst.msk [vmem:[#allocation3 + $0x30] sm:$0xff] %vm1104, %v1021
      %1112 = vst.msk [vmem:[#allocation3 + $0x38] sm:$0xff] %vm1104, %v1023
      %1113 = vst.msk [vmem:[#allocation3 + $0x40] sm:$0xff] %vm1104, %v1025
      %1114 = vst.msk [vmem:[#allocation3 + $0x48] sm:$0xff] %vm1104, %v1027
      %1115 = vst.msk [vmem:[#allocation3 + $0x50] sm:$0xff] %vm1104, %v1029
      %1116 = vst.msk [vmem:[#allocation3 + $0x58] sm:$0xff] %vm1104, %v1031
      %1117 = vst.msk [vmem:[#allocation3 + $0x60] sm:$0xff] %vm1104, %v1033
      %1118 = vst.msk [vmem:[#allocation3 + $0x68] sm:$0xff] %vm1104, %v1035
      %1119 = vst.msk [vmem:[#allocation3 + $0x70] sm:$0xff] %vm1104, %v1037
      %1120 = vst.msk [vmem:[#allocation3 + $0x78] sm:$0xff] %vm1104, %v1039
      %1121 = vst.msk [vmem:[#allocation3 + $0x80] sm:$0xff] %vm1104, %v1041
      %1122 = vst.msk [vmem:[#allocation3 + $0x88] sm:$0xff] %vm1104, %v1043
      %1123 = vst.msk [vmem:[#allocation3 + $0x90] sm:$0xff] %vm1104, %v1045
      %1124 = vst.msk [vmem:[#allocation3 + $0x98] sm:$0xff] %vm1104, %v1047
      %1125 = vst.msk [vmem:[#allocation3 + $0xa0] sm:$0xff] %vm1104, %v1049
      %1126 = vst.msk [vmem:[#allocation3 + $0xa8] sm:$0xff] %vm1104, %v1051
      %1127 = vst.msk [vmem:[#allocation3 + $0xb0] sm:$0xff] %vm1104, %v1053
      %1128 = vst.msk [vmem:[#allocation3 + $0xb8] sm:$0xff] %vm1104, %v1055
      %1129 = vst.msk [vmem:[#allocation3 + $0xc0] sm:$0xff] %vm1104, %v1057
      %1130 = vst.msk [vmem:[#allocation3 + $0xc8] sm:$0xff] %vm1104, %v1059
      %1131 = vst.msk [vmem:[#allocation3 + $0xd0] sm:$0xff] %vm1104, %v1061
      %1132 = vst.msk [vmem:[#allocation3 + $0xd8] sm:$0xff] %vm1104, %v1063
      %1133 = vst.msk [vmem:[#allocation3 + $0xe0] sm:$0xff] %vm1104, %v1065
      %1134 = vst.msk [vmem:[#allocation3 + $0xe8] sm:$0xff] %vm1104, %v1067
      %1135 = vst.msk [vmem:[#allocation3 + $0xf0] sm:$0xff] %vm1104, %v1069
      %1136 = vst.msk [vmem:[#allocation3 + $0xf8] sm:$0xff] %vm1104, %v1071
      %v1138 = vrot.slane %v500, 1
      %v1139 = vrot.slane %v501, 1
      %v1140 = vsel %vm586, %v1138, %v1139
      %v1141 = vrot.slane %v502, 1
      %v1142 = vsel %vm586, %v1139, %v1141
      %1143 = vrot.lane.b32.xlu0 %v594, 32
      %v1144 = vpop.permute.xlu0 %1143
      %1145 = vrot.lane.b32.xlu0 %v596, 32
      %v1146 = vpop.permute.xlu0 %1145
      %1147 = vrot.lane.b32.xlu0 %v599, 32
      %v1148 = vpop.permute.xlu0 %1147
      %1149 = vrot.lane.b32.xlu0 %v601, 32
      %v1150 = vpop.permute.xlu0 %1149
      %1151 = vrot.lane.b32.xlu0 %v604, 32
      %v1152 = vpop.permute.xlu0 %1151
      %1153 = vrot.lane.b32.xlu0 %v606, 32
      %v1154 = vpop.permute.xlu0 %1153
      %1155 = vrot.lane.b32.xlu0 %v609, 32
      %v1156 = vpop.permute.xlu0 %1155
      %1157 = vrot.lane.b32.xlu0 %v611, 32
      %v1158 = vpop.permute.xlu0 %1157
      %1159 = vrot.lane.b32.xlu0 %v614, 32
      %v1160 = vpop.permute.xlu0 %1159
      %1161 = vrot.lane.b32.xlu0 %v616, 32
      %v1162 = vpop.permute.xlu0 %1161
      %1163 = vrot.lane.b32.xlu0 %v619, 32
      %v1164 = vpop.permute.xlu0 %1163
      %1165 = vrot.lane.b32.xlu0 %v621, 32
      %v1166 = vpop.permute.xlu0 %1165
      %1167 = vrot.lane.b32.xlu0 %v624, 32
      %v1168 = vpop.permute.xlu0 %1167
      %1169 = vrot.lane.b32.xlu0 %v626, 32
      %v1170 = vpop.permute.xlu0 %1169
      %1171 = vrot.lane.b32.xlu0 %v629, 32
      %v1172 = vpop.permute.xlu0 %1171
      %1173 = vrot.lane.b32.xlu0 %v631, 32
      %v1174 = vpop.permute.xlu0 %1173
      %1175 = vrot.lane.b32.xlu0 %v634, 32
      %v1176 = vpop.permute.xlu0 %1175
      %1177 = vrot.lane.b32.xlu0 %v636, 32
      %v1178 = vpop.permute.xlu0 %1177
      %1179 = vrot.lane.b32.xlu0 %v639, 32
      %v1180 = vpop.permute.xlu0 %1179
      %1181 = vrot.lane.b32.xlu0 %v641, 32
      %v1182 = vpop.permute.xlu0 %1181
      %1183 = vrot.lane.b32.xlu0 %v644, 32
      %v1184 = vpop.permute.xlu0 %1183
      %1185 = vrot.lane.b32.xlu0 %v646, 32
      %v1186 = vpop.permute.xlu0 %1185
      %1187 = vrot.lane.b32.xlu0 %v649, 32
      %v1188 = vpop.permute.xlu0 %1187
      %1189 = vrot.lane.b32.xlu0 %v651, 32
      %v1190 = vpop.permute.xlu0 %1189
      %1191 = vrot.lane.b32.xlu0 %v654, 32
      %v1192 = vpop.permute.xlu0 %1191
      %1193 = vrot.lane.b32.xlu0 %v656, 32
      %v1194 = vpop.permute.xlu0 %1193
      %1195 = vrot.lane.b32.xlu0 %v659, 32
      %v1196 = vpop.permute.xlu0 %1195
      %1197 = vrot.lane.b32.xlu0 %v661, 32
      %v1198 = vpop.permute.xlu0 %1197
      %1199 = vrot.lane.b32.xlu0 %v664, 32
      %v1200 = vpop.permute.xlu0 %1199
      %1201 = vrot.lane.b32.xlu0 %v666, 32
      %v1202 = vpop.permute.xlu0 %1201
      %1203 = vrot.lane.b32.xlu0 %v1140, 32
      %v1204 = vpop.permute.xlu0 %1203
      %1205 = vrot.lane.b32.xlu0 %v1142, 32
      %v1206 = vpop.permute.xlu0 %1205
      %vm1239 = vcmask 326912
      %1240 = vst.msk [vmem:[#allocation3] sm:$0xff] %vm1239, %v1144
      %1241 = vst.msk [vmem:[#allocation3 + $0x8] sm:$0xff] %vm1239, %v1146
      %1242 = vst.msk [vmem:[#allocation3 + $0x10] sm:$0xff] %vm1239, %v1148
      %1243 = vst.msk [vmem:[#allocation3 + $0x18] sm:$0xff] %vm1239, %v1150
      %1244 = vst.msk [vmem:[#allocation3 + $0x20] sm:$0xff] %vm1239, %v1152
      %1245 = vst.msk [vmem:[#allocation3 + $0x28] sm:$0xff] %vm1239, %v1154
      %1246 = vst.msk [vmem:[#allocation3 + $0x30] sm:$0xff] %vm1239, %v1156
      %1247 = vst.msk [vmem:[#allocation3 + $0x38] sm:$0xff] %vm1239, %v1158
      %1248 = vst.msk [vmem:[#allocation3 + $0x40] sm:$0xff] %vm1239, %v1160
      %1249 = vst.msk [vmem:[#allocation3 + $0x48] sm:$0xff] %vm1239, %v1162
      %1250 = vst.msk [vmem:[#allocation3 + $0x50] sm:$0xff] %vm1239, %v1164
      %1251 = vst.msk [vmem:[#allocation3 + $0x58] sm:$0xff] %vm1239, %v1166
      %1252 = vst.msk [vmem:[#allocation3 + $0x60] sm:$0xff] %vm1239, %v1168
      %1253 = vst.msk [vmem:[#allocation3 + $0x68] sm:$0xff] %vm1239, %v1170
      %1254 = vst.msk [vmem:[#allocation3 + $0x70] sm:$0xff] %vm1239, %v1172
      %1255 = vst.msk [vmem:[#allocation3 + $0x78] sm:$0xff] %vm1239, %v1174
      %1256 = vst.msk [vmem:[#allocation3 + $0x80] sm:$0xff] %vm1239, %v1176
      %1257 = vst.msk [vmem:[#allocation3 + $0x88] sm:$0xff] %vm1239, %v1178
      %1258 = vst.msk [vmem:[#allocation3 + $0x90] sm:$0xff] %vm1239, %v1180
      %1259 = vst.msk [vmem:[#allocation3 + $0x98] sm:$0xff] %vm1239, %v1182
      %1260 = vst.msk [vmem:[#allocation3 + $0xa0] sm:$0xff] %vm1239, %v1184
      %1261 = vst.msk [vmem:[#allocation3 + $0xa8] sm:$0xff] %vm1239, %v1186
      %1262 = vst.msk [vmem:[#allocation3 + $0xb0] sm:$0xff] %vm1239, %v1188
      %1263 = vst.msk [vmem:[#allocation3 + $0xb8] sm:$0xff] %vm1239, %v1190
      %1264 = vst.msk [vmem:[#allocation3 + $0xc0] sm:$0xff] %vm1239, %v1192
      %1265 = vst.msk [vmem:[#allocation3 + $0xc8] sm:$0xff] %vm1239, %v1194
      %1266 = vst.msk [vmem:[#allocation3 + $0xd0] sm:$0xff] %vm1239, %v1196
      %1267 = vst.msk [vmem:[#allocation3 + $0xd8] sm:$0xff] %vm1239, %v1198
      %1268 = vst.msk [vmem:[#allocation3 + $0xe0] sm:$0xff] %vm1239, %v1200
      %1269 = vst.msk [vmem:[#allocation3 + $0xe8] sm:$0xff] %vm1239, %v1202
      %1270 = vst.msk [vmem:[#allocation3 + $0xf0] sm:$0xff] %vm1239, %v1204
      %1271 = vst.msk [vmem:[#allocation3 + $0xf8] sm:$0xff] %vm1239, %v1206
      %v1272 = vrot.slane %v500, 2
      %v1273 = vrot.slane %v501, 2
      %v1274 = vsel %vm796, %v1272, %v1273
      %v1275 = vrot.slane %v502, 2
      %v1276 = vsel %vm796, %v1273, %v1275
      %1277 = vrot.lane.b32.xlu0 %v804, 40
      %v1278 = vpop.permute.xlu0 %1277
      %1279 = vrot.lane.b32.xlu0 %v806, 40
      %v1280 = vpop.permute.xlu0 %1279
      %1281 = vrot.lane.b32.xlu0 %v809, 40
      %v1282 = vpop.permute.xlu0 %1281
      %1283 = vrot.lane.b32.xlu0 %v811, 40
      %v1284 = vpop.permute.xlu0 %1283
      %1285 = vrot.lane.b32.xlu0 %v814, 40
      %v1286 = vpop.permute.xlu0 %1285
      %1287 = vrot.lane.b32.xlu0 %v816, 40
      %v1288 = vpop.permute.xlu0 %1287
      %1289 = vrot.lane.b32.xlu0 %v819, 40
      %v1290 = vpop.permute.xlu0 %1289
      %1291 = vrot.lane.b32.xlu0 %v821, 40
      %v1292 = vpop.permute.xlu0 %1291
      %1293 = vrot.lane.b32.xlu0 %v824, 40
      %v1294 = vpop.permute.xlu0 %1293
      %1295 = vrot.lane.b32.xlu0 %v826, 40
      %v1296 = vpop.permute.xlu0 %1295
      %1297 = vrot.lane.b32.xlu0 %v829, 40
      %v1298 = vpop.permute.xlu0 %1297
      %1299 = vrot.lane.b32.xlu0 %v831, 40
      %v1300 = vpop.permute.xlu0 %1299
      %1301 = vrot.lane.b32.xlu0 %v834, 40
      %v1302 = vpop.permute.xlu0 %1301
      %1303 = vrot.lane.b32.xlu0 %v836, 40
      %v1304 = vpop.permute.xlu0 %1303
      %1305 = vrot.lane.b32.xlu0 %v839, 40
      %v1306 = vpop.permute.xlu0 %1305
      %1307 = vrot.lane.b32.xlu0 %v841, 40
      %v1308 = vpop.permute.xlu0 %1307
      %1309 = vrot.lane.b32.xlu0 %v844, 40
      %v1310 = vpop.permute.xlu0 %1309
      %1311 = vrot.lane.b32.xlu0 %v846, 40
      %v1312 = vpop.permute.xlu0 %1311
      %1313 = vrot.lane.b32.xlu0 %v849, 40
      %v1314 = vpop.permute.xlu0 %1313
      %1315 = vrot.lane.b32.xlu0 %v851, 40
      %v1316 = vpop.permute.xlu0 %1315
      %1317 = vrot.lane.b32.xlu0 %v854, 40
      %v1318 = vpop.permute.xlu0 %1317
      %1319 = vrot.lane.b32.xlu0 %v856, 40
      %v1320 = vpop.permute.xlu0 %1319
      %1321 = vrot.lane.b32.xlu0 %v859, 40
      %v1322 = vpop.permute.xlu0 %1321
      %1323 = vrot.lane.b32.xlu0 %v861, 40
      %v1324 = vpop.permute.xlu0 %1323
      %1325 = vrot.lane.b32.xlu0 %v864, 40
      %v1326 = vpop.permute.xlu0 %1325
      %1327 = vrot.lane.b32.xlu0 %v866, 40
      %v1328 = vpop.permute.xlu0 %1327
      %1329 = vrot.lane.b32.xlu0 %v869, 40
      %v1330 = vpop.permute.xlu0 %1329
      %1331 = vrot.lane.b32.xlu0 %v871, 40
      %v1332 = vpop.permute.xlu0 %1331
      %1333 = vrot.lane.b32.xlu0 %v874, 40
      %v1334 = vpop.permute.xlu0 %1333
      %1335 = vrot.lane.b32.xlu0 %v876, 40
      %v1336 = vpop.permute.xlu0 %1335
      %1337 = vrot.lane.b32.xlu0 %v1274, 40
      %v1338 = vpop.permute.xlu0 %1337
      %1339 = vrot.lane.b32.xlu0 %v1276, 40
      %v1340 = vpop.permute.xlu0 %1339
      %vm1373 = vcmask 392512
      %1374 = vst.msk [vmem:[#allocation3] sm:$0xff] %vm1373, %v1278
      %1375 = vst.msk [vmem:[#allocation3 + $0x8] sm:$0xff] %vm1373, %v1280
      %1376 = vst.msk [vmem:[#allocation3 + $0x10] sm:$0xff] %vm1373, %v1282
      %1377 = vst.msk [vmem:[#allocation3 + $0x18] sm:$0xff] %vm1373, %v1284
      %1378 = vst.msk [vmem:[#allocation3 + $0x20] sm:$0xff] %vm1373, %v1286
      %1379 = vst.msk [vmem:[#allocation3 + $0x28] sm:$0xff] %vm1373, %v1288
      %1380 = vst.msk [vmem:[#allocation3 + $0x30] sm:$0xff] %vm1373, %v1290
      %1381 = vst.msk [vmem:[#allocation3 + $0x38] sm:$0xff] %vm1373, %v1292
      %1382 = vst.msk [vmem:[#allocation3 + $0x40] sm:$0xff] %vm1373, %v1294
      %1383 = vst.msk [vmem:[#allocation3 + $0x48] sm:$0xff] %vm1373, %v1296
      %1384 = vst.msk [vmem:[#allocation3 + $0x50] sm:$0xff] %vm1373, %v1298
      %1385 = vst.msk [vmem:[#allocation3 + $0x58] sm:$0xff] %vm1373, %v1300
      %1386 = vst.msk [vmem:[#allocation3 + $0x60] sm:$0xff] %vm1373, %v1302
      %1387 = vst.msk [vmem:[#allocation3 + $0x68] sm:$0xff] %vm1373, %v1304
      %1388 = vst.msk [vmem:[#allocation3 + $0x70] sm:$0xff] %vm1373, %v1306
      %1389 = vst.msk [vmem:[#allocation3 + $0x78] sm:$0xff] %vm1373, %v1308
      %1390 = vst.msk [vmem:[#allocation3 + $0x80] sm:$0xff] %vm1373, %v1310
      %1391 = vst.msk [vmem:[#allocation3 + $0x88] sm:$0xff] %vm1373, %v1312
      %1392 = vst.msk [vmem:[#allocation3 + $0x90] sm:$0xff] %vm1373, %v1314
      %1393 = vst.msk [vmem:[#allocation3 + $0x98] sm:$0xff] %vm1373, %v1316
      %1394 = vst.msk [vmem:[#allocation3 + $0xa0] sm:$0xff] %vm1373, %v1318
      %1395 = vst.msk [vmem:[#allocation3 + $0xa8] sm:$0xff] %vm1373, %v1320
      %1396 = vst.msk [vmem:[#allocation3 + $0xb0] sm:$0xff] %vm1373, %v1322
      %1397 = vst.msk [vmem:[#allocation3 + $0xb8] sm:$0xff] %vm1373, %v1324
      %1398 = vst.msk [vmem:[#allocation3 + $0xc0] sm:$0xff] %vm1373, %v1326
      %1399 = vst.msk [vmem:[#allocation3 + $0xc8] sm:$0xff] %vm1373, %v1328
      %1400 = vst.msk [vmem:[#allocation3 + $0xd0] sm:$0xff] %vm1373, %v1330
      %1401 = vst.msk [vmem:[#allocation3 + $0xd8] sm:$0xff] %vm1373, %v1332
      %1402 = vst.msk [vmem:[#allocation3 + $0xe0] sm:$0xff] %vm1373, %v1334
      %1403 = vst.msk [vmem:[#allocation3 + $0xe8] sm:$0xff] %vm1373, %v1336
      %1404 = vst.msk [vmem:[#allocation3 + $0xf0] sm:$0xff] %vm1373, %v1338
      %1405 = vst.msk [vmem:[#allocation3 + $0xf8] sm:$0xff] %vm1373, %v1340
      %1408 = vrot.lane.b32.xlu0 %v458, 48
      %v1409 = vpop.permute.xlu0 %1408
      %1410 = vrot.lane.b32.xlu0 %v459, 48
      %v1411 = vpop.permute.xlu0 %1410
      %1412 = vrot.lane.b32.xlu0 %v461, 48
      %v1413 = vpop.permute.xlu0 %1412
      %1414 = vrot.lane.b32.xlu0 %v462, 48
      %v1415 = vpop.permute.xlu0 %1414
      %1416 = vrot.lane.b32.xlu0 %v464, 48
      %v1417 = vpop.permute.xlu0 %1416
      %1418 = vrot.lane.b32.xlu0 %v465, 48
      %v1419 = vpop.permute.xlu0 %1418
      %1420 = vrot.lane.b32.xlu0 %v467, 48
      %v1421 = vpop.permute.xlu0 %1420
      %1422 = vrot.lane.b32.xlu0 %v468, 48
      %v1423 = vpop.permute.xlu0 %1422
      %1424 = vrot.lane.b32.xlu0 %v470, 48
      %v1425 = vpop.permute.xlu0 %1424
      %1426 = vrot.lane.b32.xlu0 %v471, 48
      %v1427 = vpop.permute.xlu0 %1426
      %1428 = vrot.lane.b32.xlu0 %v473, 48
      %v1429 = vpop.permute.xlu0 %1428
      %1430 = vrot.lane.b32.xlu0 %v474, 48
      %v1431 = vpop.permute.xlu0 %1430
      %1432 = vrot.lane.b32.xlu0 %v476, 48
      %v1433 = vpop.permute.xlu0 %1432
      %1434 = vrot.lane.b32.xlu0 %v477, 48
      %v1435 = vpop.permute.xlu0 %1434
      %1436 = vrot.lane.b32.xlu0 %v479, 48
      %v1437 = vpop.permute.xlu0 %1436
      %1438 = vrot.lane.b32.xlu0 %v480, 48
      %v1439 = vpop.permute.xlu0 %1438
      %1440 = vrot.lane.b32.xlu0 %v482, 48
      %v1441 = vpop.permute.xlu0 %1440
      %1442 = vrot.lane.b32.xlu0 %v483, 48
      %v1443 = vpop.permute.xlu0 %1442
      %1444 = vrot.lane.b32.xlu0 %v485, 48
      %v1445 = vpop.permute.xlu0 %1444
      %1446 = vrot.lane.b32.xlu0 %v486, 48
      %v1447 = vpop.permute.xlu0 %1446
      %1448 = vrot.lane.b32.xlu0 %v488, 48
      %v1449 = vpop.permute.xlu0 %1448
      %1450 = vrot.lane.b32.xlu0 %v489, 48
      %v1451 = vpop.permute.xlu0 %1450
      %1452 = vrot.lane.b32.xlu0 %v491, 48
      %v1453 = vpop.permute.xlu0 %1452
      %1454 = vrot.lane.b32.xlu0 %v492, 48
      %v1455 = vpop.permute.xlu0 %1454
      %1456 = vrot.lane.b32.xlu0 %v494, 48
      %v1457 = vpop.permute.xlu0 %1456
      %1458 = vrot.lane.b32.xlu0 %v495, 48
      %v1459 = vpop.permute.xlu0 %1458
      %1460 = vrot.lane.b32.xlu0 %v497, 48
      %v1461 = vpop.permute.xlu0 %1460
      %1462 = vrot.lane.b32.xlu0 %v498, 48
      %v1463 = vpop.permute.xlu0 %1462
      %1464 = vrot.lane.b32.xlu0 %v500, 48
      %v1465 = vpop.permute.xlu0 %1464
      %1466 = vrot.lane.b32.xlu0 %v501, 48
      %v1467 = vpop.permute.xlu0 %1466
      %1468 = vrot.lane.b32.xlu0 %v503, 48
      %v1469 = vpop.permute.xlu0 %1468
      %1470 = vrot.lane.b32.xlu0 %v504, 48
      %v1471 = vpop.permute.xlu0 %1470
      %vm1504 = vcmask 458112
      %1505 = vst.msk [vmem:[#allocation3] sm:$0xff] %vm1504, %v1409
      %1506 = vst.msk [vmem:[#allocation3 + $0x8] sm:$0xff] %vm1504, %v1411
      %1507 = vst.msk [vmem:[#allocation3 + $0x10] sm:$0xff] %vm1504, %v1413
      %1508 = vst.msk [vmem:[#allocation3 + $0x18] sm:$0xff] %vm1504, %v1415
      %1509 = vst.msk [vmem:[#allocation3 + $0x20] sm:$0xff] %vm1504, %v1417
      %1510 = vst.msk [vmem:[#allocation3 + $0x28] sm:$0xff] %vm1504, %v1419
      %1511 = vst.msk [vmem:[#allocation3 + $0x30] sm:$0xff] %vm1504, %v1421
      %1512 = vst.msk [vmem:[#allocation3 + $0x38] sm:$0xff] %vm1504, %v1423
      %1513 = vst.msk [vmem:[#allocation3 + $0x40] sm:$0xff] %vm1504, %v1425
      %1514 = vst.msk [vmem:[#allocation3 + $0x48] sm:$0xff] %vm1504, %v1427
      %1515 = vst.msk [vmem:[#allocation3 + $0x50] sm:$0xff] %vm1504, %v1429
      %1516 = vst.msk [vmem:[#allocation3 + $0x58] sm:$0xff] %vm1504, %v1431
      %1517 = vst.msk [vmem:[#allocation3 + $0x60] sm:$0xff] %vm1504, %v1433
      %1518 = vst.msk [vmem:[#allocation3 + $0x68] sm:$0xff] %vm1504, %v1435
      %1519 = vst.msk [vmem:[#allocation3 + $0x70] sm:$0xff] %vm1504, %v1437
      %1520 = vst.msk [vmem:[#allocation3 + $0x78] sm:$0xff] %vm1504, %v1439
      %1521 = vst.msk [vmem:[#allocation3 + $0x80] sm:$0xff] %vm1504, %v1441
      %1522 = vst.msk [vmem:[#allocation3 + $0x88] sm:$0xff] %vm1504, %v1443
      %1523 = vst.msk [vmem:[#allocation3 + $0x90] sm:$0xff] %vm1504, %v1445
      %1524 = vst.msk [vmem:[#allocation3 + $0x98] sm:$0xff] %vm1504, %v1447
      %1525 = vst.msk [vmem:[#allocation3 + $0xa0] sm:$0xff] %vm1504, %v1449
      %1526 = vst.msk [vmem:[#allocation3 + $0xa8] sm:$0xff] %vm1504, %v1451
      %1527 = vst.msk [vmem:[#allocation3 + $0xb0] sm:$0xff] %vm1504, %v1453
      %1528 = vst.msk [vmem:[#allocation3 + $0xb8] sm:$0xff] %vm1504, %v1455
      %1529 = vst.msk [vmem:[#allocation3 + $0xc0] sm:$0xff] %vm1504, %v1457
      %1530 = vst.msk [vmem:[#allocation3 + $0xc8] sm:$0xff] %vm1504, %v1459
      %1531 = vst.msk [vmem:[#allocation3 + $0xd0] sm:$0xff] %vm1504, %v1461
      %1532 = vst.msk [vmem:[#allocation3 + $0xd8] sm:$0xff] %vm1504, %v1463
      %1533 = vst.msk [vmem:[#allocation3 + $0xe0] sm:$0xff] %vm1504, %v1465
      %1534 = vst.msk [vmem:[#allocation3 + $0xe8] sm:$0xff] %vm1504, %v1467
      %1535 = vst.msk [vmem:[#allocation3 + $0xf0] sm:$0xff] %vm1504, %v1469
      %1536 = vst.msk [vmem:[#allocation3 + $0xf8] sm:$0xff] %vm1504, %v1471
      %v1538 = vrot.slane %v503, 1
      %v1539 = vrot.slane %v504, 1
      %v1540 = vsel %vm586, %v1538, %v1539
      %v1541 = vrot.slane %v505, 1
      %v1542 = vsel %vm586, %v1539, %v1541
      %1543 = vrot.lane.b32.xlu0 %v599, 56
      %v1544 = vpop.permute.xlu0 %1543
      %1545 = vrot.lane.b32.xlu0 %v601, 56
      %v1546 = vpop.permute.xlu0 %1545
      %1547 = vrot.lane.b32.xlu0 %v604, 56
      %v1548 = vpop.permute.xlu0 %1547
      %1549 = vrot.lane.b32.xlu0 %v606, 56
      %v1550 = vpop.permute.xlu0 %1549
      %1551 = vrot.lane.b32.xlu0 %v609, 56
      %v1552 = vpop.permute.xlu0 %1551
      %1553 = vrot.lane.b32.xlu0 %v611, 56
      %v1554 = vpop.permute.xlu0 %1553
      %1555 = vrot.lane.b32.xlu0 %v614, 56
      %v1556 = vpop.permute.xlu0 %1555
      %1557 = vrot.lane.b32.xlu0 %v616, 56
      %v1558 = vpop.permute.xlu0 %1557
      %1559 = vrot.lane.b32.xlu0 %v619, 56
      %v1560 = vpop.permute.xlu0 %1559
      %1561 = vrot.lane.b32.xlu0 %v621, 56
      %v1562 = vpop.permute.xlu0 %1561
      %1563 = vrot.lane.b32.xlu0 %v624, 56
      %v1564 = vpop.permute.xlu0 %1563
      %1565 = vrot.lane.b32.xlu0 %v626, 56
      %v1566 = vpop.permute.xlu0 %1565
      %1567 = vrot.lane.b32.xlu0 %v629, 56
      %v1568 = vpop.permute.xlu0 %1567
      %1569 = vrot.lane.b32.xlu0 %v631, 56
      %v1570 = vpop.permute.xlu0 %1569
      %1571 = vrot.lane.b32.xlu0 %v634, 56
      %v1572 = vpop.permute.xlu0 %1571
      %1573 = vrot.lane.b32.xlu0 %v636, 56
      %v1574 = vpop.permute.xlu0 %1573
      %1575 = vrot.lane.b32.xlu0 %v639, 56
      %v1576 = vpop.permute.xlu0 %1575
      %1577 = vrot.lane.b32.xlu0 %v641, 56
      %v1578 = vpop.permute.xlu0 %1577
      %1579 = vrot.lane.b32.xlu0 %v644, 56
      %v1580 = vpop.permute.xlu0 %1579
      %1581 = vrot.lane.b32.xlu0 %v646, 56
      %v1582 = vpop.permute.xlu0 %1581
      %1583 = vrot.lane.b32.xlu0 %v649, 56
      %v1584 = vpop.permute.xlu0 %1583
      %1585 = vrot.lane.b32.xlu0 %v651, 56
      %v1586 = vpop.permute.xlu0 %1585
      %1587 = vrot.lane.b32.xlu0 %v654, 56
      %v1588 = vpop.permute.xlu0 %1587
      %1589 = vrot.lane.b32.xlu0 %v656, 56
      %v1590 = vpop.permute.xlu0 %1589
      %1591 = vrot.lane.b32.xlu0 %v659, 56
      %v1592 = vpop.permute.xlu0 %1591
      %1593 = vrot.lane.b32.xlu0 %v661, 56
      %v1594 = vpop.permute.xlu0 %1593
      %1595 = vrot.lane.b32.xlu0 %v664, 56
      %v1596 = vpop.permute.xlu0 %1595
      %1597 = vrot.lane.b32.xlu0 %v666, 56
      %v1598 = vpop.permute.xlu0 %1597
      %1599 = vrot.lane.b32.xlu0 %v1140, 56
      %v1600 = vpop.permute.xlu0 %1599
      %1601 = vrot.lane.b32.xlu0 %v1142, 56
      %v1602 = vpop.permute.xlu0 %1601
      %1603 = vrot.lane.b32.xlu0 %v1540, 56
      %v1604 = vpop.permute.xlu0 %1603
      %1605 = vrot.lane.b32.xlu0 %v1542, 56
      %v1606 = vpop.permute.xlu0 %1605
      %vm1639 = vcmask 523712
      %1640 = vst.msk [vmem:[#allocation3] sm:$0xff] %vm1639, %v1544
      %1641 = vst.msk [vmem:[#allocation3 + $0x8] sm:$0xff] %vm1639, %v1546
      %1642 = vst.msk [vmem:[#allocation3 + $0x10] sm:$0xff] %vm1639, %v1548
      %1643 = vst.msk [vmem:[#allocation3 + $0x18] sm:$0xff] %vm1639, %v1550
      %1644 = vst.msk [vmem:[#allocation3 + $0x20] sm:$0xff] %vm1639, %v1552
      %1645 = vst.msk [vmem:[#allocation3 + $0x28] sm:$0xff] %vm1639, %v1554
      %1646 = vst.msk [vmem:[#allocation3 + $0x30] sm:$0xff] %vm1639, %v1556
      %1647 = vst.msk [vmem:[#allocation3 + $0x38] sm:$0xff] %vm1639, %v1558
      %1648 = vst.msk [vmem:[#allocation3 + $0x40] sm:$0xff] %vm1639, %v1560
      %1649 = vst.msk [vmem:[#allocation3 + $0x48] sm:$0xff] %vm1639, %v1562
      %1650 = vst.msk [vmem:[#allocation3 + $0x50] sm:$0xff] %vm1639, %v1564
      %1651 = vst.msk [vmem:[#allocation3 + $0x58] sm:$0xff] %vm1639, %v1566
      %1652 = vst.msk [vmem:[#allocation3 + $0x60] sm:$0xff] %vm1639, %v1568
      %1653 = vst.msk [vmem:[#allocation3 + $0x68] sm:$0xff] %vm1639, %v1570
      %1654 = vst.msk [vmem:[#allocation3 + $0x70] sm:$0xff] %vm1639, %v1572
      %1655 = vst.msk [vmem:[#allocation3 + $0x78] sm:$0xff] %vm1639, %v1574
      %1656 = vst.msk [vmem:[#allocation3 + $0x80] sm:$0xff] %vm1639, %v1576
      %1657 = vst.msk [vmem:[#allocation3 + $0x88] sm:$0xff] %vm1639, %v1578
      %1658 = vst.msk [vmem:[#allocation3 + $0x90] sm:$0xff] %vm1639, %v1580
      %1659 = vst.msk [vmem:[#allocation3 + $0x98] sm:$0xff] %vm1639, %v1582
      %1660 = vst.msk [vmem:[#allocation3 + $0xa0] sm:$0xff] %vm1639, %v1584
      %1661 = vst.msk [vmem:[#allocation3 + $0xa8] sm:$0xff] %vm1639, %v1586
      %1662 = vst.msk [vmem:[#allocation3 + $0xb0] sm:$0xff] %vm1639, %v1588
      %1663 = vst.msk [vmem:[#allocation3 + $0xb8] sm:$0xff] %vm1639, %v1590
      %1664 = vst.msk [vmem:[#allocation3 + $0xc0] sm:$0xff] %vm1639, %v1592
      %1665 = vst.msk [vmem:[#allocation3 + $0xc8] sm:$0xff] %vm1639, %v1594
      %1666 = vst.msk [vmem:[#allocation3 + $0xd0] sm:$0xff] %vm1639, %v1596
      %1667 = vst.msk [vmem:[#allocation3 + $0xd8] sm:$0xff] %vm1639, %v1598
      %1668 = vst.msk [vmem:[#allocation3 + $0xe0] sm:$0xff] %vm1639, %v1600
      %1669 = vst.msk [vmem:[#allocation3 + $0xe8] sm:$0xff] %vm1639, %v1602
      %1670 = vst.msk [vmem:[#allocation3 + $0xf0] sm:$0xff] %vm1639, %v1604
      %1671 = vst.msk [vmem:[#allocation3 + $0xf8] sm:$0xff] %vm1639, %v1606
      %v1672 = vrot.slane %v503, 2
      %v1673 = vrot.slane %v504, 2
      %v1674 = vsel %vm796, %v1672, %v1673
      %v1675 = vrot.slane %v505, 2
      %v1676 = vsel %vm796, %v1673, %v1675
      %1677 = vrot.lane.b32.xlu0 %v809, 64
      %v1678 = vpop.permute.xlu0 %1677
      %1679 = vrot.lane.b32.xlu0 %v811, 64
      %v1680 = vpop.permute.xlu0 %1679
      %1681 = vrot.lane.b32.xlu0 %v814, 64
      %v1682 = vpop.permute.xlu0 %1681
      %1683 = vrot.lane.b32.xlu0 %v816, 64
      %v1684 = vpop.permute.xlu0 %1683
      %1685 = vrot.lane.b32.xlu0 %v819, 64
      %v1686 = vpop.permute.xlu0 %1685
      %1687 = vrot.lane.b32.xlu0 %v821, 64
      %v1688 = vpop.permute.xlu0 %1687
      %1689 = vrot.lane.b32.xlu0 %v824, 64
      %v1690 = vpop.permute.xlu0 %1689
      %1691 = vrot.lane.b32.xlu0 %v826, 64
      %v1692 = vpop.permute.xlu0 %1691
      %1693 = vrot.lane.b32.xlu0 %v829, 64
      %v1694 = vpop.permute.xlu0 %1693
      %1695 = vrot.lane.b32.xlu0 %v831, 64
      %v1696 = vpop.permute.xlu0 %1695
      %1697 = vrot.lane.b32.xlu0 %v834, 64
      %v1698 = vpop.permute.xlu0 %1697
      %1699 = vrot.lane.b32.xlu0 %v836, 64
      %v1700 = vpop.permute.xlu0 %1699
      %1701 = vrot.lane.b32.xlu0 %v839, 64
      %v1702 = vpop.permute.xlu0 %1701
      %1703 = vrot.lane.b32.xlu0 %v841, 64
      %v1704 = vpop.permute.xlu0 %1703
      %1705 = vrot.lane.b32.xlu0 %v844, 64
      %v1706 = vpop.permute.xlu0 %1705
      %1707 = vrot.lane.b32.xlu0 %v846, 64
      %v1708 = vpop.permute.xlu0 %1707
      %1709 = vrot.lane.b32.xlu0 %v849, 64
      %v1710 = vpop.permute.xlu0 %1709
      %1711 = vrot.lane.b32.xlu0 %v851, 64
      %v1712 = vpop.permute.xlu0 %1711
      %1713 = vrot.lane.b32.xlu0 %v854, 64
      %v1714 = vpop.permute.xlu0 %1713
      %1715 = vrot.lane.b32.xlu0 %v856, 64
      %v1716 = vpop.permute.xlu0 %1715
      %1717 = vrot.lane.b32.xlu0 %v859, 64
      %v1718 = vpop.permute.xlu0 %1717
      %1719 = vrot.lane.b32.xlu0 %v861, 64
      %v1720 = vpop.permute.xlu0 %1719
      %1721 = vrot.lane.b32.xlu0 %v864, 64
      %v1722 = vpop.permute.xlu0 %1721
      %1723 = vrot.lane.b32.xlu0 %v866, 64
      %v1724 = vpop.permute.xlu0 %1723
      %1725 = vrot.lane.b32.xlu0 %v869, 64
      %v1726 = vpop.permute.xlu0 %1725
      %1727 = vrot.lane.b32.xlu0 %v871, 64
      %v1728 = vpop.permute.xlu0 %1727
      %1729 = vrot.lane.b32.xlu0 %v874, 64
      %v1730 = vpop.permute.xlu0 %1729
      %1731 = vrot.lane.b32.xlu0 %v876, 64
      %v1732 = vpop.permute.xlu0 %1731
      %1733 = vrot.lane.b32.xlu0 %v1274, 64
      %v1734 = vpop.permute.xlu0 %1733
      %1735 = vrot.lane.b32.xlu0 %v1276, 64
      %v1736 = vpop.permute.xlu0 %1735
      %1737 = vrot.lane.b32.xlu0 %v1674, 64
      %v1738 = vpop.permute.xlu0 %1737
      %1739 = vrot.lane.b32.xlu0 %v1676, 64
      %v1740 = vpop.permute.xlu0 %1739
      %vm1773 = vcmask 589312
      %1774 = vst.msk [vmem:[#allocation3] sm:$0xff] %vm1773, %v1678
      %1775 = vst.msk [vmem:[#allocation3 + $0x8] sm:$0xff] %vm1773, %v1680
      %1776 = vst.msk [vmem:[#allocation3 + $0x10] sm:$0xff] %vm1773, %v1682
      %1777 = vst.msk [vmem:[#allocation3 + $0x18] sm:$0xff] %vm1773, %v1684
      %1778 = vst.msk [vmem:[#allocation3 + $0x20] sm:$0xff] %vm1773, %v1686
      %1779 = vst.msk [vmem:[#allocation3 + $0x28] sm:$0xff] %vm1773, %v1688
      %1780 = vst.msk [vmem:[#allocation3 + $0x30] sm:$0xff] %vm1773, %v1690
      %1781 = vst.msk [vmem:[#allocation3 + $0x38] sm:$0xff] %vm1773, %v1692
      %1782 = vst.msk [vmem:[#allocation3 + $0x40] sm:$0xff] %vm1773, %v1694
      %1783 = vst.msk [vmem:[#allocation3 + $0x48] sm:$0xff] %vm1773, %v1696
      %1784 = vst.msk [vmem:[#allocation3 + $0x50] sm:$0xff] %vm1773, %v1698
      %1785 = vst.msk [vmem:[#allocation3 + $0x58] sm:$0xff] %vm1773, %v1700
      %1786 = vst.msk [vmem:[#allocation3 + $0x60] sm:$0xff] %vm1773, %v1702
      %1787 = vst.msk [vmem:[#allocation3 + $0x68] sm:$0xff] %vm1773, %v1704
      %1788 = vst.msk [vmem:[#allocation3 + $0x70] sm:$0xff] %vm1773, %v1706
      %1789 = vst.msk [vmem:[#allocation3 + $0x78] sm:$0xff] %vm1773, %v1708
      %1790 = vst.msk [vmem:[#allocation3 + $0x80] sm:$0xff] %vm1773, %v1710
      %1791 = vst.msk [vmem:[#allocation3 + $0x88] sm:$0xff] %vm1773, %v1712
      %1792 = vst.msk [vmem:[#allocation3 + $0x90] sm:$0xff] %vm1773, %v1714
      %1793 = vst.msk [vmem:[#allocation3 + $0x98] sm:$0xff] %vm1773, %v1716
      %1794 = vst.msk [vmem:[#allocation3 + $0xa0] sm:$0xff] %vm1773, %v1718
      %1795 = vst.msk [vmem:[#allocation3 + $0xa8] sm:$0xff] %vm1773, %v1720
      %1796 = vst.msk [vmem:[#allocation3 + $0xb0] sm:$0xff] %vm1773, %v1722
      %1797 = vst.msk [vmem:[#allocation3 + $0xb8] sm:$0xff] %vm1773, %v1724
      %1798 = vst.msk [vmem:[#allocation3 + $0xc0] sm:$0xff] %vm1773, %v1726
      %1799 = vst.msk [vmem:[#allocation3 + $0xc8] sm:$0xff] %vm1773, %v1728
      %1800 = vst.msk [vmem:[#allocation3 + $0xd0] sm:$0xff] %vm1773, %v1730
      %1801 = vst.msk [vmem:[#allocation3 + $0xd8] sm:$0xff] %vm1773, %v1732
      %1802 = vst.msk [vmem:[#allocation3 + $0xe0] sm:$0xff] %vm1773, %v1734
      %1803 = vst.msk [vmem:[#allocation3 + $0xe8] sm:$0xff] %vm1773, %v1736
      %1804 = vst.msk [vmem:[#allocation3 + $0xf0] sm:$0xff] %vm1773, %v1738
      %1805 = vst.msk [vmem:[#allocation3 + $0xf8] sm:$0xff] %vm1773, %v1740
      %v1806 = vld [vmem:[#allocation3] sm:$0xff]
      %v1807 = vld [vmem:[#allocation3 + $0x8] sm:$0xff]
      %v1808 = vld [vmem:[#allocation3 + $0x10] sm:$0xff]
      %v1809 = vld [vmem:[#allocation3 + $0x18] sm:$0xff]
      %v1810 = vld [vmem:[#allocation3 + $0x20] sm:$0xff]
      %v1811 = vld [vmem:[#allocation3 + $0x28] sm:$0xff]
      %v1812 = vld [vmem:[#allocation3 + $0x30] sm:$0xff]
      %v1813 = vld [vmem:[#allocation3 + $0x38] sm:$0xff]
      %v1814 = vld [vmem:[#allocation3 + $0x40] sm:$0xff]
      %v1815 = vld [vmem:[#allocation3 + $0x48] sm:$0xff]
      %v1816 = vld [vmem:[#allocation3 + $0x50] sm:$0xff]
      %v1817 = vld [vmem:[#allocation3 + $0x58] sm:$0xff]
      %v1818 = vld [vmem:[#allocation3 + $0x60] sm:$0xff]
      %v1819 = vld [vmem:[#allocation3 + $0x68] sm:$0xff]
      %v1820 = vld [vmem:[#allocation3 + $0x70] sm:$0xff]
      %v1821 = vld [vmem:[#allocation3 + $0x78] sm:$0xff]
      %v1822 = vld [vmem:[#allocation3 + $0x80] sm:$0xff]
      %v1823 = vld [vmem:[#allocation3 + $0x88] sm:$0xff]
      %v1824 = vld [vmem:[#allocation3 + $0x90] sm:$0xff]
      %v1825 = vld [vmem:[#allocation3 + $0x98] sm:$0xff]
      %v1826 = vld [vmem:[#allocation3 + $0xa0] sm:$0xff]
      %v1827 = vld [vmem:[#allocation3 + $0xa8] sm:$0xff]
      %v1828 = vld [vmem:[#allocation3 + $0xb0] sm:$0xff]
      %v1829 = vld [vmem:[#allocation3 + $0xb8] sm:$0xff]
      %v1830 = vld [vmem:[#allocation3 + $0xc0] sm:$0xff]
      %v1831 = vld [vmem:[#allocation3 + $0xc8] sm:$0xff]
      %v1832 = vld [vmem:[#allocation3 + $0xd0] sm:$0xff]
      %v1833 = vld [vmem:[#allocation3 + $0xd8] sm:$0xff]
      %v1834 = vld [vmem:[#allocation3 + $0xe0] sm:$0xff]
      %v1835 = vld [vmem:[#allocation3 + $0xe8] sm:$0xff]
      %v1836 = vld [vmem:[#allocation3 + $0xf0] sm:$0xff]
      %v1837 = vld [vmem:[#allocation3 + $0xf8] sm:$0xff]
      %v1838 = vld [vmem:[%s3] sm:$0xff]
      %v1839 = vld [vmem:[%s3 + $0x8] sm:$0xff]
      %v1840 = vld [vmem:[%s3 + $0x10] sm:$0xff]
      %v1841 = vld [vmem:[%s3 + $0x18] sm:$0xff]
      %v1842 = vld [vmem:[%s3 + $0x20] sm:$0xff]
      %v1843 = vld [vmem:[%s3 + $0x28] sm:$0xff]
      %v1844 = vld [vmem:[%s3 + $0x30] sm:$0xff]
      %v1845 = vld [vmem:[%s3 + $0x38] sm:$0xff]
      %v1846 = vld [vmem:[%s3 + $0x40] sm:$0xff]
      %v1847 = vld [vmem:[%s4] sm:$0x1]
      %v1849 = vlaneseq
      %v1850 = vshrl.u32 %v1849, 7
      %v1851 = vsub.s32 0, %v1850
      %v1852 = vrot.slane %v1847, %v1851
      %vm1854 = vcmask 588800
      %v1856 = vsel %vm1854, %v1806, 0
      %v1859 = vsel %vm1854, %v1807, 0
      %v1862 = vsel %vm1854, %v1808, 0
      %v1865 = vsel %vm1854, %v1809, 0
      %v1868 = vsel %vm1854, %v1810, 0
      %v1871 = vsel %vm1854, %v1811, 0
      %v1874 = vsel %vm1854, %v1812, 0
      %v1877 = vsel %vm1854, %v1813, 0
      %v1880 = vsel %vm1854, %v1814, 0
      %v1883 = vsel %vm1854, %v1815, 0
      %v1886 = vsel %vm1854, %v1816, 0
      %v1889 = vsel %vm1854, %v1817, 0
      %v1892 = vsel %vm1854, %v1818, 0
      %v1895 = vsel %vm1854, %v1819, 0
      %v1898 = vsel %vm1854, %v1820, 0
      %v1901 = vsel %vm1854, %v1821, 0
      %v1904 = vsel %vm1854, %v1822, 0
      %v1907 = vsel %vm1854, %v1823, 0
      %v1910 = vsel %vm1854, %v1824, 0
      %v1913 = vsel %vm1854, %v1825, 0
      %v1916 = vsel %vm1854, %v1826, 0
      %v1919 = vsel %vm1854, %v1827, 0
      %v1922 = vsel %vm1854, %v1828, 0
      %v1925 = vsel %vm1854, %v1829, 0
      %v1928 = vsel %vm1854, %v1830, 0
      %v1931 = vsel %vm1854, %v1831, 0
      %v1934 = vsel %vm1854, %v1832, 0
      %v1937 = vsel %vm1854, %v1833, 0
      %v1940 = vsel %vm1854, %v1834, 0
      %v1943 = vsel %vm1854, %v1835, 0
      %v1946 = vsel %vm1854, %v1836, 0
      %v1949 = vsel %vm1854, %v1837, 0
      %1951 = vmatprep.subr.mxu0 0.0
      %1952 = vmatpush1.msra.mxu0 %v1838
      %1953 = vmatprep.subr.mxu0 0.0
      %1954 = vmatpush1.msra.mxu0 %v1839
      %1955 = vmatprep.subr.mxu0 0.0
      %1956 = vmatpush1.msra.mxu0 %v1840
      %1957 = vmatprep.subr.mxu0 0.0
      %1958 = vmatpush1.msra.mxu0 %v1841
      %1959 = vmatprep.subr.mxu0 0.0
      %1960 = vmatpush1.msra.mxu0 %v1842
      %1961 = vmatprep.subr.mxu0 0.0
      %1962 = vmatpush1.msra.mxu0 %v1843
      %1963 = vmatprep.subr.mxu0 0.0
      %1964 = vmatpush1.msra.mxu0 %v1844
      %1965 = vmatprep.subr.mxu0 0.0
      %1966 = vmatpush1.msra.mxu0 %v1845
      %1967 = vmatprep.subr.mxu0 0.0
      %1968 = vmatpush1.msra.mxu0 %v1846
      %1969 = vmatprep.subr.mxu0 0.0
      %1970 = vmatpush1.msra.mxu0 0.0
      %1971 = vmatprep.subr.mxu0 0.0
      %1972 = vmatpush1.msra.mxu0 0.0
      %1973 = vmatprep.subr.mxu0 0.0
      %1974 = vmatpush1.msra.mxu0 0.0
      %1975 = vmatprep.subr.mxu0 0.0
      %1976 = vmatpush1.msra.mxu0 0.0
      %1977 = vmatprep.subr.mxu0 0.0
      %1978 = vmatpush1.msra.mxu0 0.0
      %1979 = vmatprep.subr.mxu0 0.0
      %1980 = vmatpush1.msra.mxu0 0.0
      %1981 = vmatprep.subr.mxu0 0.0
      %1982 = vmatpush1.msra.mxu0 0.0
      %1983 = vmatprep.subr.mxu0 0.0
      %1984 = vmatpush1.msra.mxu0 0.0
      %1985 = vmatprep.subr.mxu0 0.0
      %1986 = vmatpush1.msra.mxu0 0.0
      %1987 = vmatprep.subr.mxu0 0.0
      %1988 = vmatpush1.msra.mxu0 0.0
      %1989 = vmatprep.subr.mxu0 0.0
      %1990 = vmatpush1.msra.mxu0 0.0
      %1991 = vmatprep.subr.mxu0 0.0
      %1992 = vmatpush1.msra.mxu0 0.0
      %1993 = vmatprep.subr.mxu0 0.0
      %1994 = vmatpush1.msra.mxu0 0.0
      %1995 = vmatprep.subr.mxu0 0.0
      %1996 = vmatpush1.msra.mxu0 0.0
      %1997 = vmatprep.subr.mxu0 0.0
      %1998 = vmatpush1.msra.mxu0 0.0
      %1999 = vmatprep.subr.mxu0 0.0
      %2000 = vmatpush1.msra.mxu0 0.0
      %2001 = vmatprep.subr.mxu0 0.0
      %2002 = vmatpush1.msra.mxu0 0.0
      %2003 = vmatprep.subr.mxu0 0.0
      %2004 = vmatpush1.msra.mxu0 0.0
      %2005 = vmatprep.subr.mxu0 0.0
      %2006 = vmatpush1.msra.mxu0 0.0
      %2007 = vmatprep.subr.mxu0 0.0
      %2008 = vmatpush1.msra.mxu0 0.0
      %2009 = vmatprep.subr.mxu0 0.0
      %2010 = vmatpush1.msra.mxu0 0.0
      %2011 = vmatprep.subr.mxu0 0.0
      %2012 = vmatpush1.msra.mxu0 0.0
      %2013 = vmatprep.subr.mxu0 0.0
      %2014 = vmatpush1.msra.mxu0 0.0
      %2015 = vmatprep.mubr.f32.mxu0 0.0
      %2016 = vmatmul.mubr.f32.gmra.mrb[0].mxu0 %v1856
      %v2017 = vpop.f32.mrb[0].mxu0
      %v2018 = vadd.f32 %v1852, %v2017
      %v2019 = vpop.f32.mrb[0].mxu0
      %2020 = vmatprep.mubr.f32.mxu0 0.0
      %2021 = vmatmul.mubr.f32.gmra.mrb[0].mxu0 %v1859
      %v2022 = vpop.f32.mrb[0].mxu0
      %v2023 = vadd.f32 %v1852, %v2022
      %v2024 = vpop.f32.mrb[0].mxu0
      %2025 = vmatprep.mubr.f32.mxu0 0.0
      %2026 = vmatmul.mubr.f32.gmra.mrb[0].mxu0 %v1862
      %v2027 = vpop.f32.mrb[0].mxu0
      %v2028 = vadd.f32 %v1852, %v2027
      %v2029 = vpop.f32.mrb[0].mxu0
      %2030 = vmatprep.mubr.f32.mxu0 0.0
      %2031 = vmatmul.mubr.f32.gmra.mrb[0].mxu0 %v1865
      %v2032 = vpop.f32.mrb[0].mxu0
      %v2033 = vadd.f32 %v1852, %v2032
      %v2034 = vpop.f32.mrb[0].mxu0
      %2035 = vmatprep.mubr.f32.mxu0 0.0
      %2036 = vmatmul.mubr.f32.gmra.mrb[0].mxu0 %v1868
      %v2037 = vpop.f32.mrb[0].mxu0
      %v2038 = vadd.f32 %v1852, %v2037
      %v2039 = vpop.f32.mrb[0].mxu0
      %2040 = vmatprep.mubr.f32.mxu0 0.0
      %2041 = vmatmul.mubr.f32.gmra.mrb[0].mxu0 %v1871
      %v2042 = vpop.f32.mrb[0].mxu0
      %v2043 = vadd.f32 %v1852, %v2042
      %v2044 = vpop.f32.mrb[0].mxu0
      %2045 = vmatprep.mubr.f32.mxu0 0.0
      %2046 = vmatmul.mubr.f32.gmra.mrb[0].mxu0 %v1874
      %v2047 = vpop.f32.mrb[0].mxu0
      %v2048 = vadd.f32 %v1852, %v2047
      %v2049 = vpop.f32.mrb[0].mxu0
      %2050 = vmatprep.mubr.f32.mxu0 0.0
      %2051 = vmatmul.mubr.f32.gmra.mrb[0].mxu0 %v1877
      %v2052 = vpop.f32.mrb[0].mxu0
      %v2053 = vadd.f32 %v1852, %v2052
      %v2054 = vpop.f32.mrb[0].mxu0
      %2055 = vmatprep.mubr.f32.mxu0 0.0
      %2056 = vmatmul.mubr.f32.gmra.mrb[0].mxu0 %v1880
      %v2057 = vpop.f32.mrb[0].mxu0
      %v2058 = vadd.f32 %v1852, %v2057
      %v2059 = vpop.f32.mrb[0].mxu0
      %2060 = vmatprep.mubr.f32.mxu0 0.0
      %2061 = vmatmul.mubr.f32.gmra.mrb[0].mxu0 %v1883
      %v2062 = vpop.f32.mrb[0].mxu0
      %v2063 = vadd.f32 %v1852, %v2062
      %v2064 = vpop.f32.mrb[0].mxu0
      %2065 = vmatprep.mubr.f32.mxu0 0.0
      %2066 = vmatmul.mubr.f32.gmra.mrb[0].mxu0 %v1886
      %v2067 = vpop.f32.mrb[0].mxu0
      %v2068 = vadd.f32 %v1852, %v2067
      %v2069 = vpop.f32.mrb[0].mxu0
      %2070 = vmatprep.mubr.f32.mxu0 0.0
      %2071 = vmatmul.mubr.f32.gmra.mrb[0].mxu0 %v1889
      %v2072 = vpop.f32.mrb[0].mxu0
      %v2073 = vadd.f32 %v1852, %v2072
      %v2074 = vpop.f32.mrb[0].mxu0
      %2075 = vmatprep.mubr.f32.mxu0 0.0
      %2076 = vmatmul.mubr.f32.gmra.mrb[0].mxu0 %v1892
      %v2077 = vpop.f32.mrb[0].mxu0
      %v2078 = vadd.f32 %v1852, %v2077
      %v2079 = vpop.f32.mrb[0].mxu0
      %2080 = vmatprep.mubr.f32.mxu0 0.0
      %2081 = vmatmul.mubr.f32.gmra.mrb[0].mxu0 %v1895
      %v2082 = vpop.f32.mrb[0].mxu0
      %v2083 = vadd.f32 %v1852, %v2082
      %v2084 = vpop.f32.mrb[0].mxu0
      %2085 = vmatprep.mubr.f32.mxu0 0.0
      %2086 = vmatmul.mubr.f32.gmra.mrb[0].mxu0 %v1898
      %v2087 = vpop.f32.mrb[0].mxu0
      %v2088 = vadd.f32 %v1852, %v2087
      %v2089 = vpop.f32.mrb[0].mxu0
      %2090 = vmatprep.mubr.f32.mxu0 0.0
      %2091 = vmatmul.mubr.f32.gmra.mrb[0].mxu0 %v1901
      %v2092 = vpop.f32.mrb[0].mxu0
      %v2093 = vadd.f32 %v1852, %v2092
      %v2094 = vpop.f32.mrb[0].mxu0
      %2095 = vmatprep.mubr.f32.mxu0 0.0
      %2096 = vmatmul.mubr.f32.gmra.mrb[0].mxu0 %v1904
      %v2097 = vpop.f32.mrb[0].mxu0
      %v2098 = vadd.f32 %v1852, %v2097
      %v2099 = vpop.f32.mrb[0].mxu0
      %2100 = vmatprep.mubr.f32.mxu0 0.0
      %2101 = vmatmul.mubr.f32.gmra.mrb[0].mxu0 %v1907
      %v2102 = vpop.f32.mrb[0].mxu0
      %v2103 = vadd.f32 %v1852, %v2102
      %v2104 = vpop.f32.mrb[0].mxu0
      %2105 = vmatprep.mubr.f32.mxu0 0.0
      %2106 = vmatmul.mubr.f32.gmra.mrb[0].mxu0 %v1910
      %v2107 = vpop.f32.mrb[0].mxu0
      %v2108 = vadd.f32 %v1852, %v2107
      %v2109 = vpop.f32.mrb[0].mxu0
      %2110 = vmatprep.mubr.f32.mxu0 0.0
      %2111 = vmatmul.mubr.f32.gmra.mrb[0].mxu0 %v1913
      %v2112 = vpop.f32.mrb[0].mxu0
      %v2113 = vadd.f32 %v1852, %v2112
      %v2114 = vpop.f32.mrb[0].mxu0
      %2115 = vmatprep.mubr.f32.mxu0 0.0
      %2116 = vmatmul.mubr.f32.gmra.mrb[0].mxu0 %v1916
      %v2117 = vpop.f32.mrb[0].mxu0
      %v2118 = vadd.f32 %v1852, %v2117
      %v2119 = vpop.f32.mrb[0].mxu0
      %2120 = vmatprep.mubr.f32.mxu0 0.0
      %2121 = vmatmul.mubr.f32.gmra.mrb[0].mxu0 %v1919
      %v2122 = vpop.f32.mrb[0].mxu0
      %v2123 = vadd.f32 %v1852, %v2122
      %v2124 = vpop.f32.mrb[0].mxu0
      %2125 = vmatprep.mubr.f32.mxu0 0.0
      %2126 = vmatmul.mubr.f32.gmra.mrb[0].mxu0 %v1922
      %v2127 = vpop.f32.mrb[0].mxu0
      %v2128 = vadd.f32 %v1852, %v2127
      %v2129 = vpop.f32.mrb[0].mxu0
      %2130 = vmatprep.mubr.f32.mxu0 0.0
      %2131 = vmatmul.mubr.f32.gmra.mrb[0].mxu0 %v1925
      %v2132 = vpop.f32.mrb[0].mxu0
      %v2133 = vadd.f32 %v1852, %v2132
      %v2134 = vpop.f32.mrb[0].mxu0
      %2135 = vmatprep.mubr.f32.mxu0 0.0
      %2136 = vmatmul.mubr.f32.gmra.mrb[0].mxu0 %v1928
      %v2137 = vpop.f32.mrb[0].mxu0
      %v2138 = vadd.f32 %v1852, %v2137
      %v2139 = vpop.f32.mrb[0].mxu0
      %2140 = vmatprep.mubr.f32.mxu0 0.0
      %2141 = vmatmul.mubr.f32.gmra.mrb[0].mxu0 %v1931
      %v2142 = vpop.f32.mrb[0].mxu0
      %v2143 = vadd.f32 %v1852, %v2142
      %v2144 = vpop.f32.mrb[0].mxu0
      %2145 = vmatprep.mubr.f32.mxu0 0.0
      %2146 = vmatmul.mubr.f32.gmra.mrb[0].mxu0 %v1934
      %v2147 = vpop.f32.mrb[0].mxu0
      %v2148 = vadd.f32 %v1852, %v2147
      %v2149 = vpop.f32.mrb[0].mxu0
      %2150 = vmatprep.mubr.f32.mxu0 0.0
      %2151 = vmatmul.mubr.f32.gmra.mrb[0].mxu0 %v1937
      %v2152 = vpop.f32.mrb[0].mxu0
      %v2153 = vadd.f32 %v1852, %v2152
      %v2154 = vpop.f32.mrb[0].mxu0
      %2155 = vmatprep.mubr.f32.mxu0 0.0
      %2156 = vmatmul.mubr.f32.gmra.mrb[0].mxu0 %v1940
      %v2157 = vpop.f32.mrb[0].mxu0
      %v2158 = vadd.f32 %v1852, %v2157
      %v2159 = vpop.f32.mrb[0].mxu0
      %2160 = vmatprep.mubr.f32.mxu0 0.0
      %2161 = vmatmul.mubr.f32.gmra.mrb[0].mxu0 %v1943
      %v2162 = vpop.f32.mrb[0].mxu0
      %v2163 = vadd.f32 %v1852, %v2162
      %v2164 = vpop.f32.mrb[0].mxu0
      %2165 = vmatprep.mubr.f32.mxu0 0.0
      %2166 = vmatmul.mubr.f32.gmra.mrb[0].mxu0 %v1946
      %v2167 = vpop.f32.mrb[0].mxu0
      %v2168 = vadd.f32 %v1852, %v2167
      %v2169 = vpop.f32.mrb[0].mxu0
      %2170 = vmatprep.mubr.f32.mxu0 0.0
      %2171 = vmatmul.mubr.f32.gmra.mrb[0].mxu0 %v1949
      %v2172 = vpop.f32.mrb[0].mxu0
      %v2173 = vadd.f32 %v1852, %v2172
      %v2174 = vpop.f32.mrb[0].mxu0
      %2175 = vdwg.mxu0
      %v2176 = vmax.f32 %v2018, 0.0
      %v2177 = vmax.f32 %v2023, 0.0
      %v2178 = vmax.f32 %v2028, 0.0
      %v2179 = vmax.f32 %v2033, 0.0
      %v2180 = vmax.f32 %v2038, 0.0
      %v2181 = vmax.f32 %v2043, 0.0
      %v2182 = vmax.f32 %v2048, 0.0
      %v2183 = vmax.f32 %v2053, 0.0
      %v2184 = vmax.f32 %v2058, 0.0
      %v2185 = vmax.f32 %v2063, 0.0
      %v2186 = vmax.f32 %v2068, 0.0
      %v2187 = vmax.f32 %v2073, 0.0
      %v2188 = vmax.f32 %v2078, 0.0
      %v2189 = vmax.f32 %v2083, 0.0
      %v2190 = vmax.f32 %v2088, 0.0
      %v2191 = vmax.f32 %v2093, 0.0
      %v2192 = vmax.f32 %v2098, 0.0
      %v2193 = vmax.f32 %v2103, 0.0
      %v2194 = vmax.f32 %v2108, 0.0
      %v2195 = vmax.f32 %v2113, 0.0
      %v2196 = vmax.f32 %v2118, 0.0
      %v2197 = vmax.f32 %v2123, 0.0
      %v2198 = vmax.f32 %v2128, 0.0
      %v2199 = vmax.f32 %v2133, 0.0
      %v2200 = vmax.f32 %v2138, 0.0
      %v2201 = vmax.f32 %v2143, 0.0
      %v2202 = vmax.f32 %v2148, 0.0
      %v2203 = vmax.f32 %v2153, 0.0
      %v2204 = vmax.f32 %v2158, 0.0
      %v2205 = vmax.f32 %v2163, 0.0
      %v2206 = vmax.f32 %v2168, 0.0
      %v2207 = vmax.f32 %v2173, 0.0
      %v2208 = vsel %vm373, %v2176, 0.0
      %v2209 = vsel %vm373, %v2177, 0.0
      %v2210 = vadd.f32 %v2208, %v2209
      %v2211 = vsel %vm373, %v2178, 0.0
      %v2212 = vadd.f32 %v2210, %v2211
      %v2213 = vsel %vm373, %v2179, 0.0
      %v2214 = vadd.f32 %v2212, %v2213
      %v2215 = vsel %vm373, %v2180, 0.0
      %v2216 = vadd.f32 %v2214, %v2215
      %v2217 = vsel %vm373, %v2181, 0.0
      %v2218 = vadd.f32 %v2216, %v2217
      %v2219 = vsel %vm373, %v2182, 0.0
      %v2220 = vadd.f32 %v2218, %v2219
      %v2221 = vsel %vm373, %v2183, 0.0
      %v2222 = vadd.f32 %v2220, %v2221
      %v2223 = vsel %vm373, %v2184, 0.0
      %v2224 = vadd.f32 %v2222, %v2223
      %v2225 = vsel %vm373, %v2185, 0.0
      %v2226 = vadd.f32 %v2224, %v2225
      %v2227 = vsel %vm373, %v2186, 0.0
      %v2228 = vadd.f32 %v2226, %v2227
      %v2229 = vsel %vm373, %v2187, 0.0
      %v2230 = vadd.f32 %v2228, %v2229
      %v2231 = vsel %vm373, %v2188, 0.0
      %v2232 = vadd.f32 %v2230, %v2231
      %v2233 = vsel %vm373, %v2189, 0.0
      %v2234 = vadd.f32 %v2232, %v2233
      %v2235 = vsel %vm373, %v2190, 0.0
      %v2236 = vadd.f32 %v2234, %v2235
      %v2237 = vsel %vm373, %v2191, 0.0
      %v2238 = vadd.f32 %v2236, %v2237
      %v2239 = vsel %vm373, %v2192, 0.0
      %v2240 = vadd.f32 %v2238, %v2239
      %v2241 = vsel %vm373, %v2193, 0.0
      %v2242 = vadd.f32 %v2240, %v2241
      %v2243 = vsel %vm373, %v2194, 0.0
      %v2244 = vadd.f32 %v2242, %v2243
      %v2245 = vsel %vm373, %v2195, 0.0
      %v2246 = vadd.f32 %v2244, %v2245
      %v2247 = vsel %vm373, %v2196, 0.0
      %v2248 = vadd.f32 %v2246, %v2247
      %v2249 = vsel %vm373, %v2197, 0.0
      %v2250 = vadd.f32 %v2248, %v2249
      %v2251 = vsel %vm373, %v2198, 0.0
      %v2252 = vadd.f32 %v2250, %v2251
      %v2253 = vsel %vm373, %v2199, 0.0
      %v2254 = vadd.f32 %v2252, %v2253
      %v2255 = vsel %vm373, %v2200, 0.0
      %v2256 = vadd.f32 %v2254, %v2255
      %v2257 = vsel %vm373, %v2201, 0.0
      %v2258 = vadd.f32 %v2256, %v2257
      %v2259 = vsel %vm373, %v2202, 0.0
      %v2260 = vadd.f32 %v2258, %v2259
      %v2261 = vsel %vm373, %v2203, 0.0
      %v2262 = vadd.f32 %v2260, %v2261
      %v2263 = vsel %vm373, %v2204, 0.0
      %v2264 = vadd.f32 %v2262, %v2263
      %v2265 = vsel %vm373, %v2205, 0.0
      %v2266 = vadd.f32 %v2264, %v2265
      %v2267 = vsel %vm373, %v2206, 0.0
      %v2268 = vadd.f32 %v2266, %v2267
      %v2269 = vsel %vm373, %v2207, 0.0
      %v2270 = vadd.f32 %v2268, %v2269
      %v2271 = vrot.slane %v2270, 4
      %v2272 = vadd.f32 %v2270, %v2271
      %v2273 = vrot.slane %v2272, 2
      %v2274 = vadd.f32 %v2272, %v2273
      %v2275 = vrot.slane %v2274, 1
      %v2276 = vadd.f32 %v2274, %v2275
      %2277 = vst.msk [vmem:[%s262] sm:$0x1] %vm382, %v2276
      %v2278 = vmul.f32 %v2176, %v2176
      %v2279 = vmul.f32 %v2177, %v2177
      %v2280 = vmul.f32 %v2178, %v2178
      %v2281 = vmul.f32 %v2179, %v2179
      %v2282 = vmul.f32 %v2180, %v2180
      %v2283 = vmul.f32 %v2181, %v2181
      %v2284 = vmul.f32 %v2182, %v2182
      %v2285 = vmul.f32 %v2183, %v2183
      %v2286 = vmul.f32 %v2184, %v2184
      %v2287 = vmul.f32 %v2185, %v2185
      %v2288 = vmul.f32 %v2186, %v2186
      %v2289 = vmul.f32 %v2187, %v2187
      %v2290 = vmul.f32 %v2188, %v2188
      %v2291 = vmul.f32 %v2189, %v2189
      %v2292 = vmul.f32 %v2190, %v2190
      %v2293 = vmul.f32 %v2191, %v2191
      %v2294 = vmul.f32 %v2192, %v2192
      %v2295 = vmul.f32 %v2193, %v2193
      %v2296 = vmul.f32 %v2194, %v2194
      %v2297 = vmul.f32 %v2195, %v2195
      %v2298 = vmul.f32 %v2196, %v2196
      %v2299 = vmul.f32 %v2197, %v2197
      %v2300 = vmul.f32 %v2198, %v2198
      %v2301 = vmul.f32 %v2199, %v2199
      %v2302 = vmul.f32 %v2200, %v2200
      %v2303 = vmul.f32 %v2201, %v2201
      %v2304 = vmul.f32 %v2202, %v2202
      %v2305 = vmul.f32 %v2203, %v2203
      %v2306 = vmul.f32 %v2204, %v2204
      %v2307 = vmul.f32 %v2205, %v2205
      %v2308 = vmul.f32 %v2206, %v2206
      %v2309 = vmul.f32 %v2207, %v2207
      %v2310 = vsel %vm373, %v2278, 0.0
      %v2311 = vsel %vm373, %v2279, 0.0
      %v2312 = vadd.f32 %v2310, %v2311
      %v2313 = vsel %vm373, %v2280, 0.0
      %v2314 = vadd.f32 %v2312, %v2313
      %v2315 = vsel %vm373, %v2281, 0.0
      %v2316 = vadd.f32 %v2314, %v2315
      %v2317 = vsel %vm373, %v2282, 0.0
      %v2318 = vadd.f32 %v2316, %v2317
      %v2319 = vsel %vm373, %v2283, 0.0
      %v2320 = vadd.f32 %v2318, %v2319
      %v2321 = vsel %vm373, %v2284, 0.0
      %v2322 = vadd.f32 %v2320, %v2321
      %v2323 = vsel %vm373, %v2285, 0.0
      %v2324 = vadd.f32 %v2322, %v2323
      %v2325 = vsel %vm373, %v2286, 0.0
      %v2326 = vadd.f32 %v2324, %v2325
      %v2327 = vsel %vm373, %v2287, 0.0
      %v2328 = vadd.f32 %v2326, %v2327
      %v2329 = vsel %vm373, %v2288, 0.0
      %v2330 = vadd.f32 %v2328, %v2329
      %v2331 = vsel %vm373, %v2289, 0.0
      %v2332 = vadd.f32 %v2330, %v2331
      %v2333 = vsel %vm373, %v2290, 0.0
      %v2334 = vadd.f32 %v2332, %v2333
      %v2335 = vsel %vm373, %v2291, 0.0
      %v2336 = vadd.f32 %v2334, %v2335
      %v2337 = vsel %vm373, %v2292, 0.0
      %v2338 = vadd.f32 %v2336, %v2337
      %v2339 = vsel %vm373, %v2293, 0.0
      %v2340 = vadd.f32 %v2338, %v2339
      %v2341 = vsel %vm373, %v2294, 0.0
      %v2342 = vadd.f32 %v2340, %v2341
      %v2343 = vsel %vm373, %v2295, 0.0
      %v2344 = vadd.f32 %v2342, %v2343
      %v2345 = vsel %vm373, %v2296, 0.0
      %v2346 = vadd.f32 %v2344, %v2345
      %v2347 = vsel %vm373, %v2297, 0.0
      %v2348 = vadd.f32 %v2346, %v2347
      %v2349 = vsel %vm373, %v2298, 0.0
      %v2350 = vadd.f32 %v2348, %v2349
      %v2351 = vsel %vm373, %v2299, 0.0
      %v2352 = vadd.f32 %v2350, %v2351
      %v2353 = vsel %vm373, %v2300, 0.0
      %v2354 = vadd.f32 %v2352, %v2353
      %v2355 = vsel %vm373, %v2301, 0.0
      %v2356 = vadd.f32 %v2354, %v2355
      %v2357 = vsel %vm373, %v2302, 0.0
      %v2358 = vadd.f32 %v2356, %v2357
      %v2359 = vsel %vm373, %v2303, 0.0
      %v2360 = vadd.f32 %v2358, %v2359
      %v2361 = vsel %vm373, %v2304, 0.0
      %v2362 = vadd.f32 %v2360, %v2361
      %v2363 = vsel %vm373, %v2305, 0.0
      %v2364 = vadd.f32 %v2362, %v2363
      %v2365 = vsel %vm373, %v2306, 0.0
      %v2366 = vadd.f32 %v2364, %v2365
      %v2367 = vsel %vm373, %v2307, 0.0
      %v2368 = vadd.f32 %v2366, %v2367
      %v2369 = vsel %vm373, %v2308, 0.0
      %v2370 = vadd.f32 %v2368, %v2369
      %v2371 = vsel %vm373, %v2309, 0.0
      %v2372 = vadd.f32 %v2370, %v2371
      %v2373 = vrot.slane %v2372, 4
      %v2374 = vadd.f32 %v2372, %v2373
      %v2375 = vrot.slane %v2374, 2
      %v2376 = vadd.f32 %v2374, %v2375
      %v2377 = vrot.slane %v2376, 1
      %v2378 = vadd.f32 %v2376, %v2377
      %2379 = vst.msk [vmem:[%s262 + $0x1] sm:$0x1] %vm382, %v2378
      %2380 = vst.msk [vmem:[%s258] sm:$0xff] %vm373, %v2176
      %2381 = vst.msk [vmem:[%s258 + $0x8] sm:$0xff] %vm373, %v2177
      %2382 = vst.msk [vmem:[%s258 + $0x10] sm:$0xff] %vm373, %v2178
      %2383 = vst.msk [vmem:[%s258 + $0x18] sm:$0xff] %vm373, %v2179
      %2384 = vst.msk [vmem:[%s258 + $0x20] sm:$0xff] %vm373, %v2180
      %2385 = vst.msk [vmem:[%s258 + $0x28] sm:$0xff] %vm373, %v2181
      %2386 = vst.msk [vmem:[%s258 + $0x30] sm:$0xff] %vm373, %v2182
      %2387 = vst.msk [vmem:[%s258 + $0x38] sm:$0xff] %vm373, %v2183
      %2388 = vst.msk [vmem:[%s258 + $0x40] sm:$0xff] %vm373, %v2184
      %2389 = vst.msk [vmem:[%s258 + $0x48] sm:$0xff] %vm373, %v2185
      %2390 = vst.msk [vmem:[%s258 + $0x50] sm:$0xff] %vm373, %v2186
      %2391 = vst.msk [vmem:[%s258 + $0x58] sm:$0xff] %vm373, %v2187
      %2392 = vst.msk [vmem:[%s258 + $0x60] sm:$0xff] %vm373, %v2188
      %2393 = vst.msk [vmem:[%s258 + $0x68] sm:$0xff] %vm373, %v2189
      %2394 = vst.msk [vmem:[%s258 + $0x70] sm:$0xff] %vm373, %v2190
      %2395 = vst.msk [vmem:[%s258 + $0x78] sm:$0xff] %vm373, %v2191
      %2396 = vst.msk [vmem:[%s258 + $0x80] sm:$0xff] %vm373, %v2192
      %2397 = vst.msk [vmem:[%s258 + $0x88] sm:$0xff] %vm373, %v2193
      %2398 = vst.msk [vmem:[%s258 + $0x90] sm:$0xff] %vm373, %v2194
      %2399 = vst.msk [vmem:[%s258 + $0x98] sm:$0xff] %vm373, %v2195
      %2400 = vst.msk [vmem:[%s258 + $0xa0] sm:$0xff] %vm373, %v2196
      %2401 = vst.msk [vmem:[%s258 + $0xa8] sm:$0xff] %vm373, %v2197
      %2402 = vst.msk [vmem:[%s258 + $0xb0] sm:$0xff] %vm373, %v2198
      %2403 = vst.msk [vmem:[%s258 + $0xb8] sm:$0xff] %vm373, %v2199
      %2404 = vst.msk [vmem:[%s258 + $0xc0] sm:$0xff] %vm373, %v2200
      %2405 = vst.msk [vmem:[%s258 + $0xc8] sm:$0xff] %vm373, %v2201
      %2406 = vst.msk [vmem:[%s258 + $0xd0] sm:$0xff] %vm373, %v2202
      %2407 = vst.msk [vmem:[%s258 + $0xd8] sm:$0xff] %vm373, %v2203
      %2408 = vst.msk [vmem:[%s258 + $0xe0] sm:$0xff] %vm373, %v2204
      %2409 = vst.msk [vmem:[%s258 + $0xe8] sm:$0xff] %vm373, %v2205
      %2410 = vst.msk [vmem:[%s258 + $0xf0] sm:$0xff] %vm373, %v2206
      %2411 = vst.msk [vmem:[%s258 + $0xf8] sm:$0xff] %vm373, %v2207
      %p2412 = scmp.lt.s32.totalorder %s18, 1
      %s2413 = scalar_select %p2412, %s18, 1
      %s2414 = smul.addr %s2413, 32
      %s2415 = smul.addr %s2414, 8
      %s2416 = scalar_lea.vmem %s5, %s2415
      %p2417 = scmp.lt.s32.totalorder %s18, 1
      %s2418 = scalar_select %p2417, %s18, 1
      %s2419 = smul.addr %s2418, 2
      %s2420 = scalar_lea.vmem %s6, %s2419
      // Predicated region
      $region41: #{unet_conv_block.4} parent=39 // pred_check
        %p2421 = pneg %p146
      $region42: #{unet_conv_block.4} parent=39 // pred_check_branch
        %2423 = sbr.rel (%p2421) target = $region44
      $region43: #{unet_conv_block.4} parent=39 // pred_region
        _
      $region44: #{unet_conv_block.4} parent=39 // pred_fallthru
        _
      // Predicated region
      $region45: #{unet_conv_block.4} parent=39 // pred_check
        %p2424 = pneg %p172
      $region46: #{unet_conv_block.4} parent=39 // pred_check_branch
        %2426 = sbr.rel (%p2424) target = $region48
      $region47: #{unet_conv_block.4} parent=39 // pred_region
        _
      $region48: #{unet_conv_block.4} parent=39 // pred_fallthru
        _
    $region40: #{unet_conv_block.4} parent=5 // pred_fallthru
      _
    %p2427 = scmp.le.s32.totalorder 2, %s13
    // Predicated region
    $region49: #{unet_conv_block.4} parent=5 // pred_check
      %p2428 = pneg %p2427
    $region50: #{unet_conv_block.4} parent=5 // pred_check_branch
      %2430 = sbr.rel (%p2428) target = $region52
    $region51: #{unet_conv_block.4} parent=5 // pred_region
      %s2431 = ssub.s32 %s13, 2
      // Predicated region
      $region53: #{unet_conv_block.4} parent=51 // pred_check
        %p2432 = pneg %p152
      $region54: #{unet_conv_block.4} parent=51 // pred_check_branch
        %2434 = sbr.rel (%p2432) target = $region56
      $region55: #{unet_conv_block.4} parent=51 // pred_region
        %p2435 = scmp.lt.s32.totalorder %s19, 1
        %s2436 = scalar_select %p2435, %s19, 1
        %s2437 = smul.addr %s2436, 32
        %s2438 = smul.addr %s2437, 8
        %s2439 = scalar_lea.vmem %s5, %s2438
      $region56: #{unet_conv_block.4} parent=51 // pred_fallthru
        _
      // Predicated region
      $region57: #{unet_conv_block.4} parent=51 // pred_check
        %p2440 = pneg %p178
      $region58: #{unet_conv_block.4} parent=51 // pred_check_branch
        %2442 = sbr.rel (%p2440) target = $region60
      $region59: #{unet_conv_block.4} parent=51 // pred_region
        %p2443 = scmp.lt.s32.totalorder %s19, 1
        %s2444 = scalar_select %p2443, %s19, 1
        %s2445 = smul.addr %s2444, 2
        %s2446 = scalar_lea.vmem %s6, %s2445
      $region60: #{unet_conv_block.4} parent=51 // pred_fallthru
        _
    $region52: #{unet_conv_block.4} parent=5 // pred_fallthru
      _
  $region6: #{unet_conv_block.4} parent=0 // loop_footer
    %s17 = sadd.s32 1, %s13
  $region7: #{unet_conv_block.4} parent=0 // loop_footer_branch
    %12 = sbr.rel target = $region3
  $region8: #{unet_conv_block.4} parent=0 // loop_exit
    _

</llo_original>
